<compile_context>
chip_gen: v5e
topology: v5e:2x2
jax: 0.10.0
libtpu: 0.0.40
codegen_flags: <defaults>
</compile_context>

<pallas_src>
import functools

import jax
import jax.numpy as jnp
from jax import lax
from jax.experimental import pallas as pl
from jax.experimental.pallas import tpu as pltpu


# ----------------------------------------------------------------------------
# helpers
# ----------------------------------------------------------------------------
def _sigmoid(x):
    # numerically stable sigmoid via tanh (EUP), avoids exp overflow
    return 0.5 * (jnp.tanh(0.5 * x) + 1.0)


def _softmax_last(x):
    m = jnp.max(x, axis=-1, keepdims=True)
    e = jnp.exp(x - m)
    return e * pl.reciprocal(jnp.sum(e, axis=-1, keepdims=True), approx=True)


def _mm(a, b):
    # (M,K) @ (K,N) on the MXU, f32 accumulate
    return jnp.dot(a, b, preferred_element_type=jnp.float32)


def _pick_v_tile(V, target=1024):
    """Largest 128-multiple <= target that divides V (else full V)."""
    if V <= target:
        return V
    for t in range(target, 0, -128):
        if V % t == 0:
            return t
    return V


def _pick_batch_block(B, cap=8):
    for bb in range(min(B, cap), 0, -1):
        if B % bb == 0:
            return bb
    return B


# ----------------------------------------------------------------------------
# Kernel 1: masked (pack_padded-equivalent) single-layer GRU
#   grid over batch, one sequence per program; batch-first HBM layout.
# ----------------------------------------------------------------------------
def gru_kernel(x_ref, h0_ref, len_ref, wih_ref, whh_ref, bih_ref, bhh_ref,
               out_ref, hT_ref, gi_s):
    # x_ref: (T, E)   out_ref: (T, H)   h0_ref/hT_ref: (1, H)   len_ref: (1, 1)
    T = x_ref.shape[0]
    H = h0_ref.shape[1]

    # Hoisted input projection: one big (T,E)@(E,3H) matmul instead of T tiny
    # per-step matmuls (gate order r, z, n as in PyTorch).
    gi_s[...] = _mm(x_ref[...], wih_ref[...]) + bih_ref[...]          # (T, 3H)

    whh = whh_ref[...]          # (H, 3H)  loaded once, stays in registers/VMEM
    bhh = bhh_ref[...]          # (1, 3H)
    lens = len_ref[...]         # (1, 1) int32
    # NOTE: for lane-aligned gate slices, H should be a multiple of 128 at
    # production sizes (toy H=32 incurs a small relayout per step).

    def step(t, h):                                                   # h: (1, H)
        g_i = gi_s[pl.ds(t, 1), :]                                    # (1, 3H)
        g_h = _mm(h, whh) + bhh                                       # (1, 3H)
        r = _sigmoid(g_i[:, 0:H] + g_h[:, 0:H])
        z = _sigmoid(g_i[:, H:2 * H] + g_h[:, H:2 * H])
        n = jnp.tanh(g_i[:, 2 * H:3 * H] + r * g_h[:, 2 * H:3 * H])
        h_new = (1.0 - z) * n + z * h
        valid = t < lens                                              # (1, 1)
        out_ref[pl.ds(t, 1), :] = jnp.where(valid, h_new, 0.0)        # pad -> 0
        return jnp.where(valid, h_new, h)                             # pad -> frozen

    hT_ref[...] = lax.fori_loop(0, T, step, h0_ref[...])


def run_gru(y_emb, h0, lengths, wih, whh, bih, bhh):
    B, T, E = y_emb.shape
    H = h0.shape[1]
    H3 = 3 * H
    h0_3 = h0.reshape(B, 1, H).astype(jnp.float32)
    lens3 = lengths.reshape(B, 1, 1).astype(jnp.int32)

    out, hT3 = pl.pallas_call(
        gru_kernel,
        out_shape=(jax.ShapeDtypeStruct((B, T, H), jnp.float32),
                   jax.ShapeDtypeStruct((B, 1, H), jnp.float32)),
        grid=(B,),
        in_specs=[
            pl.BlockSpec((None, T, E), lambda b: (b, 0, 0)),      # x (batch-first)
            pl.BlockSpec((None, 1, H), lambda b: (b, 0, 0)),      # h0
            pl.BlockSpec((None, 1, 1), lambda b: (b, 0, 0)),      # length
            pl.BlockSpec((E, H3), lambda b: (0, 0)),              # W_ih
            pl.BlockSpec((H, H3), lambda b: (0, 0)),              # W_hh
            pl.BlockSpec((1, H3), lambda b: (0, 0)),              # b_ih
            pl.BlockSpec((1, H3), lambda b: (0, 0)),              # b_hh
        ],
        out_specs=(pl.BlockSpec((None, T, H), lambda b: (b, 0, 0)),
                   pl.BlockSpec((None, 1, H), lambda b: (b, 0, 0))),
        scratch_shapes=[pltpu.VMEM((T, H3), jnp.float32)],
        compiler_params=pltpu.CompilerParams(
            dimension_semantics=("parallel",)),
    )(y_emb.astype(jnp.float32), h0_3, lens3, wih, whh, bih, bhh)
    return out, hT3.reshape(B, H)


# ----------------------------------------------------------------------------
# Kernel 2: fused attention + vocab projection + topic attention + scatter +
#           grammar filter + two-pass log_softmax, tiled over the vocab axis.
#   grid = (batch blocks, pass in {0: stats, 1: write}, vocab tiles)
# ----------------------------------------------------------------------------
def decoder_head_kernel(o_ref, ctx_ref, te_ref, h_ref, top_ref, mem_ref,
                        wa_in_ref, wa_oc_ref, wa_oh_ref, ba_o_ref,
                        wt_in_ref, wt_oc_ref, wt_oh_ref, bt_o_ref,
                        w_tout_ref, b_tout_ref, w_arfa_ref, b_arfa_ref,
                        w_out_ref, b_out_ref,
                        logp_ref, attn_ref,
                        aout_s, tlog_s, arfa_s, m_s, l_s):
    q = pl.program_id(1)                 # 0: accumulate log-sum-exp, 1: write
    v = pl.program_id(2)                 # vocab tile index
    Bb, T, H = o_ref.shape
    C = ctx_ref.shape[2]
    Ltop, E = te_ref.shape[1], te_ref.shape[2]
    K = tlog_s.shape[2]
    Vt = w_out_ref.shape[1]

    # ---- V-independent work: once per batch block ---------------------------
    @pl.when(jnp.logical_and(q == 0, v == 0))
    def _():
        o3 = o_ref[...]                                      # (Bb, T, H)
        of = o3.reshape(Bb * T, H)                           # fold batch into M
        ctx = ctx_ref[...]                                   # (Bb, Lx, C)

        # Attention over encoder context.
        # NOTE: reference's masked_fill is out-of-place & discarded -> no masking.
        ctx_in = _mm(ctx.reshape(-1, C), wa_in_ref[...]).reshape(Bb, -1, H)
        scores = jnp.einsum('bth,blh->btl', o3, ctx_in,
                            preferred_element_type=jnp.float32)
        attn = _softmax_last(scores)                         # (Bb, T, Lx)
        attn_ref[...] = attn
        actx = jnp.einsum('btl,blc->btc', attn, ctx,
                          preferred_element_type=jnp.float32)
        aout_s[...] = jnp.tanh(_mm(actx.reshape(Bb * T, C), wa_oc_ref[...])
                               + _mm(of, wa_oh_ref[...]) + ba_o_ref[...])

        # Topic attention.
        te = te_ref[...]                                     # (Bb, Ltop, E)
        t_in = _mm(te.reshape(-1, E), wt_in_ref[...]).reshape(Bb, Ltop, H)
        tsc = jnp.einsum('bth,blh->btl', o3, t_in,
                         preferred_element_type=jnp.float32)
        tattn = _softmax_last(tsc)                           # (Bb, T, Ltop)
        tctx = jnp.einsum('btl,ble->bte', tattn, te,
                          preferred_element_type=jnp.float32)
        tout = jnp.tanh(_mm(tctx.reshape(Bb * T, E), wt_oc_ref[...])
                        + _mm(of, wt_oh_ref[...]) + bt_o_ref[...])
        tlog_s[...] = (_mm(tout, w_tout_ref[...])
                       + b_tout_ref[...]).reshape(Bb, T, K)

        # Grammar-filter gate scalar per batch element.
        h2 = h_ref[...].reshape(Bb, H)
        arfa_s[...] = _sigmoid(_mm(h2, w_arfa_ref[...]) + b_arfa_ref[...])

        # Init online log-sum-exp accumulators.
        m_s[...] = jnp.full_like(m_s, -jnp.inf)
        l_s[...] = jnp.zeros_like(l_s)

    # ---- per vocab tile (computed in both passes) ----------------------------
    logits = _mm(aout_s[...], w_out_ref[...]) + b_out_ref[...]      # (Bb*T, Vt)

    # Topic scatter rebuilt inside the tile from int32 topic ids (no (B,K,V)
    # one-hot in HBM/VMEM).
    local = top_ref[...].reshape(Bb, K) - v * Vt                    # (Bb, K)
    iota = lax.broadcasted_iota(jnp.int32, (Bb, K, Vt), 2)
    onehot = (iota == local[:, :, None]).astype(jnp.float32)        # (Bb, K, Vt)
    scat = jnp.einsum('btk,bkv->btv', tlog_s[...], onehot,
                      preferred_element_type=jnp.float32)           # (Bb, T, Vt)

    total = logits.reshape(Bb, T, Vt) + scat

    # Fused grammar filter: arfa*mem*x + (1-mem)*x == x * (1 - mem*(1-arfa)).
    gate = 1.0 - mem_ref[...] * (1.0 - arfa_s[...])                 # (Bb, Vt)
    filtered = total * gate[:, None, :]                             # (Bb, T, Vt)

    @pl.when(q == 0)
    def _():                                                        # stats pass
        tmax = jnp.max(filtered, axis=-1, keepdims=True)
        m_new = jnp.maximum(m_s[...], tmax)
        l_s[...] = (l_s[...] * jnp.exp(m_s[...] - m_new)
                    + jnp.sum(jnp.exp(filtered - m_new), axis=-1, keepdims=True))
        m_s[...] = m_new

    @pl.when(q == 1)
    def _():                                                        # write pass
        logp_ref[...] = filtered - (m_s[...] + jnp.log(l_s[...]))


def run_decoder_head(out_seq, ctx, topic_embed, h_final, topics, memory, params,
                     *, v_tile=None, batch_block=None):
    B, T, H = out_seq.shape
    Lx, C = ctx.shape[1], ctx.shape[2]
    Ltop, E = topic_embed.shape[1], topic_embed.shape[2]
    K = topics.shape[1]
    V = memory.shape[1]

    Bb = batch_block or _pick_batch_block(B)
    Vt = v_tile or _pick_v_tile(V)
    assert B % Bb == 0 and V % Vt == 0
    nb, nv = B // Bb, V // Vt

    h3 = h_final.reshape(B, 1, H)
    top3 = topics.reshape(B, 1, K).astype(jnp.int32)

    weights_small = (params["wa_in"], params["wa_oc"], params["wa_oh"], params["ba_o"],
                     params["wt_in"], params["wt_oc"], params["wt_oh"], params["bt_o"],
                     params["w_tout"], params["b_tout"],
                     params["w_arfa"], params["b_arfa"])

    def wfull(w):
        return pl.BlockSpec(w.shape, lambda b, q, v: (0, 0))

    in_specs = [
        pl.BlockSpec((Bb, T, H), lambda b, q, v: (b, 0, 0)),      # out_seq
        pl.BlockSpec((Bb, Lx, C), lambda b, q, v: (b, 0, 0)),     # ctx
        pl.BlockSpec((Bb, Ltop, E), lambda b, q, v: (b, 0, 0)),   # topic_embed
        pl.BlockSpec((Bb, 1, H), lambda b, q, v: (b, 0, 0)),      # final hidden
        pl.BlockSpec((Bb, 1, K), lambda b, q, v: (b, 0, 0)),      # topic ids (int32)
        pl.BlockSpec((1, Vt), lambda b, q, v: (0, v)),            # grammar memory tile
    ] + [wfull(w) for w in weights_small] + [
        pl.BlockSpec((H, Vt), lambda b, q, v: (0, v)),            # w_out tile
        pl.BlockSpec((1, Vt), lambda b, q, v: (0, v)),            # b_out tile
    ]

    out_specs = (
        # pass 0 parks on tile 0 (never written); pass 1 walks the vocab tiles.
        pl.BlockSpec((Bb, T, Vt), lambda b, q, v: (b, 0, q * v)),  # log-probs
        pl.BlockSpec((Bb, T, Lx), lambda b, q, v: (b, 0, 0)),      # attention
    )

    scratch_shapes = [
        pltpu.VMEM((Bb * T, H), jnp.float32),    # attention output (M-folded)
        pltpu.VMEM((Bb, T, K), jnp.float32),     # topic logits
        pltpu.VMEM((Bb, 1), jnp.float32),        # arfa gate
        pltpu.VMEM((Bb, T, 1), jnp.float32),     # running max
        pltpu.VMEM((Bb, T, 1), jnp.float32),     # running sum-exp
    ]

    logp, attn = pl.pallas_call(
        decoder_head_kernel,
        out_shape=(jax.ShapeDtypeStruct((B, T, V), jnp.float32),
                   jax.ShapeDtypeStruct((B, T, Lx), jnp.float32)),
        grid=(nb, 2, nv),
        in_specs=in_specs,
        out_specs=out_specs,
        scratch_shapes=scratch_shapes,
        compiler_params=pltpu.CompilerParams(
            dimension_semantics=("parallel", "arbitrary", "arbitrary")),
    )(out_seq, ctx, topic_embed, h3, top3, memory, *weights_small,
      params["w_out"], params["b_out"])
    return logp, attn


# ----------------------------------------------------------------------------
# Full Decoder.forward in JAX (glue) + Pallas kernels (hot path)
# ----------------------------------------------------------------------------
def decoder_forward(p, ctx, ctx_lengths, tgt, tgt_lengths, hid,
                    topic_embed, topics, grammar, vocab_size):
    # embedding lookup + dropout (eval-mode identity) -- glue; batch-first (B,T,E)
    y_emb = jnp.take(p["embed"], tgt, axis=0)

    # packed-sequence GRU (Pallas kernel 1); sort/unsort of the reference is a
    # semantic no-op with the length-masked recurrence.
    out_seq, hT = run_gru(y_emb, hid[0], tgt_lengths,
                          p["wih"], p["whh"], p["bih"], p["bhh"])  # (B,T,H),(B,H)
    hid_out = hT[None]                                             # (layers=1,B,H)

    # grammar memory vector -- glue (tiny)
    memory = jnp.zeros((vocab_size,), jnp.float32).at[grammar].set(1.0)
    memory = memory.reshape(1, vocab_size)

    # fused attention / projections / scatter / filter / log_softmax (kernel 2)
    logp, attn = run_decoder_head(out_seq, ctx, topic_embed, hT, topics,
                                  memory, p)
    return logp, hid_out, attn


def init_params(key, vocab_size, embed_size, enc_hidden_size, dec_hidden_size,
                topic_num):
    E, H = embed_size, dec_hidden_size
    C, K, V = 2 * enc_hidden_size, topic_num, vocab_size
    ks = jax.random.split(key, 20)
    n = lambda k, s: (0.1 * jax.random.normal(k, s)).astype(jnp.float32)
    return {
        "embed":  n(ks[0], (V, E)),
        # GRU (gate order r,z,n; weights stored (in, 3H))
        "wih": n(ks[1], (E, 3 * H)), "whh": n(ks[2], (H, 3 * H)),
        "bih": n(ks[3], (1, 3 * H)), "bhh": n(ks[4], (1, 3 * H)),
        # Attention: linear_in (C->H, no bias), linear_out (C+H -> H) split
        "wa_in": n(ks[5], (C, H)),
        "wa_oc": n(ks[6], (C, H)), "wa_oh": n(ks[7], (H, H)), "ba_o": n(ks[8], (1, H)),
        # out: H -> V
        "w_out": n(ks[9], (H, V)), "b_out": n(ks[10], (1, V)),
        # TopicAttn: linear_in (E->H, no bias), linear_out (E+H -> H) split
        "wt_in": n(ks[11], (E, H)),
        "wt_oc": n(ks[12], (E, H)), "wt_oh": n(ks[13], (H, H)), "bt_o": n(ks[14], (1, H)),
        # topic_out: H -> K
        "w_tout": n(ks[15], (H, K)), "b_tout": n(ks[16], (1, K)),
        # Filter.arfa: H -> 1
        "w_arfa": n(ks[17], (H, 1)), "b_arfa": n(ks[18], (1, 1)),
    }


if __name__ == "__main__":
    # small shapes consistent with the module
    B, T, Lx = 2, 8, 8
    vocab_size, embed_size = 128, 16
    enc_hidden_size, dec_hidden_size, dec_layer = 16, 32, 1
    topic_num = 8
    topic_len = topic_num + 1

    key = jax.random.PRNGKey(0)
    k = jax.random.split(key, 8)

    params = init_params(k[0], vocab_size, embed_size, enc_hidden_size,
                         dec_hidden_size, topic_num)

    ctx = jax.random.normal(k[1], (B, Lx, 2 * enc_hidden_size), jnp.float32)
    ctx_lengths = jnp.array([Lx, 5], jnp.int32)
    tgt = jax.random.randint(k[2], (B, T), 0, vocab_size, jnp.int32)
    tgt_lengths = jnp.array([T, 6], jnp.int32)          # max == T (pad_packed)
    hid = jax.random.normal(k[3], (dec_layer, B, dec_hidden_size), jnp.float32)
    topic_embed = jax.random.normal(k[4], (B, topic_len, embed_size), jnp.float32)
    topics = jnp.stack([(jnp.arange(topic_num) * 3 + 1) % vocab_size,
                        (jnp.arange(topic_num) * 5 + 2) % vocab_size]).astype(jnp.int32)
    grammar = jnp.array([3, 7, 11, 20, 33, 64, 90, 127], jnp.int32)

    fwd = jax.jit(functools.partial(decoder_forward, vocab_size=vocab_size))
    logp, hid_out, attn = fwd(params, ctx, ctx_lengths, tgt, tgt_lengths, hid,
                              topic_embed, topics, grammar)
    jax.block_until_ready((logp, hid_out, attn))

    assert logp.shape == (B, T, vocab_size)
    assert hid_out.shape == (dec_layer, B, dec_hidden_size)
    assert attn.shape == (B, T, Lx)
    print("KERNEL_OK")
</pallas_src>

<mosaic_0001>
module attributes {stable_mosaic.version = 11 : i64} {
  func.func @gru_kernel(%arg0: i32, %arg1: memref<1x8x16xf32, #tpu.memory_space<vmem>>, %arg2: memref<1x1x32xf32, #tpu.memory_space<vmem>>, %arg3: memref<1x1x1xi32, #tpu.memory_space<vmem>>, %arg4: memref<16x96xf32, #tpu.memory_space<vmem>>, %arg5: memref<32x96xf32, #tpu.memory_space<vmem>>, %arg6: memref<1x96xf32, #tpu.memory_space<vmem>>, %arg7: memref<1x96xf32, #tpu.memory_space<vmem>>, %arg8: memref<1x8x32xf32, #tpu.memory_space<vmem>>, %arg9: memref<1x1x32xf32, #tpu.memory_space<vmem>>, %arg10: memref<8x96xf32, #tpu.memory_space<vmem>>) attributes {dimension_semantics = [#tpu.dimension_semantics<parallel>], iteration_bounds = array<i64: 2>, scalar_prefetch = 0 : i64, scratch_operands = 1 : i64, tpu.core_type = #tpu.core_type<tc>, window_params = [{transform_indices = @transform_0, window_bounds = array<i64: 1, 8, 16>}, {transform_indices = @transform_1, window_bounds = array<i64: 1, 1, 32>}, {transform_indices = @transform_2, window_bounds = array<i64: 1, 1, 1>}, {pipeline_mode = #tpu.pipeline_mode<synchronous>, transform_indices = @transform_3, window_bounds = array<i64: 16, 96>}, {pipeline_mode = #tpu.pipeline_mode<synchronous>, transform_indices = @transform_4, window_bounds = array<i64: 32, 96>}, {pipeline_mode = #tpu.pipeline_mode<synchronous>, transform_indices = @transform_5, window_bounds = array<i64: 1, 96>}, {pipeline_mode = #tpu.pipeline_mode<synchronous>, transform_indices = @transform_6, window_bounds = array<i64: 1, 96>}, {transform_indices = @transform_7, window_bounds = array<i64: 1, 8, 32>}, {transform_indices = @transform_8, window_bounds = array<i64: 1, 1, 32>}]} {
    %c0 = arith.constant 0 : index
    %c0_0 = arith.constant 0 : index
    %c0_1 = arith.constant 0 : index
    %0 = vector.load %arg1[%c0, %c0_0, %c0_1] : memref<1x8x16xf32, #tpu.memory_space<vmem>>, vector<1x8x16xf32>
    %1 = vector.shape_cast %0 : vector<1x8x16xf32> to vector<8x16xf32>
    %c0_2 = arith.constant 0 : index
    %c0_3 = arith.constant 0 : index
    %2 = vector.load %arg4[%c0_2, %c0_3] : memref<16x96xf32, #tpu.memory_space<vmem>>, vector<16x96xf32>
    %cst = arith.constant dense<0.000000e+00> : vector<8x96xf32>
    %3 = tpu.matmul %1, %2, %cst {dimension_numbers = #tpu.dot_dimension_numbers<[1], [0], [0], [1], [0, 0, 1, 1], [], []>} : vector<8x16xf32>, vector<16x96xf32>, vector<8x96xf32> -> vector<8x96xf32>
    %c0_4 = arith.constant 0 : index
    %c0_5 = arith.constant 0 : index
    %4 = vector.load %arg6[%c0_4, %c0_5] : memref<1x96xf32, #tpu.memory_space<vmem>>, vector<1x96xf32>
    %5 = vector.broadcast %4 : vector<1x96xf32> to vector<8x96xf32>
    %6 = arith.addf %3, %5 : vector<8x96xf32>
    %c0_6 = arith.constant 0 : index
    %c0_7 = arith.constant 0 : index
    %7 = vector.load %arg10[%c0_6, %c0_7] : memref<8x96xf32, #tpu.memory_space<vmem>>, vector<8x96xf32>
    tpu.vector_store %arg10[%c0_6, %c0_7], %6 {strides = array<i32>} : memref<8x96xf32, #tpu.memory_space<vmem>>, vector<8x96xf32>,
    %c0_8 = arith.constant 0 : index
    %c0_9 = arith.constant 0 : index
    %8 = vector.load %arg5[%c0_8, %c0_9] : memref<32x96xf32, #tpu.memory_space<vmem>>, vector<32x96xf32>
    %c0_10 = arith.constant 0 : index
    %c0_11 = arith.constant 0 : index
    %9 = vector.load %arg7[%c0_10, %c0_11] : memref<1x96xf32, #tpu.memory_space<vmem>>, vector<1x96xf32>
    %c0_12 = arith.constant 0 : index
    %c0_13 = arith.constant 0 : index
    %c0_14 = arith.constant 0 : index
    %10 = vector.load %arg3[%c0_12, %c0_13, %c0_14] : memref<1x1x1xi32, #tpu.memory_space<vmem>>, vector<1x1x1xi32>
    %11 = vector.shape_cast %10 : vector<1x1x1xi32> to vector<1x1xi32>
    %c0_15 = arith.constant 0 : index
    %c0_16 = arith.constant 0 : index
    %c0_17 = arith.constant 0 : index
    %12 = vector.load %arg2[%c0_15, %c0_16, %c0_17] : memref<1x1x32xf32, #tpu.memory_space<vmem>>, vector<1x1x32xf32>
    %13 = vector.shape_cast %12 : vector<1x1x32xf32> to vector<1x32xf32>
    %c0_i32 = arith.constant 0 : i32
    %c8_i32 = arith.constant 8 : i32
    %14 = arith.addi %c0_i32, %c8_i32 : i32
    %c1_i32 = arith.constant 1 : i32
    %15 = scf.for %arg11 = %c0_i32 to %14 step %c1_i32 iter_args(%arg12 = %13) -> (vector<1x32xf32>)  : i32 {
      %19 = arith.index_cast %arg11 : i32 to index
      %c0_22 = arith.constant 0 : index
      %20 = vector.load %arg10[%19, %c0_22] : memref<8x96xf32, #tpu.memory_space<vmem>>, vector<1x96xf32>
      %cst_23 = arith.constant dense<0.000000e+00> : vector<1x96xf32>
      %21 = tpu.matmul %arg12, %8, %cst_23 {dimension_numbers = #tpu.dot_dimension_numbers<[1], [0], [0], [1], [0, 0, 1, 1], [], []>} : vector<1x32xf32>, vector<32x96xf32>, vector<1x96xf32> -> vector<1x96xf32>
      %22 = arith.addf %21, %9 : vector<1x96xf32>
      %23 = vector.extract_strided_slice %20 {offsets = [0, 0], sizes = [1, 32], strides = [1, 1]} : vector<1x96xf32> to vector<1x32xf32>
      %24 = vector.extract_strided_slice %22 {offsets = [0, 0], sizes = [1, 32], strides = [1, 1]} : vector<1x96xf32> to vector<1x32xf32>
      %25 = arith.addf %23, %24 : vector<1x32xf32>
      %cst_24 = arith.constant 5.000000e-01 : f32
      %26 = vector.broadcast %cst_24 : f32 to vector<1x32xf32>
      %27 = arith.mulf %26, %25 : vector<1x32xf32>
      %28 = math.tanh %27 : vector<1x32xf32>
      %cst_25 = arith.constant 1.000000e+00 : f32
      %29 = vector.broadcast %cst_25 : f32 to vector<1x32xf32>
      %30 = arith.addf %28, %29 : vector<1x32xf32>
      %cst_26 = arith.constant 5.000000e-01 : f32
      %31 = vector.broadcast %cst_26 : f32 to vector<1x32xf32>
      %32 = arith.mulf %31, %30 : vector<1x32xf32>
      %33 = vector.extract_strided_slice %20 {offsets = [0, 32], sizes = [1, 32], strides = [1, 1]} : vector<1x96xf32> to vector<1x32xf32>
      %34 = vector.extract_strided_slice %22 {offsets = [0, 32], sizes = [1, 32], strides = [1, 1]} : vector<1x96xf32> to vector<1x32xf32>
      %35 = arith.addf %33, %34 : vector<1x32xf32>
      %cst_27 = arith.constant 5.000000e-01 : f32
      %36 = vector.broadcast %cst_27 : f32 to vector<1x32xf32>
      %37 = arith.mulf %36, %35 : vector<1x32xf32>
      %38 = math.tanh %37 : vector<1x32xf32>
      %cst_28 = arith.constant 1.000000e+00 : f32
      %39 = vector.broadcast %cst_28 : f32 to vector<1x32xf32>
      %40 = arith.addf %38, %39 : vector<1x32xf32>
      %cst_29 = arith.constant 5.000000e-01 : f32
      %41 = vector.broadcast %cst_29 : f32 to vector<1x32xf32>
      %42 = arith.mulf %41, %40 : vector<1x32xf32>
      %43 = vector.extract_strided_slice %20 {offsets = [0, 64], sizes = [1, 32], strides = [1, 1]} : vector<1x96xf32> to vector<1x32xf32>
      %44 = vector.extract_strided_slice %22 {offsets = [0, 64], sizes = [1, 32], strides = [1, 1]} : vector<1x96xf32> to vector<1x32xf32>
      %45 = arith.mulf %32, %44 : vector<1x32xf32>
      %46 = arith.addf %43, %45 : vector<1x32xf32>
      %47 = math.tanh %46 : vector<1x32xf32>
      %cst_30 = arith.constant 1.000000e+00 : f32
      %48 = vector.broadcast %cst_30 : f32 to vector<1x32xf32>
      %49 = arith.subf %48, %42 : vector<1x32xf32>
      %50 = arith.mulf %49, %47 : vector<1x32xf32>
      %51 = arith.mulf %42, %arg12 : vector<1x32xf32>
      %52 = arith.addf %50, %51 : vector<1x32xf32>
      %53 = vector.broadcast %arg11 : i32 to vector<1x1xi32>
      %54 = arith.cmpi slt, %53, %11 : vector<1x1xi32>
      %cst_31 = arith.constant 0.000000e+00 : f32
      %55 = vector.shape_cast %54 : vector<1x1xi1> to vector<1x1xi1>
      %56 = vector.broadcast %55 : vector<1x1xi1> to vector<1x32xi1>
      %57 = vector.broadcast %cst_31 : f32 to vector<1x32xf32>
      %58 = arith.select %56, %52, %57 : vector<1x32xi1>, vector<1x32xf32>
      %c0_32 = arith.constant 0 : index
      %59 = arith.index_cast %arg11 : i32 to index
      %c0_33 = arith.constant 0 : index
      %60 = vector.load %arg8[%c0_32, %59, %c0_33] : memref<1x8x32xf32, #tpu.memory_space<vmem>>, vector<1x1x32xf32>
      %61 = vector.shape_cast %60 : vector<1x1x32xf32> to vector<1x32xf32>
      %62 = vector.shape_cast %58 : vector<1x32xf32> to vector<1x1x32xf32>
      tpu.vector_store %arg8[%c0_32, %59, %c0_33], %62 {strides = array<i32>} : memref<1x8x32xf32, #tpu.memory_space<vmem>>, vector<1x1x32xf32>,
      %63 = vector.shape_cast %54 : vector<1x1xi1> to vector<1x1xi1>
      %64 = vector.broadcast %63 : vector<1x1xi1> to vector<1x32xi1>
      %65 = arith.select %64, %52, %arg12 : vector<1x32xi1>, vector<1x32xf32>
      scf.yield %65 : vector<1x32xf32>
    }
    %c8_i32_18 = arith.constant 8 : i32
    %c0_19 = arith.constant 0 : index
    %c0_20 = arith.constant 0 : index
    %c0_21 = arith.constant 0 : index
    %16 = vector.load %arg9[%c0_19, %c0_20, %c0_21] : memref<1x1x32xf32, #tpu.memory_space<vmem>>, vector<1x1x32xf32>
    %17 = vector.shape_cast %16 : vector<1x1x32xf32> to vector<1x32xf32>
    %18 = vector.shape_cast %15 : vector<1x32xf32> to vector<1x1x32xf32>
    tpu.vector_store %arg9[%c0_19, %c0_20, %c0_21], %18 {strides = array<i32>} : memref<1x1x32xf32, #tpu.memory_space<vmem>>, vector<1x1x32xf32>,
    return
  }
  func.func @transform_0(%arg0: i32) -> (i32, i32, i32) {
    %c0_i32 = arith.constant 0 : i32
    %c0_i32_0 = arith.constant 0 : i32
    %c0_i32_1 = arith.constant 0 : i32
    return %arg0, %c0_i32, %c0_i32_0 : i32, i32, i32
  }
  func.func @transform_1(%arg0: i32) -> (i32, i32, i32) {
    %c0_i32 = arith.constant 0 : i32
    %c0_i32_0 = arith.constant 0 : i32
    %c0_i32_1 = arith.constant 0 : i32
    return %arg0, %c0_i32, %c0_i32_0 : i32, i32, i32
  }
  func.func @transform_2(%arg0: i32) -> (i32, i32, i32) {
    %c0_i32 = arith.constant 0 : i32
    %c0_i32_0 = arith.constant 0 : i32
    %c0_i32_1 = arith.constant 0 : i32
    return %arg0, %c0_i32, %c0_i32_0 : i32, i32, i32
  }
  func.func @transform_3(%arg0: i32) -> (i32, i32) {
    %c0_i32 = arith.constant 0 : i32
    %c0_i32_0 = arith.constant 0 : i32
    %c0_i32_1 = arith.constant 0 : i32
    return %c0_i32, %c0_i32_0 : i32, i32
  }
  func.func @transform_4(%arg0: i32) -> (i32, i32) {
    %c0_i32 = arith.constant 0 : i32
    %c0_i32_0 = arith.constant 0 : i32
    %c0_i32_1 = arith.constant 0 : i32
    return %c0_i32, %c0_i32_0 : i32, i32
  }
  func.func @transform_5(%arg0: i32) -> (i32, i32) {
    %c0_i32 = arith.constant 0 : i32
    %c0_i32_0 = arith.constant 0 : i32
    %c0_i32_1 = arith.constant 0 : i32
    return %c0_i32, %c0_i32_0 : i32, i32
  }
  func.func @transform_6(%arg0: i32) -> (i32, i32) {
    %c0_i32 = arith.constant 0 : i32
    %c0_i32_0 = arith.constant 0 : i32
    %c0_i32_1 = arith.constant 0 : i32
    return %c0_i32, %c0_i32_0 : i32, i32
  }
  func.func @transform_7(%arg0: i32) -> (i32, i32, i32) {
    %c0_i32 = arith.constant 0 : i32
    %c0_i32_0 = arith.constant 0 : i32
    %c0_i32_1 = arith.constant 0 : i32
    return %arg0, %c0_i32, %c0_i32_0 : i32, i32, i32
  }
  func.func @transform_8(%arg0: i32) -> (i32, i32, i32) {
    %c0_i32 = arith.constant 0 : i32
    %c0_i32_0 = arith.constant 0 : i32
    %c0_i32_1 = arith.constant 0 : i32
    return %arg0, %c0_i32, %c0_i32_0 : i32, i32, i32
  }
}

module attributes {stable_mosaic.version = 11 : i64} {
  func.func @decoder_head_kernel(%arg0: i32, %arg1: i32, %arg2: i32, %arg3: memref<2x8x32xf32, #tpu.memory_space<vmem>>, %arg4: memref<2x8x32xf32, #tpu.memory_space<vmem>>, %arg5: memref<2x9x16xf32, #tpu.memory_space<vmem>>, %arg6: memref<2x1x32xf32, #tpu.memory_space<vmem>>, %arg7: memref<2x1x8xi32, #tpu.memory_space<vmem>>, %arg8: memref<1x128xf32, #tpu.memory_space<vmem>>, %arg9: memref<32x32xf32, #tpu.memory_space<vmem>>, %arg10: memref<32x32xf32, #tpu.memory_space<vmem>>, %arg11: memref<32x32xf32, #tpu.memory_space<vmem>>, %arg12: memref<1x32xf32, #tpu.memory_space<vmem>>, %arg13: memref<16x32xf32, #tpu.memory_space<vmem>>, %arg14: memref<16x32xf32, #tpu.memory_space<vmem>>, %arg15: memref<32x32xf32, #tpu.memory_space<vmem>>, %arg16: memref<1x32xf32, #tpu.memory_space<vmem>>, %arg17: memref<32x8xf32, #tpu.memory_space<vmem>>, %arg18: memref<1x8xf32, #tpu.memory_space<vmem>>, %arg19: memref<32x1xf32, #tpu.memory_space<vmem>>, %arg20: memref<1x1xf32, #tpu.memory_space<vmem>>, %arg21: memref<32x128xf32, #tpu.memory_space<vmem>>, %arg22: memref<1x128xf32, #tpu.memory_space<vmem>>, %arg23: memref<2x8x128xf32, #tpu.memory_space<vmem>>, %arg24: memref<2x8x8xf32, #tpu.memory_space<vmem>>, %arg25: memref<16x32xf32, #tpu.memory_space<vmem>>, %arg26: memref<2x8x8xf32, #tpu.memory_space<vmem>>, %arg27: memref<2x1xf32, #tpu.memory_space<vmem>>, %arg28: memref<2x8x1xf32, #tpu.memory_space<vmem>>, %arg29: memref<2x8x1xf32, #tpu.memory_space<vmem>>) attributes {dimension_semantics = [#tpu.dimension_semantics<parallel>, #tpu.dimension_semantics<arbitrary>, #tpu.dimension_semantics<arbitrary>], iteration_bounds = array<i64: 1, 2, 1>, scalar_prefetch = 0 : i64, scratch_operands = 5 : i64, tpu.core_type = #tpu.core_type<tc>, window_params = [{transform_indices = @transform_0, window_bounds = array<i64: 2, 8, 32>}, {transform_indices = @transform_1, window_bounds = array<i64: 2, 8, 32>}, {transform_indices = @transform_2, window_bounds = array<i64: 2, 9, 16>}, {transform_indices = @transform_3, window_bounds = array<i64: 2, 1, 32>}, {transform_indices = @transform_4, window_bounds = array<i64: 2, 1, 8>}, {transform_indices = @transform_5, window_bounds = array<i64: 1, 128>}, {pipeline_mode = #tpu.pipeline_mode<synchronous>, transform_indices = @transform_6, window_bounds = array<i64: 32, 32>}, {pipeline_mode = #tpu.pipeline_mode<synchronous>, transform_indices = @transform_7, window_bounds = array<i64: 32, 32>}, {pipeline_mode = #tpu.pipeline_mode<synchronous>, transform_indices = @transform_8, window_bounds = array<i64: 32, 32>}, {pipeline_mode = #tpu.pipeline_mode<synchronous>, transform_indices = @transform_9, window_bounds = array<i64: 1, 32>}, {pipeline_mode = #tpu.pipeline_mode<synchronous>, transform_indices = @transform_10, window_bounds = array<i64: 16, 32>}, {pipeline_mode = #tpu.pipeline_mode<synchronous>, transform_indices = @transform_11, window_bounds = array<i64: 16, 32>}, {pipeline_mode = #tpu.pipeline_mode<synchronous>, transform_indices = @transform_12, window_bounds = array<i64: 32, 32>}, {pipeline_mode = #tpu.pipeline_mode<synchronous>, transform_indices = @transform_13, window_bounds = array<i64: 1, 32>}, {pipeline_mode = #tpu.pipeline_mode<synchronous>, transform_indices = @transform_14, window_bounds = array<i64: 32, 8>}, {pipeline_mode = #tpu.pipeline_mode<synchronous>, transform_indices = @transform_15, window_bounds = array<i64: 1, 8>}, {pipeline_mode = #tpu.pipeline_mode<synchronous>, transform_indices = @transform_16, window_bounds = array<i64: 32, 1>}, {pipeline_mode = #tpu.pipeline_mode<synchronous>, transform_indices = @transform_17, window_bounds = array<i64: 1, 1>}, {transform_indices = @transform_18, window_bounds = array<i64: 32, 128>}, {transform_indices = @transform_19, window_bounds = array<i64: 1, 128>}, {transform_indices = @transform_20, window_bounds = array<i64: 2, 8, 128>}, {transform_indices = @transform_21, window_bounds = array<i64: 2, 8, 8>}]} {
    %c0_i32 = arith.constant 0 : i32
    %0 = arith.cmpi eq, %arg1, %c0_i32 : i32
    %c0_i32_0 = arith.constant 0 : i32
    %1 = arith.cmpi eq, %arg2, %c0_i32_0 : i32
    %2 = arith.andi %0, %1 : i1
    %3 = arith.extui %2 : i1 to i32
    %c0_i32_1 = arith.constant 0 : i32
    %4 = arith.cmpi ne, %3, %c0_i32_1 : i32
    scf.if %4 {
      %c0_23 = arith.constant 0 : index
      %c0_24 = arith.constant 0 : index
      %c0_25 = arith.constant 0 : index
      %44 = vector.load %arg3[%c0_23, %c0_24, %c0_25] : memref<2x8x32xf32, #tpu.memory_space<vmem>>, vector<2x8x32xf32>
      %45 = vector.shape_cast %44 : vector<2x8x32xf32> to vector<16x32xf32>
      %c0_26 = arith.constant 0 : index
      %c0_27 = arith.constant 0 : index
      %c0_28 = arith.constant 0 : index
      %46 = vector.load %arg4[%c0_26, %c0_27, %c0_28] : memref<2x8x32xf32, #tpu.memory_space<vmem>>, vector<2x8x32xf32>
      %47 = vector.shape_cast %46 : vector<2x8x32xf32> to vector<16x32xf32>
      %c0_29 = arith.constant 0 : index
      %c0_30 = arith.constant 0 : index
      %48 = vector.load %arg9[%c0_29, %c0_30] : memref<32x32xf32, #tpu.memory_space<vmem>>, vector<32x32xf32>
      %cst_31 = arith.constant dense<0.000000e+00> : vector<16x32xf32>
      %49 = tpu.matmul %47, %48, %cst_31 {dimension_numbers = #tpu.dot_dimension_numbers<[1], [0], [0], [1], [0, 0, 1, 1], [], []>} : vector<16x32xf32>, vector<32x32xf32>, vector<16x32xf32> -> vector<16x32xf32>
      %50 = vector.shape_cast %49 : vector<16x32xf32> to vector<2x8x32xf32>
      "tpu.trace_start"() <{level = 10 : i32, message = "bth,blh->btl"}> : () -> ()
      %cst_32 = arith.constant dense<0.000000e+00> : vector<2x8x8xf32>
      %51 = tpu.matmul %44, %50, %cst_32 {dimension_numbers = #tpu.dot_dimension_numbers<[2], [2], [1], [1], [0, 0, 0, 1, 1, 1], [0], [0]>} : vector<2x8x32xf32>, vector<2x8x32xf32>, vector<2x8x8xf32> -> vector<2x8x8xf32>
      "tpu.trace_stop"() : () -> ()
      %cst_33 = arith.constant dense<0xFF800000> : vector<2x8xf32>
      %52 = vector.multi_reduction <maximumf>, %51, %cst_33 [2] : vector<2x8x8xf32> to vector<2x8xf32>
      %53 = vector.shape_cast %52 : vector<2x8xf32> to vector<2x8x1xf32>
      %54 = vector.broadcast %53 : vector<2x8x1xf32> to vector<2x8x8xf32>
      %55 = arith.subf %51, %54 : vector<2x8x8xf32>
      %56 = math.exp %55 : vector<2x8x8xf32>
      %cst_34 = arith.constant dense<0.000000e+00> : vector<2x8xf32>
      %57 = vector.multi_reduction <add>, %56, %cst_34 [2] : vector<2x8x8xf32> to vector<2x8xf32>
      %58 = vector.shape_cast %57 : vector<2x8xf32> to vector<2x8x1xf32>
      %59 = tpu.reciprocal %58 {approx = true} : vector<2x8x1xf32> -> vector<2x8x1xf32>
      %60 = vector.broadcast %59 : vector<2x8x1xf32> to vector<2x8x8xf32>
      %61 = arith.mulf %56, %60 : vector<2x8x8xf32>
      %c0_35 = arith.constant 0 : index
      %c0_36 = arith.constant 0 : index
      %c0_37 = arith.constant 0 : index
      %62 = vector.load %arg24[%c0_35, %c0_36, %c0_37] : memref<2x8x8xf32, #tpu.memory_space<vmem>>, vector<2x8x8xf32>
      tpu.vector_store %arg24[%c0_35, %c0_36, %c0_37], %61 {strides = array<i32>} : memref<2x8x8xf32, #tpu.memory_space<vmem>>, vector<2x8x8xf32>,
      "tpu.trace_start"() <{level = 10 : i32, message = "btl,blc->btc"}> : () -> ()
      %cst_38 = arith.constant dense<0.000000e+00> : vector<2x8x32xf32>
      %63 = tpu.matmul %61, %46, %cst_38 {dimension_numbers = #tpu.dot_dimension_numbers<[2], [1], [1], [2], [0, 0, 0, 1, 1, 2], [0], [0]>} : vector<2x8x8xf32>, vector<2x8x32xf32>, vector<2x8x32xf32> -> vector<2x8x32xf32>
      "tpu.trace_stop"() : () -> ()
      %64 = vector.shape_cast %63 : vector<2x8x32xf32> to vector<16x32xf32>
      %c0_39 = arith.constant 0 : index
      %c0_40 = arith.constant 0 : index
      %65 = vector.load %arg10[%c0_39, %c0_40] : memref<32x32xf32, #tpu.memory_space<vmem>>, vector<32x32xf32>
      %cst_41 = arith.constant dense<0.000000e+00> : vector<16x32xf32>
      %66 = tpu.matmul %64, %65, %cst_41 {dimension_numbers = #tpu.dot_dimension_numbers<[1], [0], [0], [1], [0, 0, 1, 1], [], []>} : vector<16x32xf32>, vector<32x32xf32>, vector<16x32xf32> -> vector<16x32xf32>
      %c0_42 = arith.constant 0 : index
      %c0_43 = arith.constant 0 : index
      %67 = vector.load %arg11[%c0_42, %c0_43] : memref<32x32xf32, #tpu.memory_space<vmem>>, vector<32x32xf32>
      %cst_44 = arith.constant dense<0.000000e+00> : vector<16x32xf32>
      %68 = tpu.matmul %45, %67, %cst_44 {dimension_numbers = #tpu.dot_dimension_numbers<[1], [0], [0], [1], [0, 0, 1, 1], [], []>} : vector<16x32xf32>, vector<32x32xf32>, vector<16x32xf32> -> vector<16x32xf32>
      %69 = arith.addf %66, %68 : vector<16x32xf32>
      %c0_45 = arith.constant 0 : index
      %c0_46 = arith.constant 0 : index
      %70 = vector.load %arg12[%c0_45, %c0_46] : memref<1x32xf32, #tpu.memory_space<vmem>>, vector<1x32xf32>
      %71 = vector.broadcast %70 : vector<1x32xf32> to vector<16x32xf32>
      %72 = arith.addf %69, %71 : vector<16x32xf32>
      %73 = math.tanh %72 : vector<16x32xf32>
      %c0_47 = arith.constant 0 : index
      %c0_48 = arith.constant 0 : index
      %74 = vector.load %arg25[%c0_47, %c0_48] : memref<16x32xf32, #tpu.memory_space<vmem>>, vector<16x32xf32>
      tpu.vector_store %arg25[%c0_47, %c0_48], %73 {strides = array<i32>} : memref<16x32xf32, #tpu.memory_space<vmem>>, vector<16x32xf32>,
      %c0_49 = arith.constant 0 : index
      %c0_50 = arith.constant 0 : index
      %c0_51 = arith.constant 0 : index
      %75 = vector.load %arg5[%c0_49, %c0_50, %c0_51] : memref<2x9x16xf32, #tpu.memory_space<vmem>>, vector<2x9x16xf32>
      %76 = vector.shape_cast %75 : vector<2x9x16xf32> to vector<18x16xf32>
      %c0_52 = arith.constant 0 : index
      %c0_53 = arith.constant 0 : index
      %77 = vector.load %arg13[%c0_52, %c0_53] : memref<16x32xf32, #tpu.memory_space<vmem>>, vector<16x32xf32>
      %cst_54 = arith.constant dense<0.000000e+00> : vector<18x32xf32>
      %78 = tpu.matmul %76, %77, %cst_54 {dimension_numbers = #tpu.dot_dimension_numbers<[1], [0], [0], [1], [0, 0, 1, 1], [], []>} : vector<18x16xf32>, vector<16x32xf32>, vector<18x32xf32> -> vector<18x32xf32>
      %79 = vector.shape_cast %78 : vector<18x32xf32> to vector<2x9x32xf32>
      "tpu.trace_start"() <{level = 10 : i32, message = "bth,blh->btl"}> : () -> ()
      %cst_55 = arith.constant dense<0.000000e+00> : vector<2x8x9xf32>
      %80 = tpu.matmul %44, %79, %cst_55 {dimension_numbers = #tpu.dot_dimension_numbers<[2], [2], [1], [1], [0, 0, 0, 1, 1, 1], [0], [0]>} : vector<2x8x32xf32>, vector<2x9x32xf32>, vector<2x8x9xf32> -> vector<2x8x9xf32>
      "tpu.trace_stop"() : () -> ()
      %cst_56 = arith.constant dense<0xFF800000> : vector<2x8xf32>
      %81 = vector.multi_reduction <maximumf>, %80, %cst_56 [2] : vector<2x8x9xf32> to vector<2x8xf32>
      %82 = vector.shape_cast %81 : vector<2x8xf32> to vector<2x8x1xf32>
      %83 = vector.broadcast %82 : vector<2x8x1xf32> to vector<2x8x9xf32>
      %84 = arith.subf %80, %83 : vector<2x8x9xf32>
      %85 = math.exp %84 : vector<2x8x9xf32>
      %cst_57 = arith.constant dense<0.000000e+00> : vector<2x8xf32>
      %86 = vector.multi_reduction <add>, %85, %cst_57 [2] : vector<2x8x9xf32> to vector<2x8xf32>
      %87 = vector.shape_cast %86 : vector<2x8xf32> to vector<2x8x1xf32>
      %88 = tpu.reciprocal %87 {approx = true} : vector<2x8x1xf32> -> vector<2x8x1xf32>
      %89 = vector.broadcast %88 : vector<2x8x1xf32> to vector<2x8x9xf32>
      %90 = arith.mulf %85, %89 : vector<2x8x9xf32>
      "tpu.trace_start"() <{level = 10 : i32, message = "btl,ble->bte"}> : () -> ()
      %cst_58 = arith.constant dense<0.000000e+00> : vector<2x8x16xf32>
      %91 = tpu.matmul %90, %75, %cst_58 {dimension_numbers = #tpu.dot_dimension_numbers<[2], [1], [1], [2], [0, 0, 0, 1, 1, 2], [0], [0]>} : vector<2x8x9xf32>, vector<2x9x16xf32>, vector<2x8x16xf32> -> vector<2x8x16xf32>
      "tpu.trace_stop"() : () -> ()
      %92 = vector.shape_cast %91 : vector<2x8x16xf32> to vector<16x16xf32>
      %c0_59 = arith.constant 0 : index
      %c0_60 = arith.constant 0 : index
      %93 = vector.load %arg14[%c0_59, %c0_60] : memref<16x32xf32, #tpu.memory_space<vmem>>, vector<16x32xf32>
      %cst_61 = arith.constant dense<0.000000e+00> : vector<16x32xf32>
      %94 = tpu.matmul %92, %93, %cst_61 {dimension_numbers = #tpu.dot_dimension_numbers<[1], [0], [0], [1], [0, 0, 1, 1], [], []>} : vector<16x16xf32>, vector<16x32xf32>, vector<16x32xf32> -> vector<16x32xf32>
      %c0_62 = arith.constant 0 : index
      %c0_63 = arith.constant 0 : index
      %95 = vector.load %arg15[%c0_62, %c0_63] : memref<32x32xf32, #tpu.memory_space<vmem>>, vector<32x32xf32>
      %cst_64 = arith.constant dense<0.000000e+00> : vector<16x32xf32>
      %96 = tpu.matmul %45, %95, %cst_64 {dimension_numbers = #tpu.dot_dimension_numbers<[1], [0], [0], [1], [0, 0, 1, 1], [], []>} : vector<16x32xf32>, vector<32x32xf32>, vector<16x32xf32> -> vector<16x32xf32>
      %97 = arith.addf %94, %96 : vector<16x32xf32>
      %c0_65 = arith.constant 0 : index
      %c0_66 = arith.constant 0 : index
      %98 = vector.load %arg16[%c0_65, %c0_66] : memref<1x32xf32, #tpu.memory_space<vmem>>, vector<1x32xf32>
      %99 = vector.broadcast %98 : vector<1x32xf32> to vector<16x32xf32>
      %100 = arith.addf %97, %99 : vector<16x32xf32>
      %101 = math.tanh %100 : vector<16x32xf32>
      %c0_67 = arith.constant 0 : index
      %c0_68 = arith.constant 0 : index
      %102 = vector.load %arg17[%c0_67, %c0_68] : memref<32x8xf32, #tpu.memory_space<vmem>>, vector<32x8xf32>
      %cst_69 = arith.constant dense<0.000000e+00> : vector<16x8xf32>
      %103 = tpu.matmul %101, %102, %cst_69 {dimension_numbers = #tpu.dot_dimension_numbers<[1], [0], [0], [1], [0, 0, 1, 1], [], []>} : vector<16x32xf32>, vector<32x8xf32>, vector<16x8xf32> -> vector<16x8xf32>
      %c0_70 = arith.constant 0 : index
      %c0_71 = arith.constant 0 : index
      %104 = vector.load %arg18[%c0_70, %c0_71] : memref<1x8xf32, #tpu.memory_space<vmem>>, vector<1x8xf32>
      %105 = vector.broadcast %104 : vector<1x8xf32> to vector<16x8xf32>
      %106 = arith.addf %103, %105 : vector<16x8xf32>
      %107 = vector.shape_cast %106 : vector<16x8xf32> to vector<2x8x8xf32>
      %c0_72 = arith.constant 0 : index
      %c0_73 = arith.constant 0 : index
      %c0_74 = arith.constant 0 : index
      %108 = vector.load %arg26[%c0_72, %c0_73, %c0_74] : memref<2x8x8xf32, #tpu.memory_space<vmem>>, vector<2x8x8xf32>
      tpu.vector_store %arg26[%c0_72, %c0_73, %c0_74], %107 {strides = array<i32>} : memref<2x8x8xf32, #tpu.memory_space<vmem>>, vector<2x8x8xf32>,
      %c0_75 = arith.constant 0 : index
      %c0_76 = arith.constant 0 : index
      %c0_77 = arith.constant 0 : index
      %109 = vector.load %arg6[%c0_75, %c0_76, %c0_77] : memref<2x1x32xf32, #tpu.memory_space<vmem>>, vector<2x1x32xf32>
      %110 = vector.shape_cast %109 : vector<2x1x32xf32> to vector<2x32xf32>
      %c0_78 = arith.constant 0 : index
      %c0_79 = arith.constant 0 : index
      %111 = vector.load %arg19[%c0_78, %c0_79] : memref<32x1xf32, #tpu.memory_space<vmem>>, vector<32x1xf32>
      %cst_80 = arith.constant dense<0.000000e+00> : vector<2x1xf32>
      %112 = tpu.matmul %110, %111, %cst_80 {dimension_numbers = #tpu.dot_dimension_numbers<[1], [0], [0], [1], [0, 0, 1, 1], [], []>} : vector<2x32xf32>, vector<32x1xf32>, vector<2x1xf32> -> vector<2x1xf32>
      %c0_81 = arith.constant 0 : index
      %c0_82 = arith.constant 0 : index
      %113 = vector.load %arg20[%c0_81, %c0_82] : memref<1x1xf32, #tpu.memory_space<vmem>>, vector<1x1xf32>
      %114 = vector.broadcast %113 : vector<1x1xf32> to vector<2x1xf32>
      %115 = arith.addf %112, %114 : vector<2x1xf32>
      %cst_83 = arith.constant 5.000000e-01 : f32
      %116 = vector.broadcast %cst_83 : f32 to vector<2x1xf32>
      %117 = arith.mulf %116, %115 : vector<2x1xf32>
      %118 = math.tanh %117 : vector<2x1xf32>
      %cst_84 = arith.constant 1.000000e+00 : f32
      %119 = vector.broadcast %cst_84 : f32 to vector<2x1xf32>
      %120 = arith.addf %118, %119 : vector<2x1xf32>
      %cst_85 = arith.constant 5.000000e-01 : f32
      %121 = vector.broadcast %cst_85 : f32 to vector<2x1xf32>
      %122 = arith.mulf %121, %120 : vector<2x1xf32>
      %c0_86 = arith.constant 0 : index
      %c0_87 = arith.constant 0 : index
      %123 = vector.load %arg27[%c0_86, %c0_87] : memref<2x1xf32, #tpu.memory_space<vmem>>, vector<2x1xf32>
      tpu.vector_store %arg27[%c0_86, %c0_87], %122 {strides = array<i32>} : memref<2x1xf32, #tpu.memory_space<vmem>>, vector<2x1xf32>,
      %cst_88 = arith.constant 0xFF800000 : f32
      %124 = vector.broadcast %cst_88 : f32 to vector<2x8x1xf32>
      %c0_89 = arith.constant 0 : index
      %c0_90 = arith.constant 0 : index
      %c0_91 = arith.constant 0 : index
      %125 = vector.load %arg28[%c0_89, %c0_90, %c0_91] : memref<2x8x1xf32, #tpu.memory_space<vmem>>, vector<2x8x1xf32>
      tpu.vector_store %arg28[%c0_89, %c0_90, %c0_91], %124 {strides = array<i32>} : memref<2x8x1xf32, #tpu.memory_space<vmem>>, vector<2x8x1xf32>,
      %cst_92 = arith.constant 0.000000e+00 : f32
      %126 = vector.broadcast %cst_92 : f32 to vector<2x8x1xf32>
      %c0_93 = arith.constant 0 : index
      %c0_94 = arith.constant 0 : index
      %c0_95 = arith.constant 0 : index
      %127 = vector.load %arg29[%c0_93, %c0_94, %c0_95] : memref<2x8x1xf32, #tpu.memory_space<vmem>>, vector<2x8x1xf32>
      tpu.vector_store %arg29[%c0_93, %c0_94, %c0_95], %126 {strides = array<i32>} : memref<2x8x1xf32, #tpu.memory_space<vmem>>, vector<2x8x1xf32>,
    } else {
    }
    %c0 = arith.constant 0 : index
    %c0_2 = arith.constant 0 : index
    %5 = vector.load %arg25[%c0, %c0_2] : memref<16x32xf32, #tpu.memory_space<vmem>>, vector<16x32xf32>
    %c0_3 = arith.constant 0 : index
    %c0_4 = arith.constant 0 : index
    %6 = vector.load %arg21[%c0_3, %c0_4] : memref<32x128xf32, #tpu.memory_space<vmem>>, vector<32x128xf32>
    %cst = arith.constant dense<0.000000e+00> : vector<16x128xf32>
    %7 = tpu.matmul %5, %6, %cst {dimension_numbers = #tpu.dot_dimension_numbers<[1], [0], [0], [1], [0, 0, 1, 1], [], []>} : vector<16x32xf32>, vector<32x128xf32>, vector<16x128xf32> -> vector<16x128xf32>
    %c0_5 = arith.constant 0 : index
    %c0_6 = arith.constant 0 : index
    %8 = vector.load %arg22[%c0_5, %c0_6] : memref<1x128xf32, #tpu.memory_space<vmem>>, vector<1x128xf32>
    %9 = vector.broadcast %8 : vector<1x128xf32> to vector<16x128xf32>
    %10 = arith.addf %7, %9 : vector<16x128xf32>
    %c0_7 = arith.constant 0 : index
    %c0_8 = arith.constant 0 : index
    %c0_9 = arith.constant 0 : index
    %11 = vector.load %arg7[%c0_7, %c0_8, %c0_9] : memref<2x1x8xi32, #tpu.memory_space<vmem>>, vector<2x1x8xi32>
    %12 = vector.shape_cast %11 : vector<2x1x8xi32> to vector<2x8xi32>
    %c128_i32 = arith.constant 128 : i32
    %13 = arith.muli %arg2, %c128_i32 : i32
    %14 = vector.broadcast %13 : i32 to vector<2x8xi32>
    %15 = arith.subi %12, %14 : vector<2x8xi32>
    %16 = tpu.iota {dimensions = array<i32: 2>} : vector<2x8x128xi32>
    %17 = vector.shape_cast %15 : vector<2x8xi32> to vector<2x8x1xi32>
    %18 = vector.broadcast %17 : vector<2x8x1xi32> to vector<2x8x128xi32>
    %19 = arith.cmpi eq, %16, %18 : vector<2x8x128xi32>
    %20 = arith.extui %19 : vector<2x8x128xi1> to vector<2x8x128xi32>
    %21 = arith.sitofp %20 : vector<2x8x128xi32> to vector<2x8x128xf32>
    %c0_10 = arith.constant 0 : index
    %c0_11 = arith.constant 0 : index
    %c0_12 = arith.constant 0 : index
    %22 = vector.load %arg26[%c0_10, %c0_11, %c0_12] : memref<2x8x8xf32, #tpu.memory_space<vmem>>, vector<2x8x8xf32>
    "tpu.trace_start"() <{level = 10 : i32, message = "btk,bkv->btv"}> : () -> ()
    %cst_13 = arith.constant dense<0.000000e+00> : vector<2x8x128xf32>
    %23 = tpu.matmul %22, %21, %cst_13 {dimension_numbers = #tpu.dot_dimension_numbers<[2], [1], [1], [2], [0, 0, 0, 1, 1, 2], [0], [0]>} : vector<2x8x8xf32>, vector<2x8x128xf32>, vector<2x8x128xf32> -> vector<2x8x128xf32>
    "tpu.trace_stop"() : () -> ()
    %24 = vector.shape_cast %10 : vector<16x128xf32> to vector<2x8x128xf32>
    %25 = arith.addf %24, %23 : vector<2x8x128xf32>
    %c0_14 = arith.constant 0 : index
    %c0_15 = arith.constant 0 : index
    %26 = vector.load %arg8[%c0_14, %c0_15] : memref<1x128xf32, #tpu.memory_space<vmem>>, vector<1x128xf32>
    %c0_16 = arith.constant 0 : index
    %c0_17 = arith.constant 0 : index
    %27 = vector.load %arg27[%c0_16, %c0_17] : memref<2x1xf32, #tpu.memory_space<vmem>>, vector<2x1xf32>
    %cst_18 = arith.constant 1.000000e+00 : f32
    %28 = vector.broadcast %cst_18 : f32 to vector<2x1xf32>
    %29 = arith.subf %28, %27 : vector<2x1xf32>
    %30 = vector.broadcast %26 : vector<1x128xf32> to vector<2x128xf32>
    %31 = vector.broadcast %29 : vector<2x1xf32> to vector<2x128xf32>
    %32 = arith.mulf %30, %31 : vector<2x128xf32>
    %cst_19 = arith.constant 1.000000e+00 : f32
    %33 = vector.broadcast %cst_19 : f32 to vector<2x128xf32>
    %34 = arith.subf %33, %32 : vector<2x128xf32>
    %35 = vector.shape_cast %34 : vector<2x128xf32> to vector<2x1x128xf32>
    %36 = vector.broadcast %35 : vector<2x1x128xf32> to vector<2x8x128xf32>
    %37 = arith.mulf %25, %36 : vector<2x8x128xf32>
    %c0_i32_20 = arith.constant 0 : i32
    %38 = arith.cmpi eq, %arg1, %c0_i32_20 : i32
    %39 = arith.extui %38 : i1 to i32
    %c0_i32_21 = arith.constant 0 : i32
    %40 = arith.cmpi ne, %39, %c0_i32_21 : i32
    scf.if %40 {
      %cst_23 = arith.constant dense<0xFF800000> : vector<2x8xf32>
      %44 = vector.multi_reduction <maximumf>, %37, %cst_23 [2] : vector<2x8x128xf32> to vector<2x8xf32>
      %45 = vector.shape_cast %44 : vector<2x8xf32> to vector<2x8x1xf32>
      %c0_24 = arith.constant 0 : index
      %c0_25 = arith.constant 0 : index
      %c0_26 = arith.constant 0 : index
      %46 = vector.load %arg28[%c0_24, %c0_25, %c0_26] : memref<2x8x1xf32, #tpu.memory_space<vmem>>, vector<2x8x1xf32>
      %47 = arith.maximumf %46, %45 : vector<2x8x1xf32>
      %c0_27 = arith.constant 0 : index
      %c0_28 = arith.constant 0 : index
      %c0_29 = arith.constant 0 : index
      %48 = vector.load %arg29[%c0_27, %c0_28, %c0_29] : memref<2x8x1xf32, #tpu.memory_space<vmem>>, vector<2x8x1xf32>
      %c0_30 = arith.constant 0 : index
      %c0_31 = arith.constant 0 : index
      %c0_32 = arith.constant 0 : index
      %49 = vector.load %arg28[%c0_30, %c0_31, %c0_32] : memref<2x8x1xf32, #tpu.memory_space<vmem>>, vector<2x8x1xf32>
      %50 = arith.subf %49, %47 : vector<2x8x1xf32>
      %51 = math.exp %50 : vector<2x8x1xf32>
      %52 = arith.mulf %48, %51 : vector<2x8x1xf32>
      %53 = vector.broadcast %47 : vector<2x8x1xf32> to vector<2x8x128xf32>
      %54 = arith.subf %37, %53 : vector<2x8x128xf32>
      %55 = math.exp %54 : vector<2x8x128xf32>
      %cst_33 = arith.constant dense<0.000000e+00> : vector<2x8xf32>
      %56 = vector.multi_reduction <add>, %55, %cst_33 [2] : vector<2x8x128xf32> to vector<2x8xf32>
      %57 = vector.shape_cast %56 : vector<2x8xf32> to vector<2x8x1xf32>
      %58 = arith.addf %52, %57 : vector<2x8x1xf32>
      %c0_34 = arith.constant 0 : index
      %c0_35 = arith.constant 0 : index
      %c0_36 = arith.constant 0 : index
      %59 = vector.load %arg29[%c0_34, %c0_35, %c0_36] : memref<2x8x1xf32, #tpu.memory_space<vmem>>, vector<2x8x1xf32>
      tpu.vector_store %arg29[%c0_34, %c0_35, %c0_36], %58 {strides = array<i32>} : memref<2x8x1xf32, #tpu.memory_space<vmem>>, vector<2x8x1xf32>,
      %c0_37 = arith.constant 0 : index
      %c0_38 = arith.constant 0 : index
      %c0_39 = arith.constant 0 : index
      %60 = vector.load %arg28[%c0_37, %c0_38, %c0_39] : memref<2x8x1xf32, #tpu.memory_space<vmem>>, vector<2x8x1xf32>
      tpu.vector_store %arg28[%c0_37, %c0_38, %c0_39], %47 {strides = array<i32>} : memref<2x8x1xf32, #tpu.memory_space<vmem>>, vector<2x8x1xf32>,
    } else {
    }
    %c1_i32 = arith.constant 1 : i32
    %41 = arith.cmpi eq, %arg1, %c1_i32 : i32
    %42 = arith.extui %41 : i1 to i32
    %c0_i32_22 = arith.constant 0 : i32
    %43 = arith.cmpi ne, %42, %c0_i32_22 : i32
    scf.if %43 {
      %c0_23 = arith.constant 0 : index
      %c0_24 = arith.constant 0 : index
      %c0_25 = arith.constant 0 : index
      %44 = vector.load %arg28[%c0_23, %c0_24, %c0_25] : memref<2x8x1xf32, #tpu.memory_space<vmem>>, vector<2x8x1xf32>
      %c0_26 = arith.constant 0 : index
      %c0_27 = arith.constant 0 : index
      %c0_28 = arith.constant 0 : index
      %45 = vector.load %arg29[%c0_26, %c0_27, %c0_28] : memref<2x8x1xf32, #tpu.memory_space<vmem>>, vector<2x8x1xf32>
      %46 = math.log %45 : vector<2x8x1xf32>
      %47 = arith.addf %44, %46 : vector<2x8x1xf32>
      %48 = vector.broadcast %47 : vector<2x8x1xf32> to vector<2x8x128xf32>
      %49 = arith.subf %37, %48 : vector<2x8x128xf32>
      %c0_29 = arith.constant 0 : index
      %c0_30 = arith.constant 0 : index
      %c0_31 = arith.constant 0 : index
      %50 = vector.load %arg23[%c0_29, %c0_30, %c0_31] : memref<2x8x128xf32, #tpu.memory_space<vmem>>, vector<2x8x128xf32>
      tpu.vector_store %arg23[%c0_29, %c0_30, %c0_31], %49 {strides = array<i32>} : memref<2x8x128xf32, #tpu.memory_space<vmem>>, vector<2x8x128xf32>,
    } else {
    }
    return
  }
  func.func @transform_0(%arg0: i32, %arg1: i32, %arg2: i32) -> (i32, i32, i32) {
    %c0_i32 = arith.constant 0 : i32
    %c0_i32_0 = arith.constant 0 : i32
    %c0_i32_1 = arith.constant 0 : i32
    return %arg0, %c0_i32, %c0_i32_0 : i32, i32, i32
  }
  func.func @transform_1(%arg0: i32, %arg1: i32, %arg2: i32) -> (i32, i32, i32) {
    %c0_i32 = arith.constant 0 : i32
    %c0_i32_0 = arith.constant 0 : i32
    %c0_i32_1 = arith.constant 0 : i32
    return %arg0, %c0_i32, %c0_i32_0 : i32, i32, i32
  }
  func.func @transform_2(%arg0: i32, %arg1: i32, %arg2: i32) -> (i32, i32, i32) {
    %c0_i32 = arith.constant 0 : i32
    %c0_i32_0 = arith.constant 0 : i32
    %c0_i32_1 = arith.constant 0 : i32
    return %arg0, %c0_i32, %c0_i32_0 : i32, i32, i32
  }
  func.func @transform_3(%arg0: i32, %arg1: i32, %arg2: i32) -> (i32, i32, i32) {
    %c0_i32 = arith.constant 0 : i32
    %c0_i32_0 = arith.constant 0 : i32
    %c0_i32_1 = arith.constant 0 : i32
    return %arg0, %c0_i32, %c0_i32_0 : i32, i32, i32
  }
  func.func @transform_4(%arg0: i32, %arg1: i32, %arg2: i32) -> (i32, i32, i32) {
    %c0_i32 = arith.constant 0 : i32
    %c0_i32_0 = arith.constant 0 : i32
    %c0_i32_1 = arith.constant 0 : i32
    return %arg0, %c0_i32, %c0_i32_0 : i32, i32, i32
  }
  func.func @transform_5(%arg0: i32, %arg1: i32, %arg2: i32) -> (i32, i32) {
    %c0_i32 = arith.constant 0 : i32
    %c0_i32_0 = arith.constant 0 : i32
    return %c0_i32, %arg2 : i32, i32
  }
  func.func @transform_6(%arg0: i32, %arg1: i32, %arg2: i32) -> (i32, i32) {
    %c0_i32 = arith.constant 0 : i32
    %c0_i32_0 = arith.constant 0 : i32
    %c0_i32_1 = arith.constant 0 : i32
    return %c0_i32, %c0_i32_0 : i32, i32
  }
  func.func @transform_7(%arg0: i32, %arg1: i32, %arg2: i32) -> (i32, i32) {
    %c0_i32 = arith.constant 0 : i32
    %c0_i32_0 = arith.constant 0 : i32
    %c0_i32_1 = arith.constant 0 : i32
    return %c0_i32, %c0_i32_0 : i32, i32
  }
  func.func @transform_8(%arg0: i32, %arg1: i32, %arg2: i32) -> (i32, i32) {
    %c0_i32 = arith.constant 0 : i32
    %c0_i32_0 = arith.constant 0 : i32
    %c0_i32_1 = arith.constant 0 : i32
    return %c0_i32, %c0_i32_0 : i32, i32
  }
  func.func @transform_9(%arg0: i32, %arg1: i32, %arg2: i32) -> (i32, i32) {
    %c0_i32 = arith.constant 0 : i32
    %c0_i32_0 = arith.constant 0 : i32
    %c0_i32_1 = arith.constant 0 : i32
    return %c0_i32, %c0_i32_0 : i32, i32
  }
  func.func @transform_10(%arg0: i32, %arg1: i32, %arg2: i32) -> (i32, i32) {
    %c0_i32 = arith.constant 0 : i32
    %c0_i32_0 = arith.constant 0 : i32
    %c0_i32_1 = arith.constant 0 : i32
    return %c0_i32, %c0_i32_0 : i32, i32
  }
  func.func @transform_11(%arg0: i32, %arg1: i32, %arg2: i32) -> (i32, i32) {
    %c0_i32 = arith.constant 0 : i32
    %c0_i32_0 = arith.constant 0 : i32
    %c0_i32_1 = arith.constant 0 : i32
    return %c0_i32, %c0_i32_0 : i32, i32
  }
  func.func @transform_12(%arg0: i32, %arg1: i32, %arg2: i32) -> (i32, i32) {
    %c0_i32 = arith.constant 0 : i32
    %c0_i32_0 = arith.constant 0 : i32
    %c0_i32_1 = arith.constant 0 : i32
    return %c0_i32, %c0_i32_0 : i32, i32
  }
  func.func @transform_13(%arg0: i32, %arg1: i32, %arg2: i32) -> (i32, i32) {
    %c0_i32 = arith.constant 0 : i32
    %c0_i32_0 = arith.constant 0 : i32
    %c0_i32_1 = arith.constant 0 : i32
    return %c0_i32, %c0_i32_0 : i32, i32
  }
  func.func @transform_14(%arg0: i32, %arg1: i32, %arg2: i32) -> (i32, i32) {
    %c0_i32 = arith.constant 0 : i32
    %c0_i32_0 = arith.constant 0 : i32
    %c0_i32_1 = arith.constant 0 : i32
    return %c0_i32, %c0_i32_0 : i32, i32
  }
  func.func @transform_15(%arg0: i32, %arg1: i32, %arg2: i32) -> (i32, i32) {
    %c0_i32 = arith.constant 0 : i32
    %c0_i32_0 = arith.constant 0 : i32
    %c0_i32_1 = arith.constant 0 : i32
    return %c0_i32, %c0_i32_0 : i32, i32
  }
  func.func @transform_16(%arg0: i32, %arg1: i32, %arg2: i32) -> (i32, i32) {
    %c0_i32 = arith.constant 0 : i32
    %c0_i32_0 = arith.constant 0 : i32
    %c0_i32_1 = arith.constant 0 : i32
    return %c0_i32, %c0_i32_0 : i32, i32
  }
  func.func @transform_17(%arg0: i32, %arg1: i32, %arg2: i32) -> (i32, i32) {
    %c0_i32 = arith.constant 0 : i32
    %c0_i32_0 = arith.constant 0 : i32
    %c0_i32_1 = arith.constant 0 : i32
    return %c0_i32, %c0_i32_0 : i32, i32
  }
  func.func @transform_18(%arg0: i32, %arg1: i32, %arg2: i32) -> (i32, i32) {
    %c0_i32 = arith.constant 0 : i32
    %c0_i32_0 = arith.constant 0 : i32
    return %c0_i32, %arg2 : i32, i32
  }
  func.func @transform_19(%arg0: i32, %arg1: i32, %arg2: i32) -> (i32, i32) {
    %c0_i32 = arith.constant 0 : i32
    %c0_i32_0 = arith.constant 0 : i32
    return %c0_i32, %arg2 : i32, i32
  }
  func.func @transform_20(%arg0: i32, %arg1: i32, %arg2: i32) -> (i32, i32, i32) {
    %0 = arith.muli %arg1, %arg2 : i32
    %c0_i32 = arith.constant 0 : i32
    %c0_i32_0 = arith.constant 0 : i32
    return %arg0, %c0_i32, %0 : i32, i32, i32
  }
  func.func @transform_21(%arg0: i32, %arg1: i32, %arg2: i32) -> (i32, i32, i32) {
    %c0_i32 = arith.constant 0 : i32
    %c0_i32_0 = arith.constant 0 : i32
    %c0_i32_1 = arith.constant 0 : i32
    return %arg0, %c0_i32, %c0_i32_0 : i32, i32, i32
  }
}

</mosaic_0001>

<llo_original>
// kernel: decoder_forward.2
$region0: #{decoder_forward.2}
  #allocation0 [shape = 'u32[]', space=smem, size = 0x4, offset = 0x4, fixed_abs, tag = 'smem constant byte address 0x4 - core index']
  #allocation1 [shape = 'u32[72,128]{1,0:T(1,128)}', space=vmem, size = 0x9000, scoped, tag = 'internal scratch']
  #allocation2 [shape = 'f32[8,96]{1,0:T(8,128)}', space=vmem, size = 0x1000, scoped, tag = 'scratch operand']
  %s0 = inlined_call_operand.vmem [shape: f32[2,8,16], index: 0, kind: input, shape index: {}]
  %s1 = inlined_call_operand.vmem [shape: f32[2,1,32], index: 1, kind: input, shape index: {}]
  %s2 = inlined_call_operand.vmem [shape: s32[2,1,1], index: 2, kind: input, shape index: {}]
  %s3 = inlined_call_operand.vmem [shape: f32[16,96], index: 3, kind: input, shape index: {}]
  %s4 = inlined_call_operand.vmem [shape: f32[32,96], index: 4, kind: input, shape index: {}]
  %s5 = inlined_call_operand.vmem [shape: f32[1,96], index: 5, kind: input, shape index: {}]
  %s6 = inlined_call_operand.vmem [shape: f32[1,96], index: 6, kind: input, shape index: {}]
  %s7 = inlined_call_operand.vmem [shape: f32[2,8,32], index: 7, kind: output, shape index: {0}]
  %s8 = inlined_call_operand.vmem [shape: f32[2,1,32], index: 8, kind: output, shape index: {1}]
  %9 = xla_tuple %s7, %s8
  %s10 = sld [smem:[#allocation0]]
  $region76: #{decoder_forward.2} parent=0
    _
  %s12 = ssub.s32 1, %s10
  %s13 = scalar_select 0, %s12, %s10
  loop: start=0, step=1, limit=4
  $region2: #{decoder_forward.2} parent=0 // loop_pre_header
    _
  $region3: #{decoder_forward.2} parent=0 // loop_header
    %s15 = sphi 0, %s19
    %p16 = scmp.ge.s32.totalorder %s15, 4
    %s25 = sphi 0, %s27
    %s28 = sphi 0, %s25
    %s29 = sphi 0, %s28
    %s45 = sphi 0, %s29
    %s51 = sphi 0, %s53
    %s54 = sphi 0, %s51
    %s55 = sphi 0, %s54
    %s71 = sphi 0, %s55
    %s77 = sphi 0, %s79
    %s80 = sphi 0, %s77
    %s81 = sphi 0, %s80
    %s97 = sphi 0, %s81
    %s101 = sphi 0, %s101
    %s103 = sphi 0, %s101
    %s104 = sphi 0, %s103
    %s118 = sphi 0, %s104
    %s122 = sphi 0, %s122
    %s124 = sphi 0, %s122
    %s125 = sphi 0, %s124
    %s139 = sphi 0, %s125
    %s143 = sphi 0, %s143
    %s145 = sphi 0, %s143
    %s146 = sphi 0, %s145
    %s160 = sphi 0, %s146
    %s164 = sphi 0, %s164
    %s166 = sphi 0, %s164
    %s167 = sphi 0, %s166
    %s181 = sphi 0, %s167
    %s187 = sphi 0, %s189
    %s190 = sphi 0, %s187
    %s191 = sphi 0, %s190
    %s207 = sphi 0, %s191
    %s213 = sphi 0, %s215
    %s216 = sphi 0, %s213
    %s217 = sphi 0, %s216
    %s233 = sphi 0, %s217
  $region4: #{decoder_forward.2} parent=0 // loop_header_branch
    %18 = sbr.rel (%p16) target = $region8
  $region5: #{decoder_forward.2} parent=0 // loop_body
    %s20 = ssub.s32 %s15, 1
    %s21 = ssub.s32 %s15, 2
    %s22 = sadd.s32 %s15, 1
    %s23 = ssub.s32 %s15, %s22
    %p24 = scmp.eq.s32.totalorder %s23, 0
    %s26 = sadd.s32 %s25, 1
    %s27 = scalar_select %p24, %s25, %s26
    %p30 = pneg %p24
    %p31 = scmp.eq.s32.totalorder %s15, 1
    %p32 = por %p30, %p31
    %p33 = scmp.ne.s32.totalorder %s25, %s28
    %p34 = scmp.eq.s32.totalorder %s15, 0
    %p35 = por %p33, %p34
    %p36 = scmp.ne.s32.totalorder %s25, %s28
    %p37 = scmp.eq.s32.totalorder %s20, 1
    %p38 = por %p36, %p37
    %p39 = scmp.ne.s32.totalorder %s28, %s29
    %p40 = scmp.eq.s32.totalorder %s20, 0
    %p41 = por %p39, %p40
    %p42 = scmp.ne.s32.totalorder %s28, %s29
    %p43 = scmp.eq.s32.totalorder %s21, 1
    %p44 = por %p42, %p43
    %p46 = scmp.ne.s32.totalorder %s29, %s45
    %p47 = scmp.eq.s32.totalorder %s21, 0
    %p48 = por %p46, %p47
    %s49 = ssub.s32 %s15, %s22
    %p50 = scmp.eq.s32.totalorder %s49, 0
    %s52 = sadd.s32 %s51, 1
    %s53 = scalar_select %p50, %s51, %s52
    %p56 = pneg %p50
    %p57 = scmp.eq.s32.totalorder %s15, 1
    %p58 = por %p56, %p57
    %p59 = scmp.ne.s32.totalorder %s51, %s54
    %p60 = scmp.eq.s32.totalorder %s15, 0
    %p61 = por %p59, %p60
    %p62 = scmp.ne.s32.totalorder %s51, %s54
    %p63 = scmp.eq.s32.totalorder %s20, 1
    %p64 = por %p62, %p63
    %p65 = scmp.ne.s32.totalorder %s54, %s55
    %p66 = scmp.eq.s32.totalorder %s20, 0
    %p67 = por %p65, %p66
    %p68 = scmp.ne.s32.totalorder %s54, %s55
    %p69 = scmp.eq.s32.totalorder %s21, 1
    %p70 = por %p68, %p69
    %p72 = scmp.ne.s32.totalorder %s55, %s71
    %p73 = scmp.eq.s32.totalorder %s21, 0
    %p74 = por %p72, %p73
    %s75 = ssub.s32 %s15, %s22
    %p76 = scmp.eq.s32.totalorder %s75, 0
    %s78 = sadd.s32 %s77, 1
    %s79 = scalar_select %p76, %s77, %s78
    %p82 = pneg %p76
    %p83 = scmp.eq.s32.totalorder %s15, 1
    %p84 = por %p82, %p83
    %p85 = scmp.ne.s32.totalorder %s77, %s80
    %p86 = scmp.eq.s32.totalorder %s15, 0
    %p87 = por %p85, %p86
    %p88 = scmp.ne.s32.totalorder %s77, %s80
    %p89 = scmp.eq.s32.totalorder %s20, 1
    %p90 = por %p88, %p89
    %p91 = scmp.ne.s32.totalorder %s80, %s81
    %p92 = scmp.eq.s32.totalorder %s20, 0
    %p93 = por %p91, %p92
    %p94 = scmp.ne.s32.totalorder %s80, %s81
    %p95 = scmp.eq.s32.totalorder %s21, 1
    %p96 = por %p94, %p95
    %p98 = scmp.ne.s32.totalorder %s81, %s97
    %p99 = scmp.eq.s32.totalorder %s21, 0
    %p100 = por %p98, %p99
    %s102 = sadd.s32 %s101, 1
    %p105 = scmp.eq.s32.totalorder %s15, 1
    %p106 = scmp.ne.s32.totalorder %s101, %s103
    %p107 = scmp.eq.s32.totalorder %s15, 0
    %p108 = por %p106, %p107
    %p109 = scmp.ne.s32.totalorder %s101, %s103
    %p110 = scmp.eq.s32.totalorder %s20, 1
    %p111 = por %p109, %p110
    %p112 = scmp.ne.s32.totalorder %s103, %s104
    %p113 = scmp.eq.s32.totalorder %s20, 0
    %p114 = por %p112, %p113
    %p115 = scmp.ne.s32.totalorder %s103, %s104
    %p116 = scmp.eq.s32.totalorder %s21, 1
    %p117 = por %p115, %p116
    %p119 = scmp.ne.s32.totalorder %s104, %s118
    %p120 = scmp.eq.s32.totalorder %s21, 0
    %p121 = por %p119, %p120
    %s123 = sadd.s32 %s122, 1
    %p126 = scmp.eq.s32.totalorder %s15, 1
    %p127 = scmp.ne.s32.totalorder %s122, %s124
    %p128 = scmp.eq.s32.totalorder %s15, 0
    %p129 = por %p127, %p128
    %p130 = scmp.ne.s32.totalorder %s122, %s124
    %p131 = scmp.eq.s32.totalorder %s20, 1
    %p132 = por %p130, %p131
    %p133 = scmp.ne.s32.totalorder %s124, %s125
    %p134 = scmp.eq.s32.totalorder %s20, 0
    %p135 = por %p133, %p134
    %p136 = scmp.ne.s32.totalorder %s124, %s125
    %p137 = scmp.eq.s32.totalorder %s21, 1
    %p138 = por %p136, %p137
    %p140 = scmp.ne.s32.totalorder %s125, %s139
    %p141 = scmp.eq.s32.totalorder %s21, 0
    %p142 = por %p140, %p141
    %s144 = sadd.s32 %s143, 1
    %p147 = scmp.eq.s32.totalorder %s15, 1
    %p148 = scmp.ne.s32.totalorder %s143, %s145
    %p149 = scmp.eq.s32.totalorder %s15, 0
    %p150 = por %p148, %p149
    %p151 = scmp.ne.s32.totalorder %s143, %s145
    %p152 = scmp.eq.s32.totalorder %s20, 1
    %p153 = por %p151, %p152
    %p154 = scmp.ne.s32.totalorder %s145, %s146
    %p155 = scmp.eq.s32.totalorder %s20, 0
    %p156 = por %p154, %p155
    %p157 = scmp.ne.s32.totalorder %s145, %s146
    %p158 = scmp.eq.s32.totalorder %s21, 1
    %p159 = por %p157, %p158
    %p161 = scmp.ne.s32.totalorder %s146, %s160
    %p162 = scmp.eq.s32.totalorder %s21, 0
    %p163 = por %p161, %p162
    %s165 = sadd.s32 %s164, 1
    %p168 = scmp.eq.s32.totalorder %s15, 1
    %p169 = scmp.ne.s32.totalorder %s164, %s166
    %p170 = scmp.eq.s32.totalorder %s15, 0
    %p171 = por %p169, %p170
    %p172 = scmp.ne.s32.totalorder %s164, %s166
    %p173 = scmp.eq.s32.totalorder %s20, 1
    %p174 = por %p172, %p173
    %p175 = scmp.ne.s32.totalorder %s166, %s167
    %p176 = scmp.eq.s32.totalorder %s20, 0
    %p177 = por %p175, %p176
    %p178 = scmp.ne.s32.totalorder %s166, %s167
    %p179 = scmp.eq.s32.totalorder %s21, 1
    %p180 = por %p178, %p179
    %p182 = scmp.ne.s32.totalorder %s167, %s181
    %p183 = scmp.eq.s32.totalorder %s21, 0
    %p184 = por %p182, %p183
    %s185 = ssub.s32 %s15, %s22
    %p186 = scmp.eq.s32.totalorder %s185, 0
    %s188 = sadd.s32 %s187, 1
    %s189 = scalar_select %p186, %s187, %s188
    %p192 = pneg %p186
    %p193 = scmp.eq.s32.totalorder %s15, 1
    %p194 = por %p192, %p193
    %p195 = scmp.ne.s32.totalorder %s187, %s190
    %p196 = scmp.eq.s32.totalorder %s15, 0
    %p197 = por %p195, %p196
    %p198 = scmp.ne.s32.totalorder %s187, %s190
    %p199 = scmp.eq.s32.totalorder %s20, 1
    %p200 = por %p198, %p199
    %p201 = scmp.ne.s32.totalorder %s190, %s191
    %p202 = scmp.eq.s32.totalorder %s20, 0
    %p203 = por %p201, %p202
    %p204 = scmp.ne.s32.totalorder %s190, %s191
    %p205 = scmp.eq.s32.totalorder %s21, 1
    %p206 = por %p204, %p205
    %p208 = scmp.ne.s32.totalorder %s191, %s207
    %p209 = scmp.eq.s32.totalorder %s21, 0
    %p210 = por %p208, %p209
    %s211 = ssub.s32 %s15, %s22
    %p212 = scmp.eq.s32.totalorder %s211, 0
    %s214 = sadd.s32 %s213, 1
    %s215 = scalar_select %p212, %s213, %s214
    %p218 = pneg %p212
    %p219 = scmp.eq.s32.totalorder %s15, 1
    %p220 = por %p218, %p219
    %p221 = scmp.ne.s32.totalorder %s213, %s216
    %p222 = scmp.eq.s32.totalorder %s15, 0
    %p223 = por %p221, %p222
    %p224 = scmp.ne.s32.totalorder %s213, %s216
    %p225 = scmp.eq.s32.totalorder %s20, 1
    %p226 = por %p224, %p225
    %p227 = scmp.ne.s32.totalorder %s216, %s217
    %p228 = scmp.eq.s32.totalorder %s20, 0
    %p229 = por %p227, %p228
    %p230 = scmp.ne.s32.totalorder %s216, %s217
    %p231 = scmp.eq.s32.totalorder %s21, 1
    %p232 = por %p230, %p231
    %p234 = scmp.ne.s32.totalorder %s217, %s233
    %p235 = scmp.eq.s32.totalorder %s21, 0
    %p236 = por %p234, %p235
    %p237 = scmp.le.s32.totalorder 1, %s15
    %p238 = scmp.lt.s32.totalorder %s15, 3
    %p239 = pnand %p237, %p238
    %p240 = pneg %p239
    // Predicated region
    $region9: #{decoder_forward.2} parent=5 // pred_check
      _
    $region10: #{decoder_forward.2} parent=5 // pred_check_branch
      %242 = sbr.rel (%p239) target = $region12
    $region11: #{decoder_forward.2} parent=5 // pred_region
      %s243 = ssub.s32 %s15, 1
      // Predicated region
      $region13: #{decoder_forward.2} parent=11 // pred_check
        %p244 = pneg %p114
      $region14: #{decoder_forward.2} parent=11 // pred_check_branch
        %246 = sbr.rel (%p244) target = $region16
      $region15: #{decoder_forward.2} parent=11 // pred_region
        _
      $region16: #{decoder_forward.2} parent=11 // pred_fallthru
        _
      // Predicated region
      $region17: #{decoder_forward.2} parent=11 // pred_check
        %p247 = pneg %p135
      $region18: #{decoder_forward.2} parent=11 // pred_check_branch
        %249 = sbr.rel (%p247) target = $region20
      $region19: #{decoder_forward.2} parent=11 // pred_region
        _
      $region20: #{decoder_forward.2} parent=11 // pred_fallthru
        _
      // Predicated region
      $region21: #{decoder_forward.2} parent=11 // pred_check
        %p250 = pneg %p156
      $region22: #{decoder_forward.2} parent=11 // pred_check_branch
        %252 = sbr.rel (%p250) target = $region24
      $region23: #{decoder_forward.2} parent=11 // pred_region
        _
      $region24: #{decoder_forward.2} parent=11 // pred_fallthru
        _
      // Predicated region
      $region25: #{decoder_forward.2} parent=11 // pred_check
        %p253 = pneg %p177
      $region26: #{decoder_forward.2} parent=11 // pred_check_branch
        %255 = sbr.rel (%p253) target = $region28
      $region27: #{decoder_forward.2} parent=11 // pred_region
        _
      $region28: #{decoder_forward.2} parent=11 // pred_fallthru
        _
    $region12: #{decoder_forward.2} parent=5 // pred_fallthru
      _
    %p256 = scmp.lt.s32.totalorder %s15, 2
    // Predicated region
    $region29: #{decoder_forward.2} parent=5 // pred_check
      %p257 = pneg %p256
    $region30: #{decoder_forward.2} parent=5 // pred_check_branch
      %259 = sbr.rel (%p257) target = $region32
    $region31: #{decoder_forward.2} parent=5 // pred_region
      // Predicated region
      $region33: #{decoder_forward.2} parent=31 // pred_check
        %p260 = pneg %p35
      $region34: #{decoder_forward.2} parent=31 // pred_check_branch
        %262 = sbr.rel (%p260) target = $region36
      $region35: #{decoder_forward.2} parent=31 // pred_region
        %p263 = scmp.lt.s32.totalorder %s15, 1
        %s264 = scalar_select %p263, %s15, 1
        %s265 = smul.addr %s264, 8
        %s266 = scalar_lea.vmem %s0, %s265
      $region36: #{decoder_forward.2} parent=31 // pred_fallthru
        _
      // Predicated region
      $region37: #{decoder_forward.2} parent=31 // pred_check
        %p267 = pneg %p61
      $region38: #{decoder_forward.2} parent=31 // pred_check_branch
        %269 = sbr.rel (%p267) target = $region40
      $region39: #{decoder_forward.2} parent=31 // pred_region
        %p270 = scmp.lt.s32.totalorder %s15, 1
        %s271 = scalar_select %p270, %s15, 1
        %s272 = scalar_lea.vmem %s1, %s271
      $region40: #{decoder_forward.2} parent=31 // pred_fallthru
        _
      // Predicated region
      $region41: #{decoder_forward.2} parent=31 // pred_check
        %p273 = pneg %p87
      $region42: #{decoder_forward.2} parent=31 // pred_check_branch
        %275 = sbr.rel (%p273) target = $region44
      $region43: #{decoder_forward.2} parent=31 // pred_region
        %p276 = scmp.lt.s32.totalorder %s15, 1
        %s277 = scalar_select %p276, %s15, 1
        %s278 = scalar_lea.vmem %s2, %s277
      $region44: #{decoder_forward.2} parent=31 // pred_fallthru
        _
    $region32: #{decoder_forward.2} parent=5 // pred_fallthru
      _
    %p279 = scmp.le.s32.totalorder 1, %s15
    %p280 = scmp.lt.s32.totalorder %s15, 3
    %p281 = pnand %p279, %p280
    %p282 = pneg %p281
    // Predicated region
    $region45: #{decoder_forward.2} parent=5 // pred_check
      _
    $region46: #{decoder_forward.2} parent=5 // pred_check_branch
      %284 = sbr.rel (%p281) target = $region48
    $region47: #{decoder_forward.2} parent=5 // pred_region
      %s285 = ssub.s32 %s15, 1
      %p286 = scmp.lt.s32.totalorder %s20, 1
      %s287 = scalar_select %p286, %s20, 1
      %s288 = smul.addr %s287, 8
      %s289 = scalar_lea.vmem %s0, %s288
      %p290 = pneg %p41
      %p291 = pneg %p38
      %p292 = scmp.lt.s32.totalorder %s20, 1
      %s293 = scalar_select %p292, %s20, 1
      %s294 = scalar_lea.vmem %s1, %s293
      %p295 = pneg %p67
      %p296 = pneg %p64
      %p297 = scmp.lt.s32.totalorder %s20, 1
      %s298 = scalar_select %p297, %s20, 1
      %s299 = scalar_lea.vmem %s2, %s298
      %p300 = pneg %p93
      %p301 = pneg %p90
      %p302 = pneg %p114
      %p303 = pneg %p111
      %p304 = pneg %p135
      %p305 = pneg %p132
      %p306 = pneg %p156
      %p307 = pneg %p153
      %p308 = pneg %p177
      %p309 = pneg %p174
      %p310 = pneg %p203
      %p311 = pneg %p200
      %p312 = scmp.lt.s32.totalorder %s20, 1
      %s313 = scalar_select %p312, %s20, 1
      %s314 = smul.addr %s313, 8
      %s315 = scalar_lea.vmem %s7, %s314
      %p316 = pneg %p229
      %p317 = pneg %p226
      %p318 = scmp.lt.s32.totalorder %s20, 1
      %s319 = scalar_select %p318, %s20, 1
      %s320 = scalar_lea.vmem %s8, %s319
      %p321 = scmp.lt.s32.totalorder %s20, 1
      %s322 = scalar_select %p321, %s20, 1
      %s323 = smul.addr %s322, 8
      %s324 = scalar_lea.vmem %s0, %s323
      %p325 = scmp.lt.s32.totalorder %s20, 1
      %s326 = scalar_select %p325, %s20, 1
      %s327 = scalar_lea.vmem %s1, %s326
      %p328 = scmp.lt.s32.totalorder %s20, 1
      %s329 = scalar_select %p328, %s20, 1
      %s330 = scalar_lea.vmem %s2, %s329
      %p331 = scmp.lt.s32.totalorder %s20, 1
      %s332 = scalar_select %p331, %s20, 1
      %s333 = smul.addr %s332, 8
      %s334 = scalar_lea.vmem %s7, %s333
      %p335 = scmp.lt.s32.totalorder %s20, 1
      %s336 = scalar_select %p335, %s20, 1
      %s337 = scalar_lea.vmem %s8, %s336
      %v338 = vld [vmem:[%s324] sm:$0xff]
      %v339 = vld [vmem:[%s3] sm:$0xff]
      %v340 = vld [vmem:[%s3 + $0x8] sm:$0xff]
      %v341 = vld [vmem:[%s5] sm:$0x1]
      %v343 = vperm.slane %v341, 0
      %vm345 = vcmask 130048
      %v347 = vsel %vm345, %v338, 0
      %349 = vmatpush.msra.mxu0 0.0
      %350 = vmatpush.msra.mxu0 0.0
      %351 = vmatpush.msra.mxu0 0.0
      %352 = vmatpush.msra.mxu0 0.0
      %353 = vmatpush.msra.mxu0 0.0
      %354 = vmatpush.msra.mxu0 0.0
      %355 = vmatpush.msra.mxu0 0.0
      %356 = vmatpush.msra.mxu0 0.0
      %357 = vmatpush.msra.mxu0 0.0
      %358 = vmatpush.msra.mxu0 0.0
      %359 = vmatpush.msra.mxu0 0.0
      %360 = vmatpush.msra.mxu0 0.0
      %361 = vmatpush.msra.mxu0 0.0
      %362 = vmatpush.msra.mxu0 0.0
      %363 = vmatpush.msra.mxu0 %v340
      %364 = vmatpush.msra.mxu0 %v339
      %365 = vmatmul.f32.gmra.mxu0 %v347
      %v366 = vpop.f32.mrf.mxu0
      %v367 = vadd.f32 %v343, %v366
      %368 = vdwg.mxu0
      %vm369 = vcmask 785408
      %370 = vst.msk [vmem:[#allocation2] sm:$0xff] %vm369, %v367
      %v371 = vld [vmem:[%s4] sm:$0xff]
      %v372 = vld [vmem:[%s4 + $0x8] sm:$0xff]
      %v373 = vld [vmem:[%s4 + $0x10] sm:$0xff]
      %v374 = vld [vmem:[%s4 + $0x18] sm:$0xff]
      %v375 = vld [vmem:[%s6] sm:$0x1]
      %v376 = vld [vmem:[%s330] sm:$0x1]
      %v377 = vld [vmem:[%s327] sm:$0x1]
      loop: start=0, step=1, limit=8
      $region49: #{decoder_forward.2} parent=47 // loop_pre_header
        _
      $region50: #{decoder_forward.2} parent=47 // loop_header
        %s379 = sphi 0, %s383
        %p380 = scmp.ge.s32.totalorder %s379, 8
        %v384 = vphi %v377, %v457
      $region51: #{decoder_forward.2} parent=47 // loop_header_branch
        %382 = sbr.rel (%p380) target = $region55
      $region52: #{decoder_forward.2} parent=47 // loop_body
        %s385 = scalar_lea.vmem [#allocation2], %s379
        %v386 = vld [vmem:[%s385] sm:$0x1]
        %vm387 = vcmask 261120
        %v389 = vsel %vm387, %v384, 0
        %391 = vmatpush.msra.mxu0 0.0
        %392 = vmatpush.msra.mxu0 0.0
        %393 = vmatpush.msra.mxu0 0.0
        %394 = vmatpush.msra.mxu0 0.0
        %395 = vmatpush.msra.mxu0 0.0
        %396 = vmatpush.msra.mxu0 0.0
        %397 = vmatpush.msra.mxu0 0.0
        %398 = vmatpush.msra.mxu0 0.0
        %399 = vmatpush.msra.mxu0 0.0
        %400 = vmatpush.msra.mxu0 0.0
        %401 = vmatpush.msra.mxu0 0.0
        %402 = vmatpush.msra.mxu0 0.0
        %403 = vmatpush.msra.mxu0 %v374
        %404 = vmatpush.msra.mxu0 %v373
        %405 = vmatpush.msra.mxu0 %v372
        %406 = vmatpush.msra.mxu0 %v371
        %407 = vmatmul.f32.gmra.mxu0 %v389
        %v408 = vpop.f32.mrf.mxu0
        %v409 = vadd.f32 %v375, %v408
        %410 = vdwg.mxu0
        %v411 = vadd.f32 %v386, %v409
        %v412 = vmul.f32 %v411, 0.5
        %v413 = vtanh.pop %v412
        %v414 = vadd.f32 %v413, 1.0
        %v415 = vmul.f32 %v414, 0.5
        %417 = vrot.lane.b32.xlu0 %v409, 64
        %v418 = vpop.permute.xlu0 %417
        %v420 = vmul.f32 %v415, %v418
        %422 = vrot.lane.b32.xlu0 %v420, 64
        %v423 = vpop.permute.xlu0 %422
        %v425 = vadd.f32 %v386, %v423
        %v426 = vtanh.pop %v425
        %v427 = vsub.f32 1.0, %v415
        %429 = vrot.lane.b32.xlu0 %v426, 96
        %v430 = vpop.permute.xlu0 %429
        %v432 = vmul.f32 %v427, %v430
        %433 = vrot.lane.b32.xlu0 %v384, 32
        %v434 = vpop.permute.xlu0 %433
        %v436 = vmul.f32 %v415, %v434
        %v437 = vadd.f32 %v432, %v436
        %v438 = vstv %s379
        %vm439 = vcmp.lt.s32.totalorder %v438, %v376
        %v440 = vsel %vm439, 1, 0
        %441 = vset.pattern.permute.xlu0 0
        %442 = vperm.xlu0 %441, %v440
        %v443 = vpop.permute.xlu0 %442
        %v444 = vperm.slane %v443, 0
        %vm445 = vcmp.eq.s32.totalorder %v444, 1
        %v446 = vsel %vm445, %v437, 0.0
        %448 = vrot.lane.b32.xlu0 %v446, 96
        %v449 = vpop.permute.xlu0 %448
        %s451 = scalar_lea.vmem %s334, %s379
        %vm452 = vcmask 253952
        %453 = vst.msk [vmem:[%s451] sm:$0x1] %vm452, %v449
        %v454 = vsel %vm445, %v437, %v434
        %456 = vrot.lane.b32.xlu0 %v454, 96
        %v457 = vpop.permute.xlu0 %456
      $region53: #{decoder_forward.2} parent=47 // loop_footer
        %s383 = sadd.s32 1, %s379
      $region54: #{decoder_forward.2} parent=47 // loop_footer_branch
        %378 = sbr.rel target = $region50
      $region55: #{decoder_forward.2} parent=47 // loop_exit
        _
      %vm459 = vcmask 253952
      %460 = vst.msk [vmem:[%s337] sm:$0x1] %vm459, %v384
      %p461 = scmp.lt.s32.totalorder %s20, 1
      %s462 = scalar_select %p461, %s20, 1
      %s463 = smul.addr %s462, 8
      %s464 = scalar_lea.vmem %s7, %s463
      %p465 = scmp.lt.s32.totalorder %s20, 1
      %s466 = scalar_select %p465, %s20, 1
      %s467 = scalar_lea.vmem %s8, %s466
      // Predicated region
      $region56: #{decoder_forward.2} parent=47 // pred_check
        %p468 = pneg %p200
      $region57: #{decoder_forward.2} parent=47 // pred_check_branch
        %470 = sbr.rel (%p468) target = $region59
      $region58: #{decoder_forward.2} parent=47 // pred_region
        _
      $region59: #{decoder_forward.2} parent=47 // pred_fallthru
        _
      // Predicated region
      $region60: #{decoder_forward.2} parent=47 // pred_check
        %p471 = pneg %p226
      $region61: #{decoder_forward.2} parent=47 // pred_check_branch
        %473 = sbr.rel (%p471) target = $region63
      $region62: #{decoder_forward.2} parent=47 // pred_region
        _
      $region63: #{decoder_forward.2} parent=47 // pred_fallthru
        _
    $region48: #{decoder_forward.2} parent=5 // pred_fallthru
      _
    %p474 = scmp.le.s32.totalorder 2, %s15
    // Predicated region
    $region64: #{decoder_forward.2} parent=5 // pred_check
      %p475 = pneg %p474
    $region65: #{decoder_forward.2} parent=5 // pred_check_branch
      %477 = sbr.rel (%p475) target = $region67
    $region66: #{decoder_forward.2} parent=5 // pred_region
      %s478 = ssub.s32 %s15, 2
      // Predicated region
      $region68: #{decoder_forward.2} parent=66 // pred_check
        %p479 = pneg %p206
      $region69: #{decoder_forward.2} parent=66 // pred_check_branch
        %481 = sbr.rel (%p479) target = $region71
      $region70: #{decoder_forward.2} parent=66 // pred_region
        %p482 = scmp.lt.s32.totalorder %s21, 1
        %s483 = scalar_select %p482, %s21, 1
        %s484 = smul.addr %s483, 8
        %s485 = scalar_lea.vmem %s7, %s484
      $region71: #{decoder_forward.2} parent=66 // pred_fallthru
        _
      // Predicated region
      $region72: #{decoder_forward.2} parent=66 // pred_check
        %p486 = pneg %p232
      $region73: #{decoder_forward.2} parent=66 // pred_check_branch
        %488 = sbr.rel (%p486) target = $region75
      $region74: #{decoder_forward.2} parent=66 // pred_region
        %p489 = scmp.lt.s32.totalorder %s21, 1
        %s490 = scalar_select %p489, %s21, 1
        %s491 = scalar_lea.vmem %s8, %s490
      $region75: #{decoder_forward.2} parent=66 // pred_fallthru
        _
    $region67: #{decoder_forward.2} parent=5 // pred_fallthru
      _
  $region6: #{decoder_forward.2} parent=0 // loop_footer
    %s19 = sadd.s32 1, %s15
  $region7: #{decoder_forward.2} parent=0 // loop_footer_branch
    %14 = sbr.rel target = $region3
  $region8: #{decoder_forward.2} parent=0 // loop_exit
    _

// kernel: decoder_forward.3
$region0: #{decoder_forward.3}
  #allocation0 [shape = 'u32[]', space=smem, size = 0x4, offset = 0x4, fixed_abs, tag = 'smem constant byte address 0x4 - core index']
  #allocation1 [shape = 'u32[72,128]{1,0:T(1,128)}', space=vmem, size = 0x9000, scoped, tag = 'internal scratch']
  #allocation2 [shape = 'f32[16,32]{1,0:T(8,128)}', space=vmem, size = 0x2000, scoped, tag = 'scratch operand']
  #allocation3 [shape = 'f32[2,8,8]{2,1,0:T(8,128)}', space=vmem, size = 0x2000, scoped, tag = 'scratch operand']
  #allocation4 [shape = 'f32[2,1]{1,0:T(2,128)}', space=vmem, size = 0x400, scoped, tag = 'scratch operand']
  #allocation5 [shape = 'f32[2,8,1]{2,1,0:T(8,128)}', space=vmem, size = 0x2000, scoped, tag = 'scratch operand']
  #allocation6 [shape = 'f32[2,8,1]{2,1,0:T(8,128)}', space=vmem, size = 0x2000, scoped, tag = 'scratch operand']
  #allocation7 [shape = 'f32[1,1]{1,0:T(1,128)S(1)}', space=vmem, size = 0x200, scoped, tag = 'scoped memory for decoder_forward.3']
  %s0 = inlined_call_operand.vmem [shape: f32[2,8,32], index: 0, kind: input, shape index: {}]
  %s1 = inlined_call_operand.vmem [shape: f32[2,8,32], index: 1, kind: input, shape index: {}]
  %s2 = inlined_call_operand.vmem [shape: f32[2,9,16], index: 2, kind: input, shape index: {}]
  %s3 = inlined_call_operand.vmem [shape: f32[2,1,32], index: 3, kind: input, shape index: {}]
  %s4 = inlined_call_operand.vmem [shape: s32[2,1,8], index: 4, kind: input, shape index: {}]
  %s5 = inlined_call_operand.vmem [shape: f32[1,128], index: 5, kind: input, shape index: {}]
  %s6 = inlined_call_operand.vmem [shape: f32[32,32], index: 6, kind: input, shape index: {}]
  %s7 = inlined_call_operand.vmem [shape: f32[32,32], index: 7, kind: input, shape index: {}]
  %s8 = inlined_call_operand.vmem [shape: f32[32,32], index: 8, kind: input, shape index: {}]
  %s9 = inlined_call_operand.vmem [shape: f32[1,32], index: 9, kind: input, shape index: {}]
  %s10 = inlined_call_operand.vmem [shape: f32[16,32], index: 10, kind: input, shape index: {}]
  %s11 = inlined_call_operand.vmem [shape: f32[16,32], index: 11, kind: input, shape index: {}]
  %s12 = inlined_call_operand.vmem [shape: f32[32,32], index: 12, kind: input, shape index: {}]
  %s13 = inlined_call_operand.vmem [shape: f32[1,32], index: 13, kind: input, shape index: {}]
  %s14 = inlined_call_operand.vmem [shape: f32[32,8], index: 14, kind: input, shape index: {}]
  %s15 = inlined_call_operand.vmem [shape: f32[1,8], index: 15, kind: input, shape index: {}]
  %s16 = inlined_call_operand.vmem [shape: f32[32,1], index: 16, kind: input, shape index: {}]
  %s17 = inlined_call_operand.<no memory space> [shape: f32[1,1], index: 17, kind: input, shape index: {}]
  %s18 = inlined_call_operand.vmem [shape: f32[32,128], index: 18, kind: input, shape index: {}]
  %s19 = inlined_call_operand.vmem [shape: f32[1,128], index: 19, kind: input, shape index: {}]
  %s20 = inlined_call_operand.hbm [shape: f32[2,8,128], index: 20, kind: output, shape index: {0}]
  %s21 = inlined_call_operand.hbm [shape: f32[2,8,8], index: 21, kind: output, shape index: {1}]
  %22 = xla_tuple %s20, %s21
  %s23 = sld [smem:[#allocation0]]
  $region133: #{decoder_forward.3} parent=0
    _
  %s25 = ssub.s32 1, %s23
  %s26 = scalar_select 0, %s25, %s23
  %v27 = vstv %s17
  %28 = vst [vmem:[#allocation7] sm:$0x1] %v27
  $region1: #{decoder_forward.3} parent=0
    #allocation8 [shape = 'u8[16384]{0}', space=vmem, size = 0x4000, scoped, tag = 'output window, operand 0']
    #allocation9 [shape = 's32[2]{0}', space=sflag, size = 0x8, scoped, tag = 'scoped memory for decoder_forward.3']
    #allocation10 [shape = 'u8[8192]{0}', space=vmem, size = 0x2000, scoped, tag = 'output window, operand 1, single buffered']
    #allocation11 [shape = 's32[1]{0}', space=sflag, size = 0x4, scoped, tag = 'scoped memory for decoder_forward.3']
    %29 = vsyncpa [#allocation9], 0
    %s30 = scalar_lea.sflag [#allocation9], 1
    %31 = vsyncpa %s30, 0
    %32 = vsyncpa [#allocation11], 0
    loop: start=0, step=1, limit=4
    $region2: #{decoder_forward.3} parent=1 // loop_pre_header
      _
    $region3: #{decoder_forward.3} parent=1 // loop_header
      %s34 = sphi 0, %s38
      %p35 = scmp.ge.s32.totalorder %s34, 4
      %s41 = sphi 0, %s60
      %s42 = sphi 0, %s56
      %s43 = sphi 0, %s52
      %s44 = sphi 0, %s41
      %s45 = sphi 0, %s42
      %s46 = sphi 0, %s43
      %s47 = sphi 0, %s44
      %s48 = sphi 0, %s45
      %s49 = sphi 0, %s46
      %s63 = sphi 0, %s65
      %s66 = sphi 0, %s63
      %s67 = sphi 0, %s66
      %s83 = sphi 0, %s67
      %s89 = sphi 0, %s91
      %s92 = sphi 0, %s89
      %s93 = sphi 0, %s92
      %s109 = sphi 0, %s93
      %s115 = sphi 0, %s117
      %s118 = sphi 0, %s115
      %s119 = sphi 0, %s118
      %s135 = sphi 0, %s119
      %s141 = sphi 0, %s143
      %s144 = sphi 0, %s141
      %s145 = sphi 0, %s144
      %s161 = sphi 0, %s145
      %s167 = sphi 0, %s169
      %s170 = sphi 0, %s167
      %s171 = sphi 0, %s170
      %s187 = sphi 0, %s171
      %s193 = sphi 0, %s195
      %s196 = sphi 0, %s193
      %s197 = sphi 0, %s196
      %s213 = sphi 0, %s197
      %s217 = sphi 0, %s217
      %s219 = sphi 0, %s217
      %s220 = sphi 0, %s219
      %s234 = sphi 0, %s220
      %s238 = sphi 0, %s238
      %s240 = sphi 0, %s238
      %s241 = sphi 0, %s240
      %s255 = sphi 0, %s241
      %s259 = sphi 0, %s259
      %s261 = sphi 0, %s259
      %s262 = sphi 0, %s261
      %s276 = sphi 0, %s262
      %s280 = sphi 0, %s280
      %s282 = sphi 0, %s280
      %s283 = sphi 0, %s282
      %s297 = sphi 0, %s283
      %s301 = sphi 0, %s301
      %s303 = sphi 0, %s301
      %s304 = sphi 0, %s303
      %s318 = sphi 0, %s304
      %s322 = sphi 0, %s322
      %s324 = sphi 0, %s322
      %s325 = sphi 0, %s324
      %s339 = sphi 0, %s325
      %s343 = sphi 0, %s343
      %s345 = sphi 0, %s343
      %s346 = sphi 0, %s345
      %s360 = sphi 0, %s346
      %s364 = sphi 0, %s364
      %s366 = sphi 0, %s364
      %s367 = sphi 0, %s366
      %s381 = sphi 0, %s367
      %s385 = sphi 0, %s385
      %s387 = sphi 0, %s385
      %s388 = sphi 0, %s387
      %s402 = sphi 0, %s388
      %s406 = sphi 0, %s406
      %s408 = sphi 0, %s406
      %s409 = sphi 0, %s408
      %s423 = sphi 0, %s409
      %s427 = sphi 0, %s427
      %s429 = sphi 0, %s427
      %s430 = sphi 0, %s429
      %s444 = sphi 0, %s430
      %s448 = sphi 0, %s448
      %s450 = sphi 0, %s448
      %s451 = sphi 0, %s450
      %s465 = sphi 0, %s451
      %s471 = sphi 0, %s473
      %s474 = sphi 0, %s471
      %s475 = sphi 0, %s474
      %s491 = sphi 0, %s475
      %s497 = sphi 0, %s499
      %s500 = sphi 0, %s497
      %s501 = sphi 0, %s500
      %s517 = sphi 0, %s501
      %s527 = sphi 0, %s529
      %s530 = sphi 0, %s527
      %s531 = sphi 0, %s530
      %s547 = sphi 0, %s531
      %s553 = sphi 0, %s555
      %s556 = sphi 0, %s553
      %s557 = sphi 0, %s556
      %s573 = sphi 0, %s557
    $region4: #{decoder_forward.3} parent=1 // loop_header_branch
      %37 = sbr.rel (%p35) target = $region8
    $region5: #{decoder_forward.3} parent=1 // loop_body
      %s39 = ssub.s32 %s34, 1
      %s40 = ssub.s32 %s34, 2
      %s50 = sadd.s32 1, %s43
      %p51 = scmp.ge.s32.totalorder %s50, 1
      %s52 = scalar_select %p51, 0, %s50
      %s53 = sadd.s32 1, %s42
      %s54 = scalar_select %p51, %s53, %s42
      %p55 = scmp.ge.s32.totalorder %s54, 2
      %s56 = scalar_select %p55, 0, %s54
      %s57 = sadd.s32 1, %s41
      %s58 = scalar_select %p55, %s57, %s41
      %p59 = scmp.ge.s32.totalorder %s58, 1
      %s60 = scalar_select %p59, 0, %s58
      %s61 = ssub.s32 %s41, %s60
      %p62 = scmp.eq.s32.totalorder %s61, 0
      %s64 = sadd.s32 %s63, 1
      %s65 = scalar_select %p62, %s63, %s64
      %p68 = pneg %p62
      %p69 = scmp.eq.s32.totalorder %s34, 1
      %p70 = por %p68, %p69
      %p71 = scmp.ne.s32.totalorder %s63, %s66
      %p72 = scmp.eq.s32.totalorder %s34, 0
      %p73 = por %p71, %p72
      %p74 = scmp.ne.s32.totalorder %s63, %s66
      %p75 = scmp.eq.s32.totalorder %s39, 1
      %p76 = por %p74, %p75
      %p77 = scmp.ne.s32.totalorder %s66, %s67
      %p78 = scmp.eq.s32.totalorder %s39, 0
      %p79 = por %p77, %p78
      %p80 = scmp.ne.s32.totalorder %s66, %s67
      %p81 = scmp.eq.s32.totalorder %s40, 1
      %p82 = por %p80, %p81
      %p84 = scmp.ne.s32.totalorder %s67, %s83
      %p85 = scmp.eq.s32.totalorder %s40, 0
      %p86 = por %p84, %p85
      %s87 = ssub.s32 %s41, %s60
      %p88 = scmp.eq.s32.totalorder %s87, 0
      %s90 = sadd.s32 %s89, 1
      %s91 = scalar_select %p88, %s89, %s90
      %p94 = pneg %p88
      %p95 = scmp.eq.s32.totalorder %s34, 1
      %p96 = por %p94, %p95
      %p97 = scmp.ne.s32.totalorder %s89, %s92
      %p98 = scmp.eq.s32.totalorder %s34, 0
      %p99 = por %p97, %p98
      %p100 = scmp.ne.s32.totalorder %s89, %s92
      %p101 = scmp.eq.s32.totalorder %s39, 1
      %p102 = por %p100, %p101
      %p103 = scmp.ne.s32.totalorder %s92, %s93
      %p104 = scmp.eq.s32.totalorder %s39, 0
      %p105 = por %p103, %p104
      %p106 = scmp.ne.s32.totalorder %s92, %s93
      %p107 = scmp.eq.s32.totalorder %s40, 1
      %p108 = por %p106, %p107
      %p110 = scmp.ne.s32.totalorder %s93, %s109
      %p111 = scmp.eq.s32.totalorder %s40, 0
      %p112 = por %p110, %p111
      %s113 = ssub.s32 %s41, %s60
      %p114 = scmp.eq.s32.totalorder %s113, 0
      %s116 = sadd.s32 %s115, 1
      %s117 = scalar_select %p114, %s115, %s116
      %p120 = pneg %p114
      %p121 = scmp.eq.s32.totalorder %s34, 1
      %p122 = por %p120, %p121
      %p123 = scmp.ne.s32.totalorder %s115, %s118
      %p124 = scmp.eq.s32.totalorder %s34, 0
      %p125 = por %p123, %p124
      %p126 = scmp.ne.s32.totalorder %s115, %s118
      %p127 = scmp.eq.s32.totalorder %s39, 1
      %p128 = por %p126, %p127
      %p129 = scmp.ne.s32.totalorder %s118, %s119
      %p130 = scmp.eq.s32.totalorder %s39, 0
      %p131 = por %p129, %p130
      %p132 = scmp.ne.s32.totalorder %s118, %s119
      %p133 = scmp.eq.s32.totalorder %s40, 1
      %p134 = por %p132, %p133
      %p136 = scmp.ne.s32.totalorder %s119, %s135
      %p137 = scmp.eq.s32.totalorder %s40, 0
      %p138 = por %p136, %p137
      %s139 = ssub.s32 %s41, %s60
      %p140 = scmp.eq.s32.totalorder %s139, 0
      %s142 = sadd.s32 %s141, 1
      %s143 = scalar_select %p140, %s141, %s142
      %p146 = pneg %p140
      %p147 = scmp.eq.s32.totalorder %s34, 1
      %p148 = por %p146, %p147
      %p149 = scmp.ne.s32.totalorder %s141, %s144
      %p150 = scmp.eq.s32.totalorder %s34, 0
      %p151 = por %p149, %p150
      %p152 = scmp.ne.s32.totalorder %s141, %s144
      %p153 = scmp.eq.s32.totalorder %s39, 1
      %p154 = por %p152, %p153
      %p155 = scmp.ne.s32.totalorder %s144, %s145
      %p156 = scmp.eq.s32.totalorder %s39, 0
      %p157 = por %p155, %p156
      %p158 = scmp.ne.s32.totalorder %s144, %s145
      %p159 = scmp.eq.s32.totalorder %s40, 1
      %p160 = por %p158, %p159
      %p162 = scmp.ne.s32.totalorder %s145, %s161
      %p163 = scmp.eq.s32.totalorder %s40, 0
      %p164 = por %p162, %p163
      %s165 = ssub.s32 %s41, %s60
      %p166 = scmp.eq.s32.totalorder %s165, 0
      %s168 = sadd.s32 %s167, 1
      %s169 = scalar_select %p166, %s167, %s168
      %p172 = pneg %p166
      %p173 = scmp.eq.s32.totalorder %s34, 1
      %p174 = por %p172, %p173
      %p175 = scmp.ne.s32.totalorder %s167, %s170
      %p176 = scmp.eq.s32.totalorder %s34, 0
      %p177 = por %p175, %p176
      %p178 = scmp.ne.s32.totalorder %s167, %s170
      %p179 = scmp.eq.s32.totalorder %s39, 1
      %p180 = por %p178, %p179
      %p181 = scmp.ne.s32.totalorder %s170, %s171
      %p182 = scmp.eq.s32.totalorder %s39, 0
      %p183 = por %p181, %p182
      %p184 = scmp.ne.s32.totalorder %s170, %s171
      %p185 = scmp.eq.s32.totalorder %s40, 1
      %p186 = por %p184, %p185
      %p188 = scmp.ne.s32.totalorder %s171, %s187
      %p189 = scmp.eq.s32.totalorder %s40, 0
      %p190 = por %p188, %p189
      %s191 = ssub.s32 %s43, %s52
      %p192 = scmp.eq.s32.totalorder %s191, 0
      %s194 = sadd.s32 %s193, 1
      %s195 = scalar_select %p192, %s193, %s194
      %p198 = pneg %p192
      %p199 = scmp.eq.s32.totalorder %s34, 1
      %p200 = por %p198, %p199
      %p201 = scmp.ne.s32.totalorder %s193, %s196
      %p202 = scmp.eq.s32.totalorder %s34, 0
      %p203 = por %p201, %p202
      %p204 = scmp.ne.s32.totalorder %s193, %s196
      %p205 = scmp.eq.s32.totalorder %s39, 1
      %p206 = por %p204, %p205
      %p207 = scmp.ne.s32.totalorder %s196, %s197
      %p208 = scmp.eq.s32.totalorder %s39, 0
      %p209 = por %p207, %p208
      %p210 = scmp.ne.s32.totalorder %s196, %s197
      %p211 = scmp.eq.s32.totalorder %s40, 1
      %p212 = por %p210, %p211
      %p214 = scmp.ne.s32.totalorder %s197, %s213
      %p215 = scmp.eq.s32.totalorder %s40, 0
      %p216 = por %p214, %p215
      %s218 = sadd.s32 %s217, 1
      %p221 = scmp.eq.s32.totalorder %s34, 1
      %p222 = scmp.ne.s32.totalorder %s217, %s219
      %p223 = scmp.eq.s32.totalorder %s34, 0
      %p224 = por %p222, %p223
      %p225 = scmp.ne.s32.totalorder %s217, %s219
      %p226 = scmp.eq.s32.totalorder %s39, 1
      %p227 = por %p225, %p226
      %p228 = scmp.ne.s32.totalorder %s219, %s220
      %p229 = scmp.eq.s32.totalorder %s39, 0
      %p230 = por %p228, %p229
      %p231 = scmp.ne.s32.totalorder %s219, %s220
      %p232 = scmp.eq.s32.totalorder %s40, 1
      %p233 = por %p231, %p232
      %p235 = scmp.ne.s32.totalorder %s220, %s234
      %p236 = scmp.eq.s32.totalorder %s40, 0
      %p237 = por %p235, %p236
      %s239 = sadd.s32 %s238, 1
      %p242 = scmp.eq.s32.totalorder %s34, 1
      %p243 = scmp.ne.s32.totalorder %s238, %s240
      %p244 = scmp.eq.s32.totalorder %s34, 0
      %p245 = por %p243, %p244
      %p246 = scmp.ne.s32.totalorder %s238, %s240
      %p247 = scmp.eq.s32.totalorder %s39, 1
      %p248 = por %p246, %p247
      %p249 = scmp.ne.s32.totalorder %s240, %s241
      %p250 = scmp.eq.s32.totalorder %s39, 0
      %p251 = por %p249, %p250
      %p252 = scmp.ne.s32.totalorder %s240, %s241
      %p253 = scmp.eq.s32.totalorder %s40, 1
      %p254 = por %p252, %p253
      %p256 = scmp.ne.s32.totalorder %s241, %s255
      %p257 = scmp.eq.s32.totalorder %s40, 0
      %p258 = por %p256, %p257
      %s260 = sadd.s32 %s259, 1
      %p263 = scmp.eq.s32.totalorder %s34, 1
      %p264 = scmp.ne.s32.totalorder %s259, %s261
      %p265 = scmp.eq.s32.totalorder %s34, 0
      %p266 = por %p264, %p265
      %p267 = scmp.ne.s32.totalorder %s259, %s261
      %p268 = scmp.eq.s32.totalorder %s39, 1
      %p269 = por %p267, %p268
      %p270 = scmp.ne.s32.totalorder %s261, %s262
      %p271 = scmp.eq.s32.totalorder %s39, 0
      %p272 = por %p270, %p271
      %p273 = scmp.ne.s32.totalorder %s261, %s262
      %p274 = scmp.eq.s32.totalorder %s40, 1
      %p275 = por %p273, %p274
      %p277 = scmp.ne.s32.totalorder %s262, %s276
      %p278 = scmp.eq.s32.totalorder %s40, 0
      %p279 = por %p277, %p278
      %s281 = sadd.s32 %s280, 1
      %p284 = scmp.eq.s32.totalorder %s34, 1
      %p285 = scmp.ne.s32.totalorder %s280, %s282
      %p286 = scmp.eq.s32.totalorder %s34, 0
      %p287 = por %p285, %p286
      %p288 = scmp.ne.s32.totalorder %s280, %s282
      %p289 = scmp.eq.s32.totalorder %s39, 1
      %p290 = por %p288, %p289
      %p291 = scmp.ne.s32.totalorder %s282, %s283
      %p292 = scmp.eq.s32.totalorder %s39, 0
      %p293 = por %p291, %p292
      %p294 = scmp.ne.s32.totalorder %s282, %s283
      %p295 = scmp.eq.s32.totalorder %s40, 1
      %p296 = por %p294, %p295
      %p298 = scmp.ne.s32.totalorder %s283, %s297
      %p299 = scmp.eq.s32.totalorder %s40, 0
      %p300 = por %p298, %p299
      %s302 = sadd.s32 %s301, 1
      %p305 = scmp.eq.s32.totalorder %s34, 1
      %p306 = scmp.ne.s32.totalorder %s301, %s303
      %p307 = scmp.eq.s32.totalorder %s34, 0
      %p308 = por %p306, %p307
      %p309 = scmp.ne.s32.totalorder %s301, %s303
      %p310 = scmp.eq.s32.totalorder %s39, 1
      %p311 = por %p309, %p310
      %p312 = scmp.ne.s32.totalorder %s303, %s304
      %p313 = scmp.eq.s32.totalorder %s39, 0
      %p314 = por %p312, %p313
      %p315 = scmp.ne.s32.totalorder %s303, %s304
      %p316 = scmp.eq.s32.totalorder %s40, 1
      %p317 = por %p315, %p316
      %p319 = scmp.ne.s32.totalorder %s304, %s318
      %p320 = scmp.eq.s32.totalorder %s40, 0
      %p321 = por %p319, %p320
      %s323 = sadd.s32 %s322, 1
      %p326 = scmp.eq.s32.totalorder %s34, 1
      %p327 = scmp.ne.s32.totalorder %s322, %s324
      %p328 = scmp.eq.s32.totalorder %s34, 0
      %p329 = por %p327, %p328
      %p330 = scmp.ne.s32.totalorder %s322, %s324
      %p331 = scmp.eq.s32.totalorder %s39, 1
      %p332 = por %p330, %p331
      %p333 = scmp.ne.s32.totalorder %s324, %s325
      %p334 = scmp.eq.s32.totalorder %s39, 0
      %p335 = por %p333, %p334
      %p336 = scmp.ne.s32.totalorder %s324, %s325
      %p337 = scmp.eq.s32.totalorder %s40, 1
      %p338 = por %p336, %p337
      %p340 = scmp.ne.s32.totalorder %s325, %s339
      %p341 = scmp.eq.s32.totalorder %s40, 0
      %p342 = por %p340, %p341
      %s344 = sadd.s32 %s343, 1
      %p347 = scmp.eq.s32.totalorder %s34, 1
      %p348 = scmp.ne.s32.totalorder %s343, %s345
      %p349 = scmp.eq.s32.totalorder %s34, 0
      %p350 = por %p348, %p349
      %p351 = scmp.ne.s32.totalorder %s343, %s345
      %p352 = scmp.eq.s32.totalorder %s39, 1
      %p353 = por %p351, %p352
      %p354 = scmp.ne.s32.totalorder %s345, %s346
      %p355 = scmp.eq.s32.totalorder %s39, 0
      %p356 = por %p354, %p355
      %p357 = scmp.ne.s32.totalorder %s345, %s346
      %p358 = scmp.eq.s32.totalorder %s40, 1
      %p359 = por %p357, %p358
      %p361 = scmp.ne.s32.totalorder %s346, %s360
      %p362 = scmp.eq.s32.totalorder %s40, 0
      %p363 = por %p361, %p362
      %s365 = sadd.s32 %s364, 1
      %p368 = scmp.eq.s32.totalorder %s34, 1
      %p369 = scmp.ne.s32.totalorder %s364, %s366
      %p370 = scmp.eq.s32.totalorder %s34, 0
      %p371 = por %p369, %p370
      %p372 = scmp.ne.s32.totalorder %s364, %s366
      %p373 = scmp.eq.s32.totalorder %s39, 1
      %p374 = por %p372, %p373
      %p375 = scmp.ne.s32.totalorder %s366, %s367
      %p376 = scmp.eq.s32.totalorder %s39, 0
      %p377 = por %p375, %p376
      %p378 = scmp.ne.s32.totalorder %s366, %s367
      %p379 = scmp.eq.s32.totalorder %s40, 1
      %p380 = por %p378, %p379
      %p382 = scmp.ne.s32.totalorder %s367, %s381
      %p383 = scmp.eq.s32.totalorder %s40, 0
      %p384 = por %p382, %p383
      %s386 = sadd.s32 %s385, 1
      %p389 = scmp.eq.s32.totalorder %s34, 1
      %p390 = scmp.ne.s32.totalorder %s385, %s387
      %p391 = scmp.eq.s32.totalorder %s34, 0
      %p392 = por %p390, %p391
      %p393 = scmp.ne.s32.totalorder %s385, %s387
      %p394 = scmp.eq.s32.totalorder %s39, 1
      %p395 = por %p393, %p394
      %p396 = scmp.ne.s32.totalorder %s387, %s388
      %p397 = scmp.eq.s32.totalorder %s39, 0
      %p398 = por %p396, %p397
      %p399 = scmp.ne.s32.totalorder %s387, %s388
      %p400 = scmp.eq.s32.totalorder %s40, 1
      %p401 = por %p399, %p400
      %p403 = scmp.ne.s32.totalorder %s388, %s402
      %p404 = scmp.eq.s32.totalorder %s40, 0
      %p405 = por %p403, %p404
      %s407 = sadd.s32 %s406, 1
      %p410 = scmp.eq.s32.totalorder %s34, 1
      %p411 = scmp.ne.s32.totalorder %s406, %s408
      %p412 = scmp.eq.s32.totalorder %s34, 0
      %p413 = por %p411, %p412
      %p414 = scmp.ne.s32.totalorder %s406, %s408
      %p415 = scmp.eq.s32.totalorder %s39, 1
      %p416 = por %p414, %p415
      %p417 = scmp.ne.s32.totalorder %s408, %s409
      %p418 = scmp.eq.s32.totalorder %s39, 0
      %p419 = por %p417, %p418
      %p420 = scmp.ne.s32.totalorder %s408, %s409
      %p421 = scmp.eq.s32.totalorder %s40, 1
      %p422 = por %p420, %p421
      %p424 = scmp.ne.s32.totalorder %s409, %s423
      %p425 = scmp.eq.s32.totalorder %s40, 0
      %p426 = por %p424, %p425
      %s428 = sadd.s32 %s427, 1
      %p431 = scmp.eq.s32.totalorder %s34, 1
      %p432 = scmp.ne.s32.totalorder %s427, %s429
      %p433 = scmp.eq.s32.totalorder %s34, 0
      %p434 = por %p432, %p433
      %p435 = scmp.ne.s32.totalorder %s427, %s429
      %p436 = scmp.eq.s32.totalorder %s39, 1
      %p437 = por %p435, %p436
      %p438 = scmp.ne.s32.totalorder %s429, %s430
      %p439 = scmp.eq.s32.totalorder %s39, 0
      %p440 = por %p438, %p439
      %p441 = scmp.ne.s32.totalorder %s429, %s430
      %p442 = scmp.eq.s32.totalorder %s40, 1
      %p443 = por %p441, %p442
      %p445 = scmp.ne.s32.totalorder %s430, %s444
      %p446 = scmp.eq.s32.totalorder %s40, 0
      %p447 = por %p445, %p446
      %s449 = sadd.s32 %s448, 1
      %p452 = scmp.eq.s32.totalorder %s34, 1
      %p453 = scmp.ne.s32.totalorder %s448, %s450
      %p454 = scmp.eq.s32.totalorder %s34, 0
      %p455 = por %p453, %p454
      %p456 = scmp.ne.s32.totalorder %s448, %s450
      %p457 = scmp.eq.s32.totalorder %s39, 1
      %p458 = por %p456, %p457
      %p459 = scmp.ne.s32.totalorder %s450, %s451
      %p460 = scmp.eq.s32.totalorder %s39, 0
      %p461 = por %p459, %p460
      %p462 = scmp.ne.s32.totalorder %s450, %s451
      %p463 = scmp.eq.s32.totalorder %s40, 1
      %p464 = por %p462, %p463
      %p466 = scmp.ne.s32.totalorder %s451, %s465
      %p467 = scmp.eq.s32.totalorder %s40, 0
      %p468 = por %p466, %p467
      %s469 = ssub.s32 %s43, %s52
      %p470 = scmp.eq.s32.totalorder %s469, 0
      %s472 = sadd.s32 %s471, 1
      %s473 = scalar_select %p470, %s471, %s472
      %p476 = pneg %p470
      %p477 = scmp.eq.s32.totalorder %s34, 1
      %p478 = por %p476, %p477
      %p479 = scmp.ne.s32.totalorder %s471, %s474
      %p480 = scmp.eq.s32.totalorder %s34, 0
      %p481 = por %p479, %p480
      %p482 = scmp.ne.s32.totalorder %s471, %s474
      %p483 = scmp.eq.s32.totalorder %s39, 1
      %p484 = por %p482, %p483
      %p485 = scmp.ne.s32.totalorder %s474, %s475
      %p486 = scmp.eq.s32.totalorder %s39, 0
      %p487 = por %p485, %p486
      %p488 = scmp.ne.s32.totalorder %s474, %s475
      %p489 = scmp.eq.s32.totalorder %s40, 1
      %p490 = por %p488, %p489
      %p492 = scmp.ne.s32.totalorder %s475, %s491
      %p493 = scmp.eq.s32.totalorder %s40, 0
      %p494 = por %p492, %p493
      %s495 = ssub.s32 %s43, %s52
      %p496 = scmp.eq.s32.totalorder %s495, 0
      %s498 = sadd.s32 %s497, 1
      %s499 = scalar_select %p496, %s497, %s498
      %p502 = pneg %p496
      %p503 = scmp.eq.s32.totalorder %s34, 1
      %p504 = por %p502, %p503
      %p505 = scmp.ne.s32.totalorder %s497, %s500
      %p506 = scmp.eq.s32.totalorder %s34, 0
      %p507 = por %p505, %p506
      %p508 = scmp.ne.s32.totalorder %s497, %s500
      %p509 = scmp.eq.s32.totalorder %s39, 1
      %p510 = por %p508, %p509
      %p511 = scmp.ne.s32.totalorder %s500, %s501
      %p512 = scmp.eq.s32.totalorder %s39, 0
      %p513 = por %p511, %p512
      %p514 = scmp.ne.s32.totalorder %s500, %s501
      %p515 = scmp.eq.s32.totalorder %s40, 1
      %p516 = por %p514, %p515
      %p518 = scmp.ne.s32.totalorder %s501, %s517
      %p519 = scmp.eq.s32.totalorder %s40, 0
      %p520 = por %p518, %p519
      %s521 = smul.u32 %s42, %s43
      %s522 = smul.u32 %s56, %s52
      %s523 = ssub.s32 %s41, %s60
      %s524 = ssub.s32 %s521, %s522
      %s525 = sor.u32 %s523, %s524
      %p526 = scmp.eq.s32.totalorder %s525, 0
      %s528 = sadd.s32 %s527, 1
      %s529 = scalar_select %p526, %s527, %s528
      %p532 = pneg %p526
      %p533 = scmp.eq.s32.totalorder %s34, 1
      %p534 = por %p532, %p533
      %p535 = scmp.ne.s32.totalorder %s527, %s530
      %p536 = scmp.eq.s32.totalorder %s34, 0
      %p537 = por %p535, %p536
      %p538 = scmp.ne.s32.totalorder %s527, %s530
      %p539 = scmp.eq.s32.totalorder %s39, 1
      %p540 = por %p538, %p539
      %p541 = scmp.ne.s32.totalorder %s530, %s531
      %p542 = scmp.eq.s32.totalorder %s39, 0
      %p543 = por %p541, %p542
      %p544 = scmp.ne.s32.totalorder %s530, %s531
      %p545 = scmp.eq.s32.totalorder %s40, 1
      %p546 = por %p544, %p545
      %p548 = scmp.ne.s32.totalorder %s531, %s547
      %p549 = scmp.eq.s32.totalorder %s40, 0
      %p550 = por %p548, %p549
      %s551 = ssub.s32 %s41, %s60
      %p552 = scmp.eq.s32.totalorder %s551, 0
      %s554 = sadd.s32 %s553, 1
      %s555 = scalar_select %p552, %s553, %s554
      %p558 = pneg %p552
      %p559 = scmp.eq.s32.totalorder %s34, 1
      %p560 = por %p558, %p559
      %p561 = scmp.ne.s32.totalorder %s553, %s556
      %p562 = scmp.eq.s32.totalorder %s34, 0
      %p563 = por %p561, %p562
      %p564 = scmp.ne.s32.totalorder %s553, %s556
      %p565 = scmp.eq.s32.totalorder %s39, 1
      %p566 = por %p564, %p565
      %p567 = scmp.ne.s32.totalorder %s556, %s557
      %p568 = scmp.eq.s32.totalorder %s39, 0
      %p569 = por %p567, %p568
      %p570 = scmp.ne.s32.totalorder %s556, %s557
      %p571 = scmp.eq.s32.totalorder %s40, 1
      %p572 = por %p570, %p571
      %p574 = scmp.ne.s32.totalorder %s557, %s573
      %p575 = scmp.eq.s32.totalorder %s40, 0
      %p576 = por %p574, %p575
      %p577 = scmp.le.s32.totalorder 1, %s34
      %p578 = scmp.lt.s32.totalorder %s34, 3
      %p579 = pnand %p577, %p578
      %p580 = pneg %p579
      // Predicated region
      $region9: #{decoder_forward.3} parent=5 // pred_check
        _
      $region10: #{decoder_forward.3} parent=5 // pred_check_branch
        %582 = sbr.rel (%p579) target = $region12
      $region11: #{decoder_forward.3} parent=5 // pred_region
        %s583 = ssub.s32 %s34, 1
        // Predicated region
        $region13: #{decoder_forward.3} parent=11 // pred_check
          %p584 = pneg %p79
        $region14: #{decoder_forward.3} parent=11 // pred_check_branch
          %586 = sbr.rel (%p584) target = $region16
        $region15: #{decoder_forward.3} parent=11 // pred_region
          %s587 = smul.u32 2, %s44
          %p588 = scmp.lt.s32.totalorder %s587, 1
          %s589 = scalar_select %p588, %s587, 1
          %s590 = smul.addr %s589, 8
          %s591 = scalar_lea.vmem %s0, %s590
          %s592 = smul.u32 2, %s44
        $region16: #{decoder_forward.3} parent=11 // pred_fallthru
          _
        // Predicated region
        $region17: #{decoder_forward.3} parent=11 // pred_check
          %p593 = pneg %p105
        $region18: #{decoder_forward.3} parent=11 // pred_check_branch
          %595 = sbr.rel (%p593) target = $region20
        $region19: #{decoder_forward.3} parent=11 // pred_region
          %s596 = smul.u32 2, %s44
          %p597 = scmp.lt.s32.totalorder %s596, 1
          %s598 = scalar_select %p597, %s596, 1
          %s599 = smul.addr %s598, 8
          %s600 = scalar_lea.vmem %s1, %s599
          %s601 = smul.u32 2, %s44
        $region20: #{decoder_forward.3} parent=11 // pred_fallthru
          _
        // Predicated region
        $region21: #{decoder_forward.3} parent=11 // pred_check
          %p602 = pneg %p131
        $region22: #{decoder_forward.3} parent=11 // pred_check_branch
          %604 = sbr.rel (%p602) target = $region24
        $region23: #{decoder_forward.3} parent=11 // pred_region
          %s605 = smul.u32 2, %s44
          %p606 = scmp.lt.s32.totalorder %s605, 1
          %s607 = scalar_select %p606, %s605, 1
          %s608 = smul.addr %s607, 2
          %s609 = smul.addr %s608, 8
          %s610 = scalar_lea.vmem %s2, %s609
          %s611 = smul.u32 2, %s44
        $region24: #{decoder_forward.3} parent=11 // pred_fallthru
          _
        // Predicated region
        $region25: #{decoder_forward.3} parent=11 // pred_check
          %p612 = pneg %p157
        $region26: #{decoder_forward.3} parent=11 // pred_check_branch
          %614 = sbr.rel (%p612) target = $region28
        $region27: #{decoder_forward.3} parent=11 // pred_region
          %s615 = smul.u32 2, %s44
          %p616 = scmp.lt.s32.totalorder %s615, 1
          %s617 = scalar_select %p616, %s615, 1
          %s618 = scalar_lea.vmem %s3, %s617
          %s619 = smul.u32 2, %s44
        $region28: #{decoder_forward.3} parent=11 // pred_fallthru
          _
        // Predicated region
        $region29: #{decoder_forward.3} parent=11 // pred_check
          %p620 = pneg %p183
        $region30: #{decoder_forward.3} parent=11 // pred_check_branch
          %622 = sbr.rel (%p620) target = $region32
        $region31: #{decoder_forward.3} parent=11 // pred_region
          %s623 = smul.u32 2, %s44
          %p624 = scmp.lt.s32.totalorder %s623, 1
          %s625 = scalar_select %p624, %s623, 1
          %s626 = scalar_lea.vmem %s4, %s625
          %s627 = smul.u32 2, %s44
        $region32: #{decoder_forward.3} parent=11 // pred_fallthru
          _
        // Predicated region
        $region33: #{decoder_forward.3} parent=11 // pred_check
          %p628 = pneg %p209
        $region34: #{decoder_forward.3} parent=11 // pred_check_branch
          %630 = sbr.rel (%p628) target = $region36
        $region35: #{decoder_forward.3} parent=11 // pred_region
          %p631 = scmp.lt.s32.totalorder %s46, 0
          %s632 = scalar_select %p631, %s46, 0
          %s633 = scalar_lea.vmem %s5, %s632
        $region36: #{decoder_forward.3} parent=11 // pred_fallthru
          _
        // Predicated region
        $region37: #{decoder_forward.3} parent=11 // pred_check
          %p634 = pneg %p230
        $region38: #{decoder_forward.3} parent=11 // pred_check_branch
          %636 = sbr.rel (%p634) target = $region40
        $region39: #{decoder_forward.3} parent=11 // pred_region
          _
        $region40: #{decoder_forward.3} parent=11 // pred_fallthru
          _
        // Predicated region
        $region41: #{decoder_forward.3} parent=11 // pred_check
          %p637 = pneg %p251
        $region42: #{decoder_forward.3} parent=11 // pred_check_branch
          %639 = sbr.rel (%p637) target = $region44
        $region43: #{decoder_forward.3} parent=11 // pred_region
          _
        $region44: #{decoder_forward.3} parent=11 // pred_fallthru
          _
        // Predicated region
        $region45: #{decoder_forward.3} parent=11 // pred_check
          %p640 = pneg %p272
        $region46: #{decoder_forward.3} parent=11 // pred_check_branch
          %642 = sbr.rel (%p640) target = $region48
        $region47: #{decoder_forward.3} parent=11 // pred_region
          _
        $region48: #{decoder_forward.3} parent=11 // pred_fallthru
          _
        // Predicated region
        $region49: #{decoder_forward.3} parent=11 // pred_check
          %p643 = pneg %p293
        $region50: #{decoder_forward.3} parent=11 // pred_check_branch
          %645 = sbr.rel (%p643) target = $region52
        $region51: #{decoder_forward.3} parent=11 // pred_region
          _
        $region52: #{decoder_forward.3} parent=11 // pred_fallthru
          _
        // Predicated region
        $region53: #{decoder_forward.3} parent=11 // pred_check
          %p646 = pneg %p314
        $region54: #{decoder_forward.3} parent=11 // pred_check_branch
          %648 = sbr.rel (%p646) target = $region56
        $region55: #{decoder_forward.3} parent=11 // pred_region
          _
        $region56: #{decoder_forward.3} parent=11 // pred_fallthru
          _
        // Predicated region
        $region57: #{decoder_forward.3} parent=11 // pred_check
          %p649 = pneg %p335
        $region58: #{decoder_forward.3} parent=11 // pred_check_branch
          %651 = sbr.rel (%p649) target = $region60
        $region59: #{decoder_forward.3} parent=11 // pred_region
          _
        $region60: #{decoder_forward.3} parent=11 // pred_fallthru
          _
        // Predicated region
        $region61: #{decoder_forward.3} parent=11 // pred_check
          %p652 = pneg %p356
        $region62: #{decoder_forward.3} parent=11 // pred_check_branch
          %654 = sbr.rel (%p652) target = $region64
        $region63: #{decoder_forward.3} parent=11 // pred_region
          _
        $region64: #{decoder_forward.3} parent=11 // pred_fallthru
          _
        // Predicated region
        $region65: #{decoder_forward.3} parent=11 // pred_check
          %p655 = pneg %p377
        $region66: #{decoder_forward.3} parent=11 // pred_check_branch
          %657 = sbr.rel (%p655) target = $region68
        $region67: #{decoder_forward.3} parent=11 // pred_region
          _
        $region68: #{decoder_forward.3} parent=11 // pred_fallthru
          _
        // Predicated region
        $region69: #{decoder_forward.3} parent=11 // pred_check
          %p658 = pneg %p398
        $region70: #{decoder_forward.3} parent=11 // pred_check_branch
          %660 = sbr.rel (%p658) target = $region72
        $region71: #{decoder_forward.3} parent=11 // pred_region
          _
        $region72: #{decoder_forward.3} parent=11 // pred_fallthru
          _
        // Predicated region
        $region73: #{decoder_forward.3} parent=11 // pred_check
          %p661 = pneg %p419
        $region74: #{decoder_forward.3} parent=11 // pred_check_branch
          %663 = sbr.rel (%p661) target = $region76
        $region75: #{decoder_forward.3} parent=11 // pred_region
          _
        $region76: #{decoder_forward.3} parent=11 // pred_fallthru
          _
        // Predicated region
        $region77: #{decoder_forward.3} parent=11 // pred_check
          %p664 = pneg %p440
        $region78: #{decoder_forward.3} parent=11 // pred_check_branch
          %666 = sbr.rel (%p664) target = $region80
        $region79: #{decoder_forward.3} parent=11 // pred_region
          _
        $region80: #{decoder_forward.3} parent=11 // pred_fallthru
          _
        // Predicated region
        $region81: #{decoder_forward.3} parent=11 // pred_check
          %p667 = pneg %p461
        $region82: #{decoder_forward.3} parent=11 // pred_check_branch
          %669 = sbr.rel (%p667) target = $region84
        $region83: #{decoder_forward.3} parent=11 // pred_region
          _
        $region84: #{decoder_forward.3} parent=11 // pred_fallthru
          _
        // Predicated region
        $region85: #{decoder_forward.3} parent=11 // pred_check
          %p670 = pneg %p487
        $region86: #{decoder_forward.3} parent=11 // pred_check_branch
          %672 = sbr.rel (%p670) target = $region88
        $region87: #{decoder_forward.3} parent=11 // pred_region
          %p673 = scmp.lt.s32.totalorder %s46, 0
          %s674 = scalar_select %p673, %s46, 0
          %s675 = smul.addr %s674, 8
          %s676 = scalar_lea.vmem %s18, %s675
        $region88: #{decoder_forward.3} parent=11 // pred_fallthru
          _
        // Predicated region
        $region89: #{decoder_forward.3} parent=11 // pred_check
          %p677 = pneg %p513
        $region90: #{decoder_forward.3} parent=11 // pred_check_branch
          %679 = sbr.rel (%p677) target = $region92
        $region91: #{decoder_forward.3} parent=11 // pred_region
          %p680 = scmp.lt.s32.totalorder %s46, 0
          %s681 = scalar_select %p680, %s46, 0
          %s682 = scalar_lea.vmem %s19, %s681
        $region92: #{decoder_forward.3} parent=11 // pred_fallthru
          _
      $region12: #{decoder_forward.3} parent=5 // pred_fallthru
        _
      %p683 = scmp.lt.s32.totalorder %s34, 2
      // Predicated region
      $region93: #{decoder_forward.3} parent=5 // pred_check
        %p684 = pneg %p683
      $region94: #{decoder_forward.3} parent=5 // pred_check_branch
        %686 = sbr.rel (%p684) target = $region96
      $region95: #{decoder_forward.3} parent=5 // pred_region
        _
      $region96: #{decoder_forward.3} parent=5 // pred_fallthru
        _
      %p687 = scmp.le.s32.totalorder 1, %s34
      %p688 = scmp.lt.s32.totalorder %s34, 3
      %p689 = pnand %p687, %p688
      %p690 = pneg %p689
      // Predicated region
      $region97: #{decoder_forward.3} parent=5 // pred_check
        _
      $region98: #{decoder_forward.3} parent=5 // pred_check_branch
        %692 = sbr.rel (%p689) target = $region100
      $region99: #{decoder_forward.3} parent=5 // pred_region
        %s693 = ssub.s32 %s34, 1
        %s694 = smul.u32 2, %s44
        %p695 = scmp.lt.s32.totalorder %s694, 1
        %s696 = scalar_select %p695, %s694, 1
        %s697 = smul.addr %s696, 8
        %s698 = scalar_lea.vmem %s0, %s697
        %p699 = pneg %p79
        %p700 = pneg %p76
        %s701 = smul.u32 2, %s44
        %p702 = scmp.lt.s32.totalorder %s701, 1
        %s703 = scalar_select %p702, %s701, 1
        %s704 = smul.addr %s703, 8
        %s705 = scalar_lea.vmem %s1, %s704
        %p706 = pneg %p105
        %p707 = pneg %p102
        %s708 = smul.u32 2, %s44
        %p709 = scmp.lt.s32.totalorder %s708, 1
        %s710 = scalar_select %p709, %s708, 1
        %s711 = smul.addr %s710, 2
        %s712 = smul.addr %s711, 8
        %s713 = scalar_lea.vmem %s2, %s712
        %p714 = pneg %p131
        %p715 = pneg %p128
        %s716 = smul.u32 2, %s44
        %p717 = scmp.lt.s32.totalorder %s716, 1
        %s718 = scalar_select %p717, %s716, 1
        %s719 = scalar_lea.vmem %s3, %s718
        %p720 = pneg %p157
        %p721 = pneg %p154
        %s722 = smul.u32 2, %s44
        %p723 = scmp.lt.s32.totalorder %s722, 1
        %s724 = scalar_select %p723, %s722, 1
        %s725 = scalar_lea.vmem %s4, %s724
        %p726 = pneg %p183
        %p727 = pneg %p180
        %p728 = scmp.lt.s32.totalorder %s46, 0
        %s729 = scalar_select %p728, %s46, 0
        %s730 = scalar_lea.vmem %s5, %s729
        %p731 = pneg %p209
        %p732 = pneg %p206
        %p733 = pneg %p230
        %p734 = pneg %p227
        %p735 = pneg %p251
        %p736 = pneg %p248
        %p737 = pneg %p272
        %p738 = pneg %p269
        %p739 = pneg %p293
        %p740 = pneg %p290
        %p741 = pneg %p314
        %p742 = pneg %p311
        %p743 = pneg %p335
        %p744 = pneg %p332
        %p745 = pneg %p356
        %p746 = pneg %p353
        %p747 = pneg %p377
        %p748 = pneg %p374
        %p749 = pneg %p398
        %p750 = pneg %p395
        %p751 = pneg %p419
        %p752 = pneg %p416
        %p753 = pneg %p440
        %p754 = pneg %p437
        %p755 = pneg %p461
        %p756 = pneg %p458
        %p757 = scmp.lt.s32.totalorder %s46, 0
        %s758 = scalar_select %p757, %s46, 0
        %s759 = smul.addr %s758, 8
        %s760 = scalar_lea.vmem %s18, %s759
        %p761 = pneg %p487
        %p762 = pneg %p484
        %p763 = scmp.lt.s32.totalorder %s46, 0
        %s764 = scalar_select %p763, %s46, 0
        %s765 = scalar_lea.vmem %s19, %s764
        %p766 = pneg %p513
        %p767 = pneg %p510
        %p768 = pneg %p543
        %p769 = pneg %p540
        %s770 = sand.u32 %s530, 1
        %s771 = scalar_lea.sflag [#allocation9], %s770
        %s772 = sand.u32 %s530, 1
        %s773 = smul.addr %s772, 16
        %s774 = scalar_lea.vmem [#allocation8], %s773
        %p775 = pneg %p569
        %p776 = pneg %p566
        %s777 = smul.u32 2, %s44
        %p778 = scmp.lt.s32.totalorder %s777, 1
        %s779 = scalar_select %p778, %s777, 1
        %s780 = smul.addr %s779, 8
        %s781 = scalar_lea.vmem %s0, %s780
        %s782 = smul.u32 2, %s44
        %s783 = smul.u32 2, %s44
        %p784 = scmp.lt.s32.totalorder %s783, 1
        %s785 = scalar_select %p784, %s783, 1
        %s786 = smul.addr %s785, 8
        %s787 = scalar_lea.vmem %s1, %s786
        %s788 = smul.u32 2, %s44
        %s789 = smul.u32 2, %s44
        %p790 = scmp.lt.s32.totalorder %s789, 1
        %s791 = scalar_select %p790, %s789, 1
        %s792 = smul.addr %s791, 2
        %s793 = smul.addr %s792, 8
        %s794 = scalar_lea.vmem %s2, %s793
        %s795 = smul.u32 2, %s44
        %s796 = smul.u32 2, %s44
        %p797 = scmp.lt.s32.totalorder %s796, 1
        %s798 = scalar_select %p797, %s796, 1
        %s799 = scalar_lea.vmem %s3, %s798
        %s800 = smul.u32 2, %s44
        %s801 = smul.u32 2, %s44
        %p802 = scmp.lt.s32.totalorder %s801, 1
        %s803 = scalar_select %p802, %s801, 1
        %s804 = scalar_lea.vmem %s4, %s803
        %s805 = smul.u32 2, %s44
        %p806 = scmp.lt.s32.totalorder %s46, 0
        %s807 = scalar_select %p806, %s46, 0
        %s808 = scalar_lea.vmem %s5, %s807
        %p809 = scmp.lt.s32.totalorder %s46, 0
        %s810 = scalar_select %p809, %s46, 0
        %s811 = smul.addr %s810, 8
        %s812 = scalar_lea.vmem %s18, %s811
        %p813 = scmp.lt.s32.totalorder %s46, 0
        %s814 = scalar_select %p813, %s46, 0
        %s815 = scalar_lea.vmem %s19, %s814
        %s816 = smul.u32 %s45, %s46
        %s817 = smul.u32 2, %s44
        %s818 = smul.u32 2, %s44
        %p819 = scmp.eq.s32.totalorder %s45, 0
        %p820 = scmp.eq.s32.totalorder %s46, 0
        %p821 = pnand %p819, %p820
        %p822 = pneg %p821
        // Predicated region
        $region101: #{decoder_forward.3} parent=99 // pred_check
          _
        $region102: #{decoder_forward.3} parent=99 // pred_check_branch
          %824 = sbr.rel (%p821) target = $region104
        $region103: #{decoder_forward.3} parent=99 // pred_region
          %v825 = vld [vmem:[%s781] sm:$0xff]
          %v826 = vld [vmem:[%s781 + $0x8] sm:$0xff]
          %v827 = vld [vmem:[%s787] sm:$0xff]
          %v828 = vld [vmem:[%s787 + $0x8] sm:$0xff]
          %v829 = vld [vmem:[%s6] sm:$0xff]
          %v830 = vld [vmem:[%s6 + $0x8] sm:$0xff]
          %v831 = vld [vmem:[%s6 + $0x10] sm:$0xff]
          %v832 = vld [vmem:[%s6 + $0x18] sm:$0xff]
          %vm833 = vcmask 261120
          %v835 = vsel %vm833, %v827, 0
          %v838 = vsel %vm833, %v828, 0
          %840 = vmatpush.msra.mxu0 0.0
          %841 = vmatpush.msra.mxu0 0.0
          %842 = vmatpush.msra.mxu0 0.0
          %843 = vmatpush.msra.mxu0 0.0
          %844 = vmatpush.msra.mxu0 0.0
          %845 = vmatpush.msra.mxu0 0.0
          %846 = vmatpush.msra.mxu0 0.0
          %847 = vmatpush.msra.mxu0 0.0
          %848 = vmatpush.msra.mxu0 0.0
          %849 = vmatpush.msra.mxu0 0.0
          %850 = vmatpush.msra.mxu0 0.0
          %851 = vmatpush.msra.mxu0 0.0
          %852 = vmatpush.msra.mxu0 %v832
          %853 = vmatpush.msra.mxu0 %v831
          %854 = vmatpush.msra.mxu0 %v830
          %855 = vmatpush.msra.mxu0 %v829
          %856 = vmatmul.f32.gmra.mxu0 %v835
          %v857 = vpop.f32.mrf.mxu0
          %v858 = vadd.f32 0.0, %v857
          %859 = vmatmul.f32.gmra.mxu0 %v838
          %v860 = vpop.f32.mrf.mxu0
          %v861 = vadd.f32 0.0, %v860
          %862 = vdwg.mxu0
          %v864 = vsel %vm833, %v825, 0
          %v867 = vsel %vm833, %v858, 0
          %869 = vmatpush.xpose.msra.mxu0 0.0
          %870 = vmatpush.xpose.msra.mxu0 0.0
          %871 = vmatpush.xpose.msra.mxu0 0.0
          %872 = vmatpush.xpose.msra.mxu0 0.0
          %873 = vmatpush.xpose.msra.mxu0 0.0
          %874 = vmatpush.xpose.msra.mxu0 0.0
          %875 = vmatpush.xpose.msra.mxu0 0.0
          %876 = vmatpush.xpose.msra.mxu0 0.0
          %877 = vmatpush.xpose.msra.mxu0 0.0
          %878 = vmatpush.xpose.msra.mxu0 0.0
          %879 = vmatpush.xpose.msra.mxu0 0.0
          %880 = vmatpush.xpose.msra.mxu0 0.0
          %881 = vmatpush.xpose.msra.mxu0 0.0
          %882 = vmatpush.xpose.msra.mxu0 0.0
          %883 = vmatpush.xpose.msra.mxu0 0.0
          %884 = vmatpush.xpose.msra.mxu0 %v867
          %885 = vmatmul.f32.gmra.mxu0 %v864
          %v886 = vpop.f32.mrf.mxu0
          %v887 = vadd.f32 0.0, %v886
          %888 = vdwg.mxu0
          %v890 = vsel %vm833, %v826, 0
          %v893 = vsel %vm833, %v861, 0
          %895 = vmatpush.xpose.msra.mxu0 0.0
          %896 = vmatpush.xpose.msra.mxu0 0.0
          %897 = vmatpush.xpose.msra.mxu0 0.0
          %898 = vmatpush.xpose.msra.mxu0 0.0
          %899 = vmatpush.xpose.msra.mxu0 0.0
          %900 = vmatpush.xpose.msra.mxu0 0.0
          %901 = vmatpush.xpose.msra.mxu0 0.0
          %902 = vmatpush.xpose.msra.mxu0 0.0
          %903 = vmatpush.xpose.msra.mxu0 0.0
          %904 = vmatpush.xpose.msra.mxu0 0.0
          %905 = vmatpush.xpose.msra.mxu0 0.0
          %906 = vmatpush.xpose.msra.mxu0 0.0
          %907 = vmatpush.xpose.msra.mxu0 0.0
          %908 = vmatpush.xpose.msra.mxu0 0.0
          %909 = vmatpush.xpose.msra.mxu0 0.0
          %910 = vmatpush.xpose.msra.mxu0 %v893
          %911 = vmatmul.f32.gmra.mxu0 %v890
          %v912 = vpop.f32.mrf.mxu0
          %v913 = vadd.f32 0.0, %v912
          %914 = vdwg.mxu0
          %vm915 = vcmask 64512
          %v916 = vsel %vm915, %v887, -inf
          %917 = vmax.xlane.f32.xlu0 %v916
          %v918 = vpop.xlane.xlu0 %917
          %v919 = vsel %vm915, %v913, -inf
          %920 = vmax.xlane.f32.xlu0 %v919
          %v921 = vpop.xlane.xlu0 %920
          %v922 = vsub.f32 %v887, %v918
          %v923 = vsub.f32 %v913, %v921
          %v924 = vmul.f32 %v922, 1.442695
          %v925 = vpow.pop %v924
          %v926 = vmul.f32 %v923, 1.442695
          %v927 = vpow.pop %v926
          %v928 = vsel %vm915, %v925, 0.0
          %929 = vadd.xlane.f32.xlu0 %v928
          %v930 = vpop.xlane.xlu0 %929
          %v931 = vsel %vm915, %v927, 0.0
          %932 = vadd.xlane.f32.xlu0 %v931
          %v933 = vpop.xlane.xlu0 %932
          %v934 = vrcp.pop %v930
          %v935 = vrcp.pop %v933
          %v936 = vmul.f32 %v925, %v934
          %v937 = vmul.f32 %v927, %v935
          %938 = vst.msk [vmem:[#allocation10] sm:$0xff] %vm915, %v936
          %939 = vst.msk [vmem:[#allocation10 + $0x8] sm:$0xff] %vm915, %v937
          %v941 = vsel %vm915, %v936, 0
          %943 = vmatpush.msra.mxu0 0.0
          %944 = vmatpush.msra.mxu0 0.0
          %945 = vmatpush.msra.mxu0 0.0
          %946 = vmatpush.msra.mxu0 0.0
          %947 = vmatpush.msra.mxu0 0.0
          %948 = vmatpush.msra.mxu0 0.0
          %949 = vmatpush.msra.mxu0 0.0
          %950 = vmatpush.msra.mxu0 0.0
          %951 = vmatpush.msra.mxu0 0.0
          %952 = vmatpush.msra.mxu0 0.0
          %953 = vmatpush.msra.mxu0 0.0
          %954 = vmatpush.msra.mxu0 0.0
          %955 = vmatpush.msra.mxu0 0.0
          %956 = vmatpush.msra.mxu0 0.0
          %957 = vmatpush.msra.mxu0 0.0
          %958 = vmatpush.msra.mxu0 %v827
          %959 = vmatmul.f32.gmra.mxu0 %v941
          %v960 = vpop.f32.mrf.mxu0
          %v961 = vadd.f32 0.0, %v960
          %962 = vdwg.mxu0
          %v964 = vsel %vm915, %v937, 0
          %966 = vmatpush.msra.mxu0 0.0
          %967 = vmatpush.msra.mxu0 0.0
          %968 = vmatpush.msra.mxu0 0.0
          %969 = vmatpush.msra.mxu0 0.0
          %970 = vmatpush.msra.mxu0 0.0
          %971 = vmatpush.msra.mxu0 0.0
          %972 = vmatpush.msra.mxu0 0.0
          %973 = vmatpush.msra.mxu0 0.0
          %974 = vmatpush.msra.mxu0 0.0
          %975 = vmatpush.msra.mxu0 0.0
          %976 = vmatpush.msra.mxu0 0.0
          %977 = vmatpush.msra.mxu0 0.0
          %978 = vmatpush.msra.mxu0 0.0
          %979 = vmatpush.msra.mxu0 0.0
          %980 = vmatpush.msra.mxu0 0.0
          %981 = vmatpush.msra.mxu0 %v828
          %982 = vmatmul.f32.gmra.mxu0 %v964
          %v983 = vpop.f32.mrf.mxu0
          %v984 = vadd.f32 0.0, %v983
          %985 = vdwg.mxu0
          %v986 = vld [vmem:[%s7] sm:$0xff]
          %v987 = vld [vmem:[%s7 + $0x8] sm:$0xff]
          %v988 = vld [vmem:[%s7 + $0x10] sm:$0xff]
          %v989 = vld [vmem:[%s7 + $0x18] sm:$0xff]
          %v990 = vld [vmem:[%s8] sm:$0xff]
          %v991 = vld [vmem:[%s8 + $0x8] sm:$0xff]
          %v992 = vld [vmem:[%s8 + $0x10] sm:$0xff]
          %v993 = vld [vmem:[%s8 + $0x18] sm:$0xff]
          %994 = vmatpush.msra.mxu0 0.0
          %995 = vmatpush.msra.mxu0 0.0
          %996 = vmatpush.msra.mxu0 0.0
          %997 = vmatpush.msra.mxu0 0.0
          %998 = vmatpush.msra.mxu0 0.0
          %999 = vmatpush.msra.mxu0 0.0
          %1000 = vmatpush.msra.mxu0 0.0
          %1001 = vmatpush.msra.mxu0 0.0
          %1002 = vmatpush.msra.mxu0 0.0
          %1003 = vmatpush.msra.mxu0 0.0
          %1004 = vmatpush.msra.mxu0 0.0
          %1005 = vmatpush.msra.mxu0 0.0
          %1006 = vmatpush.msra.mxu0 %v993
          %1007 = vmatpush.msra.mxu0 %v992
          %1008 = vmatpush.msra.mxu0 %v991
          %1009 = vmatpush.msra.mxu0 %v990
          %1010 = vmatmul.f32.gmra.mxu0 %v864
          %v1011 = vpop.f32.mrf.mxu0
          %v1012 = vadd.f32 0.0, %v1011
          %1013 = vmatmul.f32.gmra.mxu0 %v890
          %v1014 = vpop.f32.mrf.mxu0
          %v1015 = vadd.f32 0.0, %v1014
          %1016 = vdwg.mxu0
          %v1018 = vsel %vm833, %v961, 0
          %v1021 = vsel %vm833, %v984, 0
          %1023 = vmatpush.msra.mxu0 0.0
          %1024 = vmatpush.msra.mxu0 0.0
          %1025 = vmatpush.msra.mxu0 0.0
          %1026 = vmatpush.msra.mxu0 0.0
          %1027 = vmatpush.msra.mxu0 0.0
          %1028 = vmatpush.msra.mxu0 0.0
          %1029 = vmatpush.msra.mxu0 0.0
          %1030 = vmatpush.msra.mxu0 0.0
          %1031 = vmatpush.msra.mxu0 0.0
          %1032 = vmatpush.msra.mxu0 0.0
          %1033 = vmatpush.msra.mxu0 0.0
          %1034 = vmatpush.msra.mxu0 0.0
          %1035 = vmatpush.msra.mxu0 %v989
          %1036 = vmatpush.msra.mxu0 %v988
          %1037 = vmatpush.msra.mxu0 %v987
          %1038 = vmatpush.msra.mxu0 %v986
          %1039 = vmatmul.f32.gmra.mxu0 %v1018
          %v1040 = vpop.f32.mrf.mxu0
          %v1041 = vadd.f32 %v1012, %v1040
          %1042 = vmatmul.f32.gmra.mxu0 %v1021
          %v1043 = vpop.f32.mrf.mxu0
          %v1044 = vadd.f32 %v1015, %v1043
          %1045 = vdwg.mxu0
          %v1046 = vld [vmem:[%s9] sm:$0x1]
          %v1048 = vperm.slane %v1046, 0
          %v1050 = vadd.f32 %v1041, %v1048
          %v1051 = vadd.f32 %v1044, %v1048
          %v1052 = vtanh.pop %v1050
          %v1053 = vtanh.pop %v1051
          %1054 = vst.msk [vmem:[#allocation2] sm:$0xff] %vm833, %v1052
          %1055 = vst.msk [vmem:[#allocation2 + $0x8] sm:$0xff] %vm833, %v1053
          %v1056 = vld [vmem:[%s794] sm:$0xff]
          %v1057 = vld [vmem:[%s794 + $0x8] sm:$0x1]
          %v1058 = vld [vmem:[%s794 + $0x10] sm:$0xff]
          %v1059 = vld [vmem:[%s794 + $0x18] sm:$0x1]
          %v1064 = vrot.slane %v1056, 1
          %v1065 = vrot.slane %v1056, 2
          %v1066 = vrot.slane %v1056, 3
          %v1067 = vrot.slane %v1056, 4
          %v1068 = vrot.slane %v1056, 5
          %v1069 = vrot.slane %v1056, 6
          %v1070 = vrot.slane %v1056, 7
          %v1071 = vrot.slane %v1058, 1
          %v1072 = vrot.slane %v1058, 2
          %v1073 = vrot.slane %v1058, 3
          %v1074 = vrot.slane %v1058, 4
          %v1075 = vrot.slane %v1058, 5
          %v1076 = vrot.slane %v1058, 6
          %v1077 = vrot.slane %v1058, 7
          %v1078 = vld [vmem:[%s10] sm:$0xff]
          %v1079 = vld [vmem:[%s10 + $0x8] sm:$0xff]
          %1080 = vst [vmem:[#allocation1] ss:$9 sm:$0xff] %v1056
          %s1081 = scalar_lea.vmem [#allocation1], 1
          %1082 = vst [vmem:[%s1081] ss:$9 sm:$0xff] %v1064
          %s1083 = scalar_lea.vmem [#allocation1], 2
          %1084 = vst [vmem:[%s1083] ss:$9 sm:$0xff] %v1065
          %s1085 = scalar_lea.vmem [#allocation1], 3
          %1086 = vst [vmem:[%s1085] ss:$9 sm:$0xff] %v1066
          %s1087 = scalar_lea.vmem [#allocation1], 4
          %1088 = vst [vmem:[%s1087] ss:$9 sm:$0xff] %v1067
          %s1089 = scalar_lea.vmem [#allocation1], 5
          %1090 = vst [vmem:[%s1089] ss:$9 sm:$0xff] %v1068
          %s1091 = scalar_lea.vmem [#allocation1], 6
          %1092 = vst [vmem:[%s1091] ss:$9 sm:$0xff] %v1069
          %s1093 = scalar_lea.vmem [#allocation1], 7
          %1094 = vst [vmem:[%s1093] ss:$9 sm:$0xff] %v1070
          %v1095 = vld [vmem:[#allocation1] sm:$0xff]
          %1096 = vst [vmem:[#allocation1] ss:$9 sm:$0xff] %v1057
          %1097 = vst [vmem:[%s1081] ss:$9 sm:$0xff] %v1058
          %1098 = vst [vmem:[%s1083] ss:$9 sm:$0xff] %v1071
          %1099 = vst [vmem:[%s1085] ss:$9 sm:$0xff] %v1072
          %1100 = vst [vmem:[%s1087] ss:$9 sm:$0xff] %v1073
          %1101 = vst [vmem:[%s1089] ss:$9 sm:$0xff] %v1074
          %1102 = vst [vmem:[%s1091] ss:$9 sm:$0xff] %v1075
          %1103 = vst [vmem:[%s1093] ss:$9 sm:$0xff] %v1076
          %v1104 = vld [vmem:[#allocation1] sm:$0xff]
          %1105 = vst [vmem:[#allocation1] ss:$9 sm:$0xff] %v1077
          %1106 = vst [vmem:[%s1081] ss:$9 sm:$0xff] %v1059
          %v1107 = vld [vmem:[#allocation1] sm:$0xff]
          %vm1108 = vcmask 130048
          %v1109 = vsel %vm1108, %v1095, 0
          %v1111 = vsel %vm1108, %v1104, 0
          %v1113 = vsel %vm1108, %v1107, 0
          %1115 = vmatpush.msra.mxu0 0.0
          %1116 = vmatpush.msra.mxu0 0.0
          %1117 = vmatpush.msra.mxu0 0.0
          %1118 = vmatpush.msra.mxu0 0.0
          %1119 = vmatpush.msra.mxu0 0.0
          %1120 = vmatpush.msra.mxu0 0.0
          %1121 = vmatpush.msra.mxu0 0.0
          %1122 = vmatpush.msra.mxu0 0.0
          %1123 = vmatpush.msra.mxu0 0.0
          %1124 = vmatpush.msra.mxu0 0.0
          %1125 = vmatpush.msra.mxu0 0.0
          %1126 = vmatpush.msra.mxu0 0.0
          %1127 = vmatpush.msra.mxu0 0.0
          %1128 = vmatpush.msra.mxu0 0.0
          %1129 = vmatpush.msra.mxu0 %v1079
          %1130 = vmatpush.msra.mxu0 %v1078
          %1131 = vmatmul.f32.gmra.mxu0 %v1109
          %v1132 = vpop.f32.mrf.mxu0
          %v1133 = vadd.f32 0.0, %v1132
          %1134 = vmatmul.f32.gmra.mxu0 %v1111
          %v1135 = vpop.f32.mrf.mxu0
          %v1136 = vadd.f32 0.0, %v1135
          %1137 = vmatmul.f32.gmra.mxu0 %v1113
          %v1138 = vpop.f32.mrf.mxu0
          %v1139 = vadd.f32 0.0, %v1138
          %1140 = vdwg.mxu0
          %v1144 = vrot.slane %v1133, 1
          %v1145 = vrot.slane %v1133, 2
          %v1146 = vrot.slane %v1133, 3
          %v1147 = vrot.slane %v1133, 4
          %v1148 = vrot.slane %v1133, 5
          %v1149 = vrot.slane %v1133, 6
          %v1150 = vrot.slane %v1133, 7
          %v1151 = vrot.slane %v1136, 1
          %v1152 = vrot.slane %v1136, 2
          %v1153 = vrot.slane %v1136, 3
          %v1154 = vrot.slane %v1136, 4
          %v1155 = vrot.slane %v1136, 5
          %v1156 = vrot.slane %v1136, 6
          %v1157 = vrot.slane %v1136, 7
          %v1158 = vrot.slane %v1139, 1
          %1159 = vst [vmem:[#allocation1] ss:$9 sm:$0xff] %v1133
          %s1160 = scalar_lea.vmem [#allocation1], 1
          %1161 = vst [vmem:[%s1160] ss:$9 sm:$0xff] %v1144
          %s1162 = scalar_lea.vmem [#allocation1], 2
          %1163 = vst [vmem:[%s1162] ss:$9 sm:$0xff] %v1145
          %s1164 = scalar_lea.vmem [#allocation1], 3
          %1165 = vst [vmem:[%s1164] ss:$9 sm:$0xff] %v1146
          %s1166 = scalar_lea.vmem [#allocation1], 4
          %1167 = vst [vmem:[%s1166] ss:$9 sm:$0xff] %v1147
          %s1168 = scalar_lea.vmem [#allocation1], 5
          %1169 = vst [vmem:[%s1168] ss:$9 sm:$0xff] %v1148
          %s1170 = scalar_lea.vmem [#allocation1], 6
          %1171 = vst [vmem:[%s1170] ss:$9 sm:$0xff] %v1149
          %s1172 = scalar_lea.vmem [#allocation1], 7
          %1173 = vst [vmem:[%s1172] ss:$9 sm:$0xff] %v1150
          %v1174 = vld [vmem:[#allocation1] sm:$0xff]
          %1175 = vst [vmem:[#allocation1] ss:$9 sm:$0xff] %v1136
          %v1176 = vld [vmem:[#allocation1] sm:$0xff]
          %v1177 = vsel %vm833, %v1174, 0
          %v1179 = vsel %vm833, %v1176, 0
          %1181 = vmatpush.xpose.msra.mxu0 0.0
          %1182 = vmatpush.xpose.msra.mxu0 0.0
          %1183 = vmatpush.xpose.msra.mxu0 0.0
          %1184 = vmatpush.xpose.msra.mxu0 0.0
          %1185 = vmatpush.xpose.msra.mxu0 0.0
          %1186 = vmatpush.xpose.msra.mxu0 0.0
          %1187 = vmatpush.xpose.msra.mxu0 0.0
          %1188 = vmatpush.xpose.msra.mxu0 0.0
          %1189 = vmatpush.xpose.msra.mxu0 0.0
          %1190 = vmatpush.xpose.msra.mxu0 0.0
          %1191 = vmatpush.xpose.msra.mxu0 0.0
          %1192 = vmatpush.xpose.msra.mxu0 0.0
          %1193 = vmatpush.xpose.msra.mxu0 0.0
          %1194 = vmatpush.xpose.msra.mxu0 0.0
          %1195 = vmatpush.xpose.msra.mxu0 %v1179
          %1196 = vmatpush.xpose.msra.mxu0 %v1177
          %1197 = vmatmul.f32.gmra.mxu0 %v864
          %v1198 = vpop.f32.mrf.mxu0
          %v1199 = vadd.f32 0.0, %v1198
          %1200 = vdwg.mxu0
          %1201 = vst [vmem:[#allocation1] ss:$9 sm:$0xff] %v1151
          %s1202 = scalar_lea.vmem [#allocation1], 1
          %1203 = vst [vmem:[%s1202] ss:$9 sm:$0xff] %v1152
          %s1204 = scalar_lea.vmem [#allocation1], 2
          %1205 = vst [vmem:[%s1204] ss:$9 sm:$0xff] %v1153
          %s1206 = scalar_lea.vmem [#allocation1], 3
          %1207 = vst [vmem:[%s1206] ss:$9 sm:$0xff] %v1154
          %s1208 = scalar_lea.vmem [#allocation1], 4
          %1209 = vst [vmem:[%s1208] ss:$9 sm:$0xff] %v1155
          %s1210 = scalar_lea.vmem [#allocation1], 5
          %1211 = vst [vmem:[%s1210] ss:$9 sm:$0xff] %v1156
          %s1212 = scalar_lea.vmem [#allocation1], 6
          %1213 = vst [vmem:[%s1212] ss:$9 sm:$0xff] %v1157
          %s1214 = scalar_lea.vmem [#allocation1], 7
          %1215 = vst [vmem:[%s1214] ss:$9 sm:$0xff] %v1139
          %v1216 = vld [vmem:[#allocation1] sm:$0xff]
          %1217 = vst [vmem:[#allocation1] ss:$9 sm:$0xff] %v1158
          %v1218 = vld [vmem:[#allocation1] sm:$0xff]
          %v1219 = vsel %vm833, %v1216, 0
          %v1221 = vsel %vm833, %v1218, 0
          %1223 = vmatpush.xpose.msra.mxu0 0.0
          %1224 = vmatpush.xpose.msra.mxu0 0.0
          %1225 = vmatpush.xpose.msra.mxu0 0.0
          %1226 = vmatpush.xpose.msra.mxu0 0.0
          %1227 = vmatpush.xpose.msra.mxu0 0.0
          %1228 = vmatpush.xpose.msra.mxu0 0.0
          %1229 = vmatpush.xpose.msra.mxu0 0.0
          %1230 = vmatpush.xpose.msra.mxu0 0.0
          %1231 = vmatpush.xpose.msra.mxu0 0.0
          %1232 = vmatpush.xpose.msra.mxu0 0.0
          %1233 = vmatpush.xpose.msra.mxu0 0.0
          %1234 = vmatpush.xpose.msra.mxu0 0.0
          %1235 = vmatpush.xpose.msra.mxu0 0.0
          %1236 = vmatpush.xpose.msra.mxu0 0.0
          %1237 = vmatpush.xpose.msra.mxu0 %v1221
          %1238 = vmatpush.xpose.msra.mxu0 %v1219
          %1239 = vmatmul.f32.gmra.mxu0 %v890
          %v1240 = vpop.f32.mrf.mxu0
          %v1241 = vadd.f32 0.0, %v1240
          %1242 = vdwg.mxu0
          %vm1243 = vcmask 72704
          %v1244 = vsel %vm1243, %v1199, -inf
          %1245 = vmax.xlane.f32.xlu0 %v1244
          %v1246 = vpop.xlane.xlu0 %1245
          %v1247 = vsel %vm1243, %v1241, -inf
          %1248 = vmax.xlane.f32.xlu0 %v1247
          %v1249 = vpop.xlane.xlu0 %1248
          %v1250 = vsub.f32 %v1199, %v1246
          %v1251 = vsub.f32 %v1241, %v1249
          %v1252 = vmul.f32 %v1250, 1.442695
          %v1253 = vpow.pop %v1252
          %v1254 = vmul.f32 %v1251, 1.442695
          %v1255 = vpow.pop %v1254
          %v1256 = vsel %vm1243, %v1253, 0.0
          %1257 = vadd.xlane.f32.xlu0 %v1256
          %v1258 = vpop.xlane.xlu0 %1257
          %v1259 = vsel %vm1243, %v1255, 0.0
          %1260 = vadd.xlane.f32.xlu0 %v1259
          %v1261 = vpop.xlane.xlu0 %1260
          %v1262 = vrcp.pop %v1258
          %v1263 = vrcp.pop %v1261
          %v1264 = vmul.f32 %v1253, %v1262
          %v1265 = vmul.f32 %v1255, %v1263
          %v1267 = vsel %vm1243, %v1264, 0
          %vm1269 = vcmask 1040384
          %v1270 = vsel %vm1269, %v1057, 0
          %1272 = vmatpush.msra.mxu0 0.0
          %1273 = vmatpush.msra.mxu0 0.0
          %1274 = vmatpush.msra.mxu0 0.0
          %1275 = vmatpush.msra.mxu0 0.0
          %1276 = vmatpush.msra.mxu0 0.0
          %1277 = vmatpush.msra.mxu0 0.0
          %1278 = vmatpush.msra.mxu0 0.0
          %1279 = vmatpush.msra.mxu0 0.0
          %1280 = vmatpush.msra.mxu0 0.0
          %1281 = vmatpush.msra.mxu0 0.0
          %1282 = vmatpush.msra.mxu0 0.0
          %1283 = vmatpush.msra.mxu0 0.0
          %1284 = vmatpush.msra.mxu0 0.0
          %1285 = vmatpush.msra.mxu0 0.0
          %1286 = vmatpush.msra.mxu0 %v1270
          %1287 = vmatpush.msra.mxu0 %v1056
          %1288 = vmatmul.f32.gmra.mxu0 %v1267
          %v1289 = vpop.f32.mrf.mxu0
          %v1290 = vadd.f32 0.0, %v1289
          %1291 = vdwg.mxu0
          %v1293 = vsel %vm1243, %v1265, 0
          %v1295 = vsel %vm1269, %v1059, 0
          %1297 = vmatpush.msra.mxu0 0.0
          %1298 = vmatpush.msra.mxu0 0.0
          %1299 = vmatpush.msra.mxu0 0.0
          %1300 = vmatpush.msra.mxu0 0.0
          %1301 = vmatpush.msra.mxu0 0.0
          %1302 = vmatpush.msra.mxu0 0.0
          %1303 = vmatpush.msra.mxu0 0.0
          %1304 = vmatpush.msra.mxu0 0.0
          %1305 = vmatpush.msra.mxu0 0.0
          %1306 = vmatpush.msra.mxu0 0.0
          %1307 = vmatpush.msra.mxu0 0.0
          %1308 = vmatpush.msra.mxu0 0.0
          %1309 = vmatpush.msra.mxu0 0.0
          %1310 = vmatpush.msra.mxu0 0.0
          %1311 = vmatpush.msra.mxu0 %v1295
          %1312 = vmatpush.msra.mxu0 %v1058
          %1313 = vmatmul.f32.gmra.mxu0 %v1293
          %v1314 = vpop.f32.mrf.mxu0
          %v1315 = vadd.f32 0.0, %v1314
          %1316 = vdwg.mxu0
          %v1317 = vld [vmem:[%s11] sm:$0xff]
          %v1318 = vld [vmem:[%s11 + $0x8] sm:$0xff]
          %v1319 = vld [vmem:[%s12] sm:$0xff]
          %v1320 = vld [vmem:[%s12 + $0x8] sm:$0xff]
          %v1321 = vld [vmem:[%s12 + $0x10] sm:$0xff]
          %v1322 = vld [vmem:[%s12 + $0x18] sm:$0xff]
          %1323 = vmatpush.msra.mxu0 0.0
          %1324 = vmatpush.msra.mxu0 0.0
          %1325 = vmatpush.msra.mxu0 0.0
          %1326 = vmatpush.msra.mxu0 0.0
          %1327 = vmatpush.msra.mxu0 0.0
          %1328 = vmatpush.msra.mxu0 0.0
          %1329 = vmatpush.msra.mxu0 0.0
          %1330 = vmatpush.msra.mxu0 0.0
          %1331 = vmatpush.msra.mxu0 0.0
          %1332 = vmatpush.msra.mxu0 0.0
          %1333 = vmatpush.msra.mxu0 0.0
          %1334 = vmatpush.msra.mxu0 0.0
          %1335 = vmatpush.msra.mxu0 %v1322
          %1336 = vmatpush.msra.mxu0 %v1321
          %1337 = vmatpush.msra.mxu0 %v1320
          %1338 = vmatpush.msra.mxu0 %v1319
          %1339 = vmatmul.f32.gmra.mxu0 %v864
          %v1340 = vpop.f32.mrf.mxu0
          %v1341 = vadd.f32 0.0, %v1340
          %1342 = vmatmul.f32.gmra.mxu0 %v890
          %v1343 = vpop.f32.mrf.mxu0
          %v1344 = vadd.f32 0.0, %v1343
          %1345 = vdwg.mxu0
          %v1347 = vsel %vm1108, %v1290, 0
          %v1350 = vsel %vm1108, %v1315, 0
          %1352 = vmatpush.msra.mxu0 0.0
          %1353 = vmatpush.msra.mxu0 0.0
          %1354 = vmatpush.msra.mxu0 0.0
          %1355 = vmatpush.msra.mxu0 0.0
          %1356 = vmatpush.msra.mxu0 0.0
          %1357 = vmatpush.msra.mxu0 0.0
          %1358 = vmatpush.msra.mxu0 0.0
          %1359 = vmatpush.msra.mxu0 0.0
          %1360 = vmatpush.msra.mxu0 0.0
          %1361 = vmatpush.msra.mxu0 0.0
          %1362 = vmatpush.msra.mxu0 0.0
          %1363 = vmatpush.msra.mxu0 0.0
          %1364 = vmatpush.msra.mxu0 0.0
          %1365 = vmatpush.msra.mxu0 0.0
          %1366 = vmatpush.msra.mxu0 %v1318
          %1367 = vmatpush.msra.mxu0 %v1317
          %1368 = vmatmul.f32.gmra.mxu0 %v1347
          %v1369 = vpop.f32.mrf.mxu0
          %v1370 = vadd.f32 %v1341, %v1369
          %1371 = vmatmul.f32.gmra.mxu0 %v1350
          %v1372 = vpop.f32.mrf.mxu0
          %v1373 = vadd.f32 %v1344, %v1372
          %1374 = vdwg.mxu0
          %v1375 = vld [vmem:[%s13] sm:$0x1]
          %v1377 = vperm.slane %v1375, 0
          %v1379 = vadd.f32 %v1370, %v1377
          %v1380 = vadd.f32 %v1373, %v1377
          %v1381 = vtanh.pop %v1379
          %v1382 = vtanh.pop %v1380
          %v1383 = vld [vmem:[%s14] sm:$0xff]
          %v1384 = vld [vmem:[%s14 + $0x8] sm:$0xff]
          %v1385 = vld [vmem:[%s14 + $0x10] sm:$0xff]
          %v1386 = vld [vmem:[%s14 + $0x18] sm:$0xff]
          %v1387 = vld [vmem:[%s15] sm:$0x1]
          %v1389 = vperm.slane %v1387, 0
          %v1392 = vsel %vm833, %v1381, 0
          %v1395 = vsel %vm833, %v1382, 0
          %1397 = vmatpush.msra.mxu0 0.0
          %1398 = vmatpush.msra.mxu0 0.0
          %1399 = vmatpush.msra.mxu0 0.0
          %1400 = vmatpush.msra.mxu0 0.0
          %1401 = vmatpush.msra.mxu0 0.0
          %1402 = vmatpush.msra.mxu0 0.0
          %1403 = vmatpush.msra.mxu0 0.0
          %1404 = vmatpush.msra.mxu0 0.0
          %1405 = vmatpush.msra.mxu0 0.0
          %1406 = vmatpush.msra.mxu0 0.0
          %1407 = vmatpush.msra.mxu0 0.0
          %1408 = vmatpush.msra.mxu0 0.0
          %1409 = vmatpush.msra.mxu0 %v1386
          %1410 = vmatpush.msra.mxu0 %v1385
          %1411 = vmatpush.msra.mxu0 %v1384
          %1412 = vmatpush.msra.mxu0 %v1383
          %1413 = vmatmul.f32.gmra.mxu0 %v1392
          %v1414 = vpop.f32.mrf.mxu0
          %v1415 = vadd.f32 %v1389, %v1414
          %1416 = vmatmul.f32.gmra.mxu0 %v1395
          %v1417 = vpop.f32.mrf.mxu0
          %v1418 = vadd.f32 %v1389, %v1417
          %1419 = vdwg.mxu0
          %1420 = vst.msk [vmem:[#allocation3] sm:$0xff] %vm915, %v1415
          %1421 = vst.msk [vmem:[#allocation3 + $0x8] sm:$0xff] %vm915, %v1418
          %v1422 = vld [vmem:[%s799] sm:$0x1]
          %v1423 = vld [vmem:[%s799 + $0x1] sm:$0x1]
          %v1424 = vld [vmem:[%s16] sm:$0xff]
          %v1425 = vld [vmem:[%s16 + $0x8] sm:$0xff]
          %v1426 = vld [vmem:[%s16 + $0x10] sm:$0xff]
          %v1427 = vld [vmem:[%s16 + $0x18] sm:$0xff]
          %v1428 = vld [vmem:[#allocation7] sm:$0x1]
          %v1430 = vperm.slane %v1428, 0
          %1434 = vst [vmem:[#allocation1] ss:$9 sm:$0xff] %v1422
          %s1435 = scalar_lea.vmem [#allocation1], 1
          %1436 = vst [vmem:[%s1435] ss:$9 sm:$0xff] %v1423
          %v1437 = vld [vmem:[#allocation1] sm:$0xff]
          %v1438 = vsel %vm833, %v1437, 0
          %1440 = vmatpush.msra.mxu0 0.0
          %1441 = vmatpush.msra.mxu0 0.0
          %1442 = vmatpush.msra.mxu0 0.0
          %1443 = vmatpush.msra.mxu0 0.0
          %1444 = vmatpush.msra.mxu0 0.0
          %1445 = vmatpush.msra.mxu0 0.0
          %1446 = vmatpush.msra.mxu0 0.0
          %1447 = vmatpush.msra.mxu0 0.0
          %1448 = vmatpush.msra.mxu0 0.0
          %1449 = vmatpush.msra.mxu0 0.0
          %1450 = vmatpush.msra.mxu0 0.0
          %1451 = vmatpush.msra.mxu0 0.0
          %1452 = vmatpush.msra.mxu0 %v1427
          %1453 = vmatpush.msra.mxu0 %v1426
          %1454 = vmatpush.msra.mxu0 %v1425
          %1455 = vmatpush.msra.mxu0 %v1424
          %1456 = vmatmul.f32.gmra.mxu0 %v1438
          %v1457 = vpop.f32.mrf.mxu0
          %v1458 = vadd.f32 %v1430, %v1457
          %1459 = vdwg.mxu0
          %v1460 = vmul.f32 %v1458, 0.5
          %v1461 = vtanh.pop %v1460
          %v1462 = vadd.f32 %v1461, 1.0
          %v1463 = vmul.f32 %v1462, 0.5
          %vm1464 = vcmask 1024
          %1465 = vst.msk [vmem:[#allocation4] sm:$0x3] %vm1464, %v1463
          %vm1466 = vcmask 7168
          %1467 = vst.msk [vmem:[#allocation5] sm:$0xff] %vm1466, -inf
          %1468 = vst.msk [vmem:[#allocation5 + $0x8] sm:$0xff] %vm1466, -inf
          %1469 = vst.msk [vmem:[#allocation6] sm:$0xff] %vm1466, 0.0
          %1470 = vst.msk [vmem:[#allocation6 + $0x8] sm:$0xff] %vm1466, 0.0
        $region104: #{decoder_forward.3} parent=99 // pred_fallthru
          _
        %v1471 = vld [vmem:[#allocation2] sm:$0xff]
        %v1472 = vld [vmem:[#allocation2 + $0x8] sm:$0xff]
        %v1473 = vld [vmem:[%s812] sm:$0xff]
        %v1474 = vld [vmem:[%s812 + $0x8] sm:$0xff]
        %v1475 = vld [vmem:[%s812 + $0x10] sm:$0xff]
        %v1476 = vld [vmem:[%s812 + $0x18] sm:$0xff]
        %v1477 = vld [vmem:[%s815] sm:$0x1]
        %v1479 = vperm.slane %v1477, 0
        %vm1481 = vcmask 261120
        %v1483 = vsel %vm1481, %v1471, 0
        %v1486 = vsel %vm1481, %v1472, 0
        %1488 = vmatpush.msra.mxu0 0.0
        %1489 = vmatpush.msra.mxu0 0.0
        %1490 = vmatpush.msra.mxu0 0.0
        %1491 = vmatpush.msra.mxu0 0.0
        %1492 = vmatpush.msra.mxu0 0.0
        %1493 = vmatpush.msra.mxu0 0.0
        %1494 = vmatpush.msra.mxu0 0.0
        %1495 = vmatpush.msra.mxu0 0.0
        %1496 = vmatpush.msra.mxu0 0.0
        %1497 = vmatpush.msra.mxu0 0.0
        %1498 = vmatpush.msra.mxu0 0.0
        %1499 = vmatpush.msra.mxu0 0.0
        %1500 = vmatpush.msra.mxu0 %v1476
        %1501 = vmatpush.msra.mxu0 %v1475
        %1502 = vmatpush.msra.mxu0 %v1474
        %1503 = vmatpush.msra.mxu0 %v1473
        %1504 = vmatmul.f32.gmra.mxu0 %v1483
        %v1505 = vpop.f32.mrf.mxu0
        %v1506 = vadd.f32 %v1479, %v1505
        %1507 = vmatmul.f32.gmra.mxu0 %v1486
        %v1508 = vpop.f32.mrf.mxu0
        %v1509 = vadd.f32 %v1479, %v1508
        %1510 = vdwg.mxu0
        %v1511 = vld [vmem:[%s804] sm:$0x1]
        %v1512 = vld [vmem:[%s804 + $0x1] sm:$0x1]
        %s1513 = smul.u32 %s46, 128
        %v1514 = vstv %s1513
        %v1515 = vsub.s32 %v1511, %v1514
        %v1516 = vsub.s32 %v1512, %v1514
        %v1517 = vlaneseq
        %v1518 = vand.u32 %v1517, 127
        %v1519 = vperm.slane %v1515, 0
        %v1520 = vlaneseq
        %v1521 = vshrl.u32 %v1520, 7
        %1523 = vset.pattern.permute.xlu0 %v1521
        %1524 = vperm.xlu0 %1523, %v1519
        %v1525 = vpop.permute.xlu0 %1524
        %v1526 = vperm.slane %v1516, 0
        %v1527 = vlaneseq
        %v1528 = vshrl.u32 %v1527, 7
        %1530 = vset.pattern.permute.xlu0 %v1528
        %1531 = vperm.xlu0 %1530, %v1526
        %v1532 = vpop.permute.xlu0 %1531
        %vm1533 = vcmp.eq.s32.totalorder %v1518, %v1525
        %vm1534 = vcmp.eq.s32.totalorder %v1518, %v1532
        %v1535 = vsel %vm1533, 1, 0
        %v1536 = vsel %vm1534, 1, 0
        %v1537 = vcvt.s32.f32 %v1535
        %v1538 = vcvt.s32.f32 %v1536
        %v1539 = vld [vmem:[#allocation3] sm:$0xff]
        %v1540 = vld [vmem:[#allocation3 + $0x8] sm:$0xff]
        %vm1541 = vcmask 64512
        %v1543 = vsel %vm1541, %v1539, 0
        %1545 = vmatpush.msra.mxu0 0.0
        %1546 = vmatpush.msra.mxu0 0.0
        %1547 = vmatpush.msra.mxu0 0.0
        %1548 = vmatpush.msra.mxu0 0.0
        %1549 = vmatpush.msra.mxu0 0.0
        %1550 = vmatpush.msra.mxu0 0.0
        %1551 = vmatpush.msra.mxu0 0.0
        %1552 = vmatpush.msra.mxu0 0.0
        %1553 = vmatpush.msra.mxu0 0.0
        %1554 = vmatpush.msra.mxu0 0.0
        %1555 = vmatpush.msra.mxu0 0.0
        %1556 = vmatpush.msra.mxu0 0.0
        %1557 = vmatpush.msra.mxu0 0.0
        %1558 = vmatpush.msra.mxu0 0.0
        %1559 = vmatpush.msra.mxu0 0.0
        %1560 = vmatpush.msra.mxu0 %v1537
        %1561 = vmatmul.f32.gmra.mxu0 %v1543
        %v1562 = vpop.f32.mrf.mxu0
        %v1563 = vadd.f32 0.0, %v1562
        %1564 = vdwg.mxu0
        %v1566 = vsel %vm1541, %v1540, 0
        %1568 = vmatpush.msra.mxu0 0.0
        %1569 = vmatpush.msra.mxu0 0.0
        %1570 = vmatpush.msra.mxu0 0.0
        %1571 = vmatpush.msra.mxu0 0.0
        %1572 = vmatpush.msra.mxu0 0.0
        %1573 = vmatpush.msra.mxu0 0.0
        %1574 = vmatpush.msra.mxu0 0.0
        %1575 = vmatpush.msra.mxu0 0.0
        %1576 = vmatpush.msra.mxu0 0.0
        %1577 = vmatpush.msra.mxu0 0.0
        %1578 = vmatpush.msra.mxu0 0.0
        %1579 = vmatpush.msra.mxu0 0.0
        %1580 = vmatpush.msra.mxu0 0.0
        %1581 = vmatpush.msra.mxu0 0.0
        %1582 = vmatpush.msra.mxu0 0.0
        %1583 = vmatpush.msra.mxu0 %v1538
        %1584 = vmatmul.f32.gmra.mxu0 %v1566
        %v1585 = vpop.f32.mrf.mxu0
        %v1586 = vadd.f32 0.0, %v1585
        %1587 = vdwg.mxu0
        %v1588 = vadd.f32 %v1506, %v1563
        %v1589 = vadd.f32 %v1509, %v1586
        %v1590 = vld [vmem:[%s808] sm:$0x1]
        %v1591 = vld [vmem:[#allocation4] sm:$0x3]
        %v1592 = vsub.f32 1.0, %v1591
        %v1594 = vperm.slane %v1590, 0
        %1597 = vset.pattern.permute.xlu0 0
        %1598 = vperm.xlu0 %1597, %v1592
        %v1599 = vpop.permute.xlu0 %1598
        %v1601 = vmul.f32 %v1594, %v1599
        %v1602 = vsub.f32 1.0, %v1601
        %v1604 = vrot.slane %v1602, 1
        %v1605 = vperm.slane %v1602, 0
        %v1606 = vperm.slane %v1604, 0
        %v1609 = vmul.f32 %v1588, %v1605
        %v1610 = vmul.f32 %v1589, %v1606
        // Predicated region
        $region105: #{decoder_forward.3} parent=99 // pred_check
          %p1611 = pneg %p819
        $region106: #{decoder_forward.3} parent=99 // pred_check_branch
          %1613 = sbr.rel (%p1611) target = $region108
        $region107: #{decoder_forward.3} parent=99 // pred_region
          %1614 = vmax.xlane.f32.xlu0 %v1609
          %v1615 = vpop.xlane.xlu0 %1614
          %1616 = vmax.xlane.f32.xlu0 %v1610
          %v1617 = vpop.xlane.xlu0 %1616
          %v1618 = vld [vmem:[#allocation5] sm:$0xff]
          %v1619 = vld [vmem:[#allocation5 + $0x8] sm:$0xff]
          %v1620 = vmax.f32 %v1618, %v1615
          %v1621 = vmax.f32 %v1619, %v1617
          %v1622 = vld [vmem:[#allocation6] sm:$0xff]
          %v1623 = vld [vmem:[#allocation6 + $0x8] sm:$0xff]
          %v1624 = vsub.f32 %v1618, %v1620
          %v1625 = vsub.f32 %v1619, %v1621
          %v1626 = vmul.f32 %v1624, 1.442695
          %v1627 = vpow.pop %v1626
          %v1628 = vmul.f32 %v1625, 1.442695
          %v1629 = vpow.pop %v1628
          %v1630 = vmul.f32 %v1622, %v1627
          %v1631 = vmul.f32 %v1623, %v1629
          %1633 = vset.pattern.permute.xlu0 0
          %1634 = vperm.xlu0 %1633, %v1620
          %v1635 = vpop.permute.xlu0 %1634
          %1638 = vset.pattern.permute.xlu0 0
          %1639 = vperm.xlu0 %1638, %v1621
          %v1640 = vpop.permute.xlu0 %1639
          %v1642 = vsub.f32 %v1609, %v1635
          %v1643 = vsub.f32 %v1610, %v1640
          %v1644 = vmul.f32 %v1642, 1.442695
          %v1645 = vpow.pop %v1644
          %v1646 = vmul.f32 %v1643, 1.442695
          %v1647 = vpow.pop %v1646
          %1648 = vadd.xlane.f32.xlu0 %v1645
          %v1649 = vpop.xlane.xlu0 %1648
          %1650 = vadd.xlane.f32.xlu0 %v1647
          %v1651 = vpop.xlane.xlu0 %1650
          %v1652 = vadd.f32 %v1630, %v1649
          %v1653 = vadd.f32 %v1631, %v1651
          %vm1654 = vcmask 7168
          %1655 = vst.msk [vmem:[#allocation6] sm:$0xff] %vm1654, %v1652
          %1656 = vst.msk [vmem:[#allocation6 + $0x8] sm:$0xff] %vm1654, %v1653
          %1657 = vst.msk [vmem:[#allocation5] sm:$0xff] %vm1654, %v1620
          %1658 = vst.msk [vmem:[#allocation5 + $0x8] sm:$0xff] %vm1654, %v1621
        $region108: #{decoder_forward.3} parent=99 // pred_fallthru
          _
        %p1659 = scmp.eq.s32.totalorder %s45, 1
        // Predicated region
        $region109: #{decoder_forward.3} parent=99 // pred_check
          %p1660 = pneg %p1659
        $region110: #{decoder_forward.3} parent=99 // pred_check_branch
          %1662 = sbr.rel (%p1660) target = $region112
        $region111: #{decoder_forward.3} parent=99 // pred_region
          %v1663 = vld [vmem:[#allocation5] sm:$0xff]
          %v1664 = vld [vmem:[#allocation5 + $0x8] sm:$0xff]
          %v1665 = vld [vmem:[#allocation6] sm:$0xff]
          %v1666 = vld [vmem:[#allocation6 + $0x8] sm:$0xff]
          %v1667 = vlog2.pop %v1665
          %v1668 = vmul.f32 %v1667, 0.6931472
          %v1669 = vlog2.pop %v1666
          %v1670 = vmul.f32 %v1669, 0.6931472
          %v1671 = vadd.f32 %v1663, %v1668
          %v1672 = vadd.f32 %v1664, %v1670
          %1674 = vset.pattern.permute.xlu0 0
          %1675 = vperm.xlu0 %1674, %v1671
          %v1676 = vpop.permute.xlu0 %1675
          %1679 = vset.pattern.permute.xlu0 0
          %1680 = vperm.xlu0 %1679, %v1672
          %v1681 = vpop.permute.xlu0 %1680
          %v1683 = vsub.f32 %v1609, %v1676
          %v1684 = vsub.f32 %v1610, %v1681
          %1685 = vst [vmem:[%s774] sm:$0xff] %v1683
          %1686 = vst [vmem:[%s774 + $0x8] sm:$0xff] %v1684
        $region112: #{decoder_forward.3} parent=99 // pred_fallthru
          _
        %s1687 = sand.u32 %s530, 1
        %s1688 = scalar_lea.sflag [#allocation9], %s1687
        %s1689 = sand.u32 %s530, 1
        %s1690 = smul.addr %s1689, 16
        %s1691 = scalar_lea.vmem [#allocation8], %s1690
        // Predicated region
        $region113: #{decoder_forward.3} parent=99 // pred_check
          %p1692 = pneg %p540
        $region114: #{decoder_forward.3} parent=99 // pred_check_branch
          %1694 = sbr.rel (%p1692) target = $region116
        $region115: #{decoder_forward.3} parent=99 // pred_region
          %s1695 = smul.u32 %s45, %s46
          %s1696 = smul.u32 2, %s44
          %1698 = vsyncadd %s1688, 0
          %s1699 = sadd.s32 %s1695, %s1696
          %s1700 = smul.addr %s1699, 8
          %s1701 = scalar_lea.hbm %s20, %s1700
          %s1702 = sshll.u32 %s1691, 4
          %s1703 = int_to_ptr.vmem [resolvable:$true] %s1702
          %s1704 = sshll.u32 %s1701, 4
          %s1705 = int_to_ptr.hbm [resolvable:$true] %s1704
          %1710 = dma.vmem_to_hbm [thread:$0]  %s1703, 256, %s1705, %s1688, 128, 128, 8
        $region116: #{decoder_forward.3} parent=99 // pred_fallthru
          _
        // Predicated region
        $region117: #{decoder_forward.3} parent=99 // pred_check
          %p1711 = pneg %p566
        $region118: #{decoder_forward.3} parent=99 // pred_check_branch
          %1713 = sbr.rel (%p1711) target = $region120
        $region119: #{decoder_forward.3} parent=99 // pred_region
          %s1714 = smul.u32 2, %s44
          %1716 = vsyncadd [#allocation11], 0
          %s1717 = smul.addr %s1714, 8
          %s1718 = scalar_lea.hbm %s21, %s1717
          %s1719 = sshll.u32 [#allocation10], 4
          %s1720 = int_to_ptr.vmem [resolvable:$true] %s1719
          %s1721 = sshll.u32 %s1718, 4
          %s1722 = int_to_ptr.hbm [resolvable:$true] %s1721
          %1727 = dma.vmem_to_hbm [thread:$0]  %s1720, 256, %s1722, [#allocation11], 128, 128, 8
        $region120: #{decoder_forward.3} parent=99 // pred_fallthru
          _
        // Predicated region
        $region121: #{decoder_forward.3} parent=99 // pred_check
          %p1728 = pneg %p566
        $region122: #{decoder_forward.3} parent=99 // pred_check_branch
          %1730 = sbr.rel (%p1728) target = $region124
        $region123: #{decoder_forward.3} parent=99 // pred_region
          %1732 = dma.done [#allocation11], 256
        $region124: #{decoder_forward.3} parent=99 // pred_fallthru
          _
      $region100: #{decoder_forward.3} parent=5 // pred_fallthru
        _
      %p1733 = scmp.le.s32.totalorder 2, %s34
      // Predicated region
      $region125: #{decoder_forward.3} parent=5 // pred_check
        %p1734 = pneg %p1733
      $region126: #{decoder_forward.3} parent=5 // pred_check_branch
        %1736 = sbr.rel (%p1734) target = $region128
      $region127: #{decoder_forward.3} parent=5 // pred_region
        %s1737 = ssub.s32 %s34, 2
        // Predicated region
        $region129: #{decoder_forward.3} parent=127 // pred_check
          %p1738 = pneg %p546
        $region130: #{decoder_forward.3} parent=127 // pred_check_branch
          %1740 = sbr.rel (%p1738) target = $region132
        $region131: #{decoder_forward.3} parent=127 // pred_region
          %s1741 = sand.u32 %s531, 1
          %s1742 = scalar_lea.sflag [#allocation9], %s1741
          %s1743 = sand.u32 %s531, 1
          %s1744 = smul.addr %s1743, 16
          %s1745 = scalar_lea.vmem [#allocation8], %s1744
          %1747 = dma.done %s1742, 256
        $region132: #{decoder_forward.3} parent=127 // pred_fallthru
          _
      $region128: #{decoder_forward.3} parent=5 // pred_fallthru
        _
    $region6: #{decoder_forward.3} parent=1 // loop_footer
      %s38 = sadd.s32 1, %s34
    $region7: #{decoder_forward.3} parent=1 // loop_footer_branch
      %33 = sbr.rel target = $region3
    $region8: #{decoder_forward.3} parent=1 // loop_exit
      _
    %1748 = vsyncpa [#allocation9], 1
    %s1749 = scalar_lea.sflag [#allocation9], 1
    %1750 = vsyncpa %s1749, 1
    %1751 = vsyncpa [#allocation11], 1

</llo_original>
